<compile_context>
chip_gen: v7x
topology: tpu7x:2x2x1
jax: 0.10.0
libtpu: 0.0.40
codegen_flags: <defaults>
</compile_context>

<pallas_src>
import math
import functools

import jax
import jax.numpy as jnp
from jax.experimental import pallas as pl
from jax.experimental.pallas import tpu as pltpu

BN_EPS = 1e-5
MPAD = 8            # sublane-aligned row count for the FC / hyper / output stages
DPAD = 8            # lane padding for the raw point coordinates
STATS_LANES = 128   # lane-dense stats output width


# ----------------------------------------------------------------------------- helpers
def _vmem_spec():
    return pl.BlockSpec(memory_space=pltpu.MemorySpace.VMEM)


def _bn_train(h, gb, relu):
    """Training-mode BatchNorm over all rows (one data pass: E[x], E[x^2]); gb = [gamma; beta].
    NOTE: single-pass variance is slightly less accurate than PyTorch's two-pass version."""
    mu = jnp.mean(h, axis=0, keepdims=True)
    ex2 = jnp.mean(h * h, axis=0, keepdims=True)
    var = jnp.maximum(ex2 - mu * mu, 0.0)
    out = (h - mu) * jax.lax.rsqrt(var + BN_EPS) * gb[0:1, :] + gb[1:2, :]
    return jnp.maximum(out, 0.0) if relu else out


def _pack_lanes(mats):
    """Concatenate equal-row matrices along lanes; return (slab, static offsets)."""
    offs, o = [], 0
    for m in mats:
        offs.append(o)
        o += int(m.shape[1])
    return jnp.concatenate(mats, axis=1), tuple(offs)


# ----------------------------------------------------------------------------- fused kernel
def fused_forward_kernel(cfg,
                         x_ref, eps_ref, w1_ref, wk128_ref, wk256_ref, wk512_ref, bias_ref,
                         tnw_ref, z_ref, stats_ref):
    f32, bf16 = jnp.float32, jnp.bfloat16
    B, N, D, zdim = cfg["B"], cfg["N"], cfg["D"], cfg["zdim"]
    ZP, H0P, H1P, OUTP = cfg["ZPAD"], cfg["H0P"], cfg["H1P"], cfg["out_pad"]
    o128, o256, o512, obf = cfg["o128"], cfg["o256"], cfg["o512"], cfg["obias"]

    # static, 128-lane-aligned slab views ------------------------------------------------
    def w128(i, w): return wk128_ref[:, o128[i]:o128[i] + w]      # bf16
    def w256(i, w): return wk256_ref[:, o256[i]:o256[i] + w]      # bf16
    def w512(i, w): return wk512_ref[:, o512[i]:o512[i] + w]      # bf16
    def gb(i, w):   return bias_ref[:, obf[i]:obf[i] + w]         # (2, w) gamma/beta
    def brow(i, w): return bias_ref[0:1, obf[i]:obf[i] + w]       # (1, w) bias row

    # ---- encoder point MLP: (B*N, D) -> (B*N, 512); conv1d(k=1) == per-point linear ----
    x = x_ref[...]                                                       # (B*N, DPAD) f32
    h = _bn_train(jnp.dot(x, w1_ref[...], preferred_element_type=f32), gb(0, 128), True)
    h = _bn_train(jnp.dot(h.astype(bf16), w128(0, 128), preferred_element_type=f32),
                  gb(1, 128), True)
    h = _bn_train(jnp.dot(h.astype(bf16), w128(1, 256), preferred_element_type=f32),
                  gb(2, 256), True)
    h = _bn_train(jnp.dot(h.astype(bf16), w256(0, 512), preferred_element_type=f32),
                  gb(3, 512), False)

    # ---- torch.max(x, 2)[0]: vectorized max over the point axis, padded to MPAD rows ----
    feat = jnp.max(h.reshape(B, N, h.shape[-1]), axis=1)                 # (B, 512)
    feat = jnp.concatenate(
        [feat, jnp.zeros((MPAD - B, feat.shape[-1]), f32)], axis=0)      # (MPAD, 512)

    row_ids = jax.lax.broadcasted_iota(jnp.int32, (MPAD, 1), 0)
    row_mask = (row_ids < B).astype(f32)                                 # (MPAD, 1)
    inv_b = 1.0 / float(B)

    def bn_masked(hm, gbm, relu):
        # padded rows of hm are zero by construction -> divisor is the true batch size B;
        # re-mask the output so padded rows stay zero for the next layer's statistics.
        mu = jnp.sum(hm, axis=0, keepdims=True) * inv_b
        ex2 = jnp.sum(hm * hm, axis=0, keepdims=True) * inv_b
        var = jnp.maximum(ex2 - mu * mu, 0.0)
        out = (hm - mu) * jax.lax.rsqrt(var + BN_EPS) * gbm[0:1, :] + gbm[1:2, :]
        if relu:
            out = jnp.maximum(out, 0.0)
        return out * row_mask

    # ---- merged m/v FC heads (block-diagonal layers 2/3), training-mode BN --------------
    g = bn_masked(jnp.dot(feat.astype(bf16), w512(0, 512), preferred_element_type=f32),
                  gb(4, 512), True)
    g = bn_masked(jnp.dot(g.astype(bf16), w512(1, 256), preferred_element_type=f32),
                  gb(5, 256), True)
    mv = jnp.dot(g.astype(bf16), w256(1, 2 * ZP), preferred_element_type=f32) + brow(6, 2 * ZP)
    z_mu = mv[:, :ZP]                                                    # aligned slice
    z_sigma = mv[:, ZP:2 * ZP]                                           # aligned slice

    # ---- reparameterize_gaussian (eps pre-padded with zeros; padded lanes/rows stay 0/garbage)
    z = z_mu + jnp.exp(0.5 * z_sigma) * eps_ref[...]                     # (MPAD, ZP)
    z_ref[...] = z                                                       # full-tile store

    # use_latent_flow=False -> log_pz = 0 ; z_new = z + (log_pz * 0).mean() = z

    # ---- HyperFlowNetwork (trunk + all output heads fused into one wide matmul) --------
    hh = jnp.maximum(
        jnp.dot(z.astype(bf16), w128(2, H0P), preferred_element_type=f32) + brow(7, H0P), 0.0)
    hh = jnp.dot(hh.astype(bf16), w128(3, H1P), preferred_element_type=f32) + brow(8, H1P)
    tnw_ref[...] = (jnp.dot(hh.astype(bf16), w128(4, OUTP), preferred_element_type=f32)
                    + brow(9, OUTP))

    # ---- loss statistics -----------------------------------------------------------------
    # TODO(synk): point_cnf is an external CNF; treated as identity (y = x, delta_log_py = 0).
    lpx_total = -0.5 * jnp.sum(x * x) - 0.5 * math.log(2.0 * math.pi) * float(B * N * D)
    ent_const = 0.5 * float(zdim) * (1.0 + math.log(math.pi * 2.0))
    ent_total = 0.5 * jnp.sum(z_sigma * row_mask) + float(B) * ent_const

    lane_ids = jax.lax.broadcasted_iota(jnp.int32, (MPAD, STATS_LANES), 1)
    stats_ref[...] = jnp.where(lane_ids < STATS_LANES // 2, ent_total, lpx_total)


# ----------------------------------------------------------------------------- wrapper
def run_fused(x_flat, eps_pad, params, cfg):
    args = [x_flat, eps_pad] + list(params)
    vspec = _vmem_spec()
    return pl.pallas_call(
        functools.partial(fused_forward_kernel, cfg),
        out_shape=(jax.ShapeDtypeStruct((MPAD, cfg["out_pad"]), jnp.float32),   # hyper out
                   jax.ShapeDtypeStruct((MPAD, cfg["ZPAD"]), jnp.float32),      # z (padded)
                   jax.ShapeDtypeStruct((MPAD, STATS_LANES), jnp.float32)),     # [ent|lpx]
        in_specs=[vspec] * len(args),
        out_specs=(vspec, vspec, vspec),
        compiler_params=pltpu.CompilerParams(vmem_limit_bytes=32 * 1024 * 1024),
    )(*args)


# ----------------------------------------------------------------------------- param init
def _linear_w(key, fan_in, fan_out):
    """PyTorch default Linear/Conv init for the weight: U(-1/sqrt(fan_in), 1/sqrt(fan_in))."""
    lim = 1.0 / math.sqrt(fan_in)
    return jax.random.uniform(key, (fan_in, fan_out), jnp.float32, -lim, lim)


def _linear_wb(key, fan_in, fan_out):
    k1, k2 = jax.random.split(key)
    lim = 1.0 / math.sqrt(fan_in)
    w = jax.random.uniform(k1, (fan_in, fan_out), jnp.float32, -lim, lim)
    b = jax.random.uniform(k2, (1, fan_out), jnp.float32, -lim, lim)
    return w, b


def _bn_slab(c):
    # row 0 = gamma (ones), row 1 = beta (zeros)
    return jnp.concatenate([jnp.ones((1, c), jnp.float32), jnp.zeros((1, c), jnp.float32)], 0)


def _block_diag(a, b):
    top = jnp.concatenate([a, jnp.zeros((a.shape[0], b.shape[1]), a.dtype)], axis=1)
    bot = jnp.concatenate([jnp.zeros((b.shape[0], a.shape[1]), b.dtype), b], axis=1)
    return jnp.concatenate([top, bot], axis=0)


def _ceil128(n):
    return int(pl.cdiv(n, 128) * 128)


def build_params(key, input_dim, zdim, hyper_dims, point_dims):
    keys = jax.random.split(key, 64)
    ki = iter(keys)

    ZP, H0P, H1P = _ceil128(zdim), _ceil128(hyper_dims[0]), _ceil128(hyper_dims[1])
    # K=128 weight-slab packing below assumes these all pad to 128 rows.
    assert ZP == 128 and H0P == 128 and H1P == 128, "slab packing assumes zdim/hyper_dims <= 128"

    # encoder point-MLP: 3->128->128->256->512 (biases dropped: cancelled by training-mode BN)
    chans = [input_dim, 128, 128, 256, 512]
    w1 = jnp.pad(_linear_w(next(ki), chans[0], chans[1]), ((0, DPAD - input_dim), (0, 0)))
    w2 = _linear_w(next(ki), chans[1], chans[2])
    w3 = _linear_w(next(ki), chans[2], chans[3])
    w4 = _linear_w(next(ki), chans[3], chans[4])
    gb1, gb2, gb3, gb4 = _bn_slab(128), _bn_slab(128), _bn_slab(256), _bn_slab(512)

    # merged m/v FC heads: layer-1 concat, layers 2/3 block-diagonal (layer-3 lane-padded to ZP)
    mw1 = _linear_w(next(ki), 512, 256)
    vw1 = _linear_w(next(ki), 512, 256)
    mw2 = _linear_w(next(ki), 256, 128)
    vw2 = _linear_w(next(ki), 256, 128)
    mw3, mb3 = _linear_wb(next(ki), 128, zdim)
    vw3, vb3 = _linear_wb(next(ki), 128, zdim)
    fw1 = jnp.concatenate([mw1, vw1], axis=1)                            # (512, 512)
    fgb1 = jnp.concatenate([_bn_slab(256), _bn_slab(256)], 1)            # (2, 512)
    fw2 = _block_diag(mw2, vw2)                                          # (512, 256)
    fgb2 = jnp.concatenate([_bn_slab(128), _bn_slab(128)], 1)            # (2, 256)
    fw3 = _block_diag(jnp.pad(mw3, ((0, 0), (0, ZP - zdim))),
                      jnp.pad(vw3, ((0, 0), (0, ZP - zdim))))            # (256, 2*ZP)
    fb3 = jnp.concatenate([jnp.pad(mb3, ((0, 0), (0, ZP - zdim))),
                           jnp.pad(vb3, ((0, 0), (0, ZP - zdim)))], 1)   # (1, 2*ZP)

    # HyperFlowNetwork trunk: zdim -> hyper_dims[0] -> hyper_dims[1] (ReLU between),
    # zero-padded to 128 lanes/rows so it packs into the aligned slabs.
    hw0, hb0 = _linear_wb(next(ki), zdim, hyper_dims[0])
    hw1, hb1 = _linear_wb(next(ki), hyper_dims[0], hyper_dims[1])
    hw0 = jnp.pad(hw0, ((0, ZP - zdim), (0, H0P - hyper_dims[0])))
    hb0 = jnp.pad(hb0, ((0, 0), (0, H0P - hyper_dims[0])))
    hw1 = jnp.pad(hw1, ((0, H0P - hyper_dims[0]), (0, H1P - hyper_dims[1])))
    hb1 = jnp.pad(hb1, ((0, 0), (0, H1P - hyper_dims[1])))

    # output heads -> fused into one wide matmul, lane-padded to a multiple of 128.
    n_out = hyper_dims[-1]
    head_sizes = []
    for k in range(len(point_dims)):
        head_sizes.append((input_dim if k == 0 else point_dims[k - 1]) * point_dims[k])
        head_sizes += [point_dims[k]] * 4
    head_sizes.append(point_dims[-1] * input_dim)
    head_sizes += [input_dim] * 4
    ows, obs = [], []
    for sz in head_sizes:
        w, b = _linear_wb(next(ki), n_out, sz)
        ows.append(w)
        obs.append(b)
    ow = jnp.concatenate(ows, axis=1)
    ob = jnp.concatenate(obs, axis=1)
    total_out = int(ow.shape[1])
    out_pad = _ceil128(total_out)
    ow = jnp.pad(ow, ((0, H1P - n_out), (0, out_pad - total_out)))
    ob = jnp.pad(ob, ((0, 0), (0, out_pad - total_out)))

    # ---- pack weights into 3 bf16 slabs grouped by fan-in (MXU-native, halves DMA bytes)
    wk128, o128 = _pack_lanes([w2, w3, hw0, hw1, ow])                    # (128, 640+out_pad)
    wk256, o256 = _pack_lanes([w4, fw3])                                 # (256, 512+2*ZP)
    wk512, o512 = _pack_lanes([fw1, fw2])                                # (512, 768)
    wk128 = wk128.astype(jnp.bfloat16)
    wk256 = wk256.astype(jnp.bfloat16)
    wk512 = wk512.astype(jnp.bfloat16)

    # ---- pack every BN gamma/beta pair and bias row into one f32 (2, L) slab
    def two_rows(b):
        return jnp.concatenate([b, jnp.zeros_like(b)], axis=0)
    bias_slab, bias_offs = _pack_lanes(
        [gb1, gb2, gb3, gb4, fgb1, fgb2,
         two_rows(fb3), two_rows(hb0), two_rows(hb1), two_rows(ob)])

    params = [w1, wk128, wk256, wk512, bias_slab]
    cfg = dict(zdim=zdim, ZPAD=ZP, H0P=H0P, H1P=H1P, out_pad=out_pad,
               o128=o128, o256=o256, o512=o512, obias=bias_offs)
    return params, cfg, total_out


# ----------------------------------------------------------------------------- forward
def hyper_point_flow_forward(x, eps, params, cfg, total_out,
                             prior_weight=1.0, recon_weight=1.0, entropy_weight=1.0):
    B, N, D = x.shape
    zdim = cfg["zdim"]

    # x.transpose(1,2) + conv1d(k=1) == per-point linear; lane-pad coords with zeros.
    x_flat = jnp.pad(x.reshape(B * N, D), ((0, 0), (0, DPAD - D)))
    eps_pad = jnp.pad(eps, ((0, MPAD - B), (0, cfg["ZPAD"] - zdim)))

    kcfg = dict(cfg, B=B, N=N, D=D)
    tnw_pad, z_pad, stats = run_fused(x_flat, eps_pad, params, kcfg)

    target_networks_weights = tnw_pad[:B, :total_out]
    z = z_pad[:B, :zdim]
    ent_sum = stats[0, 0]                    # sum_b gaussian_entropy(logvar_b)
    lpx_sum = stats[0, STATS_LANES // 2]     # sum_b log_px_b   (delta_log_py = 0)

    # use_latent_flow = False -> log_pz = 0
    entropy_mean = ent_sum / float(B)
    log_px_mean = lpx_sum / float(B)
    entropy_loss = -entropy_mean * entropy_weight
    recon_loss = -log_px_mean * recon_weight
    prior_loss = jnp.float32(0.0) * prior_weight
    loss = entropy_loss + prior_loss + recon_loss

    recon = -lpx_sum                         # matches reference: -log_px.sum() (non-distributed)
    prior = jnp.float32(0.0)
    recon_nats = recon / float(N * D)
    prior_nats = prior / float(zdim)

    return {
        "entropy": entropy_mean,
        "prior_nats": prior_nats,
        "recon_nats": recon_nats,
        "loss": loss,
        "target_networks_weights": target_networks_weights,
        "z": z,
    }


# ----------------------------------------------------------------------------- main
if __name__ == "__main__":
    B, N, INPUT_DIM = 2, 16, 3
    ZDIM = 32
    HYPER_DIMS = (64, 64)      # args.hyper_dims = "64-64"
    POINT_DIMS = (16, 16)      # args.dims = "16-16"

    key = jax.random.PRNGKey(0)
    kx, keps, kp = jax.random.split(key, 3)

    x = jax.random.normal(kx, (B, N, INPUT_DIM), jnp.float32)
    eps = jax.random.normal(keps, (B, ZDIM), jnp.float32)
    params, cfg, total_out = build_params(kp, INPUT_DIM, ZDIM, HYPER_DIMS, POINT_DIMS)

    out = hyper_point_flow_forward(x, eps, params, cfg, total_out)
    jax.block_until_ready(out["loss"])
    jax.block_until_ready(out["target_networks_weights"])
    jax.block_until_ready(out["z"])

    print("KERNEL_OK")
</pallas_src>

<mosaic_0001>
module attributes {stable_mosaic.version = 11 : i64} {
  func.func @fused_forward_kernel(%arg0: memref<32x8xf32, #tpu.memory_space<vmem>>, %arg1: memref<8x128xf32, #tpu.memory_space<vmem>>, %arg2: memref<8x128xf32, #tpu.memory_space<vmem>>, %arg3: memref<128x1152xbf16, #tpu.memory_space<vmem>>, %arg4: memref<256x768xbf16, #tpu.memory_space<vmem>>, %arg5: memref<512x768xbf16, #tpu.memory_space<vmem>>, %arg6: memref<2x2816xf32, #tpu.memory_space<vmem>>, %arg7: memref<8x512xf32, #tpu.memory_space<vmem>>, %arg8: memref<8x128xf32, #tpu.memory_space<vmem>>, %arg9: memref<8x128xf32, #tpu.memory_space<vmem>>) attributes {dimension_semantics = [], scalar_prefetch = 0 : i64, scratch_operands = 0 : i64, tpu.core_type = #tpu.core_type<tc>} {
    %c0 = arith.constant 0 : index
    %c0_0 = arith.constant 0 : index
    %0 = vector.load %arg0[%c0, %c0_0] : memref<32x8xf32, #tpu.memory_space<vmem>>, vector<32x8xf32>
    %c0_1 = arith.constant 0 : index
    %c0_2 = arith.constant 0 : index
    %1 = vector.load %arg2[%c0_1, %c0_2] : memref<8x128xf32, #tpu.memory_space<vmem>>, vector<8x128xf32>
    %cst = arith.constant dense<0.000000e+00> : vector<32x128xf32>
    %2 = tpu.matmul %0, %1, %cst {dimension_numbers = #tpu.dot_dimension_numbers<[1], [0], [0], [1], [0, 0, 1, 1], [], []>} : vector<32x8xf32>, vector<8x128xf32>, vector<32x128xf32> -> vector<32x128xf32>
    %c0_3 = arith.constant 0 : index
    %c0_4 = arith.constant 0 : index
    %3 = vector.load %arg6[%c0_3, %c0_4] : memref<2x2816xf32, #tpu.memory_space<vmem>>, vector<2x128xf32>
    %cst_5 = arith.constant dense<0.000000e+00> : vector<128xf32>
    %4 = vector.multi_reduction <add>, %2, %cst_5 [0] : vector<32x128xf32> to vector<128xf32>
    %5 = vector.shape_cast %4 : vector<128xf32> to vector<1x128xf32>
    %cst_6 = arith.constant 3.200000e+01 : f32
    %6 = vector.broadcast %cst_6 : f32 to vector<1x128xf32>
    %7 = arith.divf %5, %6 : vector<1x128xf32>
    %8 = arith.mulf %2, %2 : vector<32x128xf32>
    %cst_7 = arith.constant dense<0.000000e+00> : vector<128xf32>
    %9 = vector.multi_reduction <add>, %8, %cst_7 [0] : vector<32x128xf32> to vector<128xf32>
    %10 = vector.shape_cast %9 : vector<128xf32> to vector<1x128xf32>
    %cst_8 = arith.constant 3.200000e+01 : f32
    %11 = vector.broadcast %cst_8 : f32 to vector<1x128xf32>
    %12 = arith.divf %10, %11 : vector<1x128xf32>
    %13 = arith.mulf %7, %7 : vector<1x128xf32>
    %14 = arith.subf %12, %13 : vector<1x128xf32>
    %cst_9 = arith.constant 0.000000e+00 : f32
    %15 = vector.broadcast %cst_9 : f32 to vector<1x128xf32>
    %16 = arith.maximumf %14, %15 : vector<1x128xf32>
    %17 = vector.broadcast %7 : vector<1x128xf32> to vector<32x128xf32>
    %18 = arith.subf %2, %17 : vector<32x128xf32>
    %cst_10 = arith.constant 9.99999974E-6 : f32
    %19 = vector.broadcast %cst_10 : f32 to vector<1x128xf32>
    %20 = arith.addf %16, %19 : vector<1x128xf32>
    %21 = math.rsqrt %20 : vector<1x128xf32>
    %22 = vector.broadcast %21 : vector<1x128xf32> to vector<32x128xf32>
    %23 = arith.mulf %18, %22 : vector<32x128xf32>
    %24 = vector.extract_strided_slice %3 {offsets = [0, 0], sizes = [1, 128], strides = [1, 1]} : vector<2x128xf32> to vector<1x128xf32>
    %25 = vector.broadcast %24 : vector<1x128xf32> to vector<32x128xf32>
    %26 = arith.mulf %23, %25 : vector<32x128xf32>
    %27 = vector.extract_strided_slice %3 {offsets = [1, 0], sizes = [1, 128], strides = [1, 1]} : vector<2x128xf32> to vector<1x128xf32>
    %28 = vector.broadcast %27 : vector<1x128xf32> to vector<32x128xf32>
    %29 = arith.addf %26, %28 : vector<32x128xf32>
    %cst_11 = arith.constant 0.000000e+00 : f32
    %30 = vector.broadcast %cst_11 : f32 to vector<32x128xf32>
    %31 = arith.maximumf %29, %30 : vector<32x128xf32>
    %32 = arith.truncf %31 : vector<32x128xf32> to vector<32x128xbf16>
    %c0_12 = arith.constant 0 : index
    %c0_13 = arith.constant 0 : index
    %33 = vector.load %arg3[%c0_12, %c0_13] : memref<128x1152xbf16, #tpu.memory_space<vmem>>, vector<128x128xbf16>
    %cst_14 = arith.constant dense<0.000000e+00> : vector<32x128xf32>
    %34 = tpu.matmul %32, %33, %cst_14 {dimension_numbers = #tpu.dot_dimension_numbers<[1], [0], [0], [1], [0, 0, 1, 1], [], []>} : vector<32x128xbf16>, vector<128x128xbf16>, vector<32x128xf32> -> vector<32x128xf32>
    %c0_15 = arith.constant 0 : index
    %c128 = arith.constant 128 : index
    %35 = vector.load %arg6[%c0_15, %c128] : memref<2x2816xf32, #tpu.memory_space<vmem>>, vector<2x128xf32>
    %cst_16 = arith.constant dense<0.000000e+00> : vector<128xf32>
    %36 = vector.multi_reduction <add>, %34, %cst_16 [0] : vector<32x128xf32> to vector<128xf32>
    %37 = vector.shape_cast %36 : vector<128xf32> to vector<1x128xf32>
    %cst_17 = arith.constant 3.200000e+01 : f32
    %38 = vector.broadcast %cst_17 : f32 to vector<1x128xf32>
    %39 = arith.divf %37, %38 : vector<1x128xf32>
    %40 = arith.mulf %34, %34 : vector<32x128xf32>
    %cst_18 = arith.constant dense<0.000000e+00> : vector<128xf32>
    %41 = vector.multi_reduction <add>, %40, %cst_18 [0] : vector<32x128xf32> to vector<128xf32>
    %42 = vector.shape_cast %41 : vector<128xf32> to vector<1x128xf32>
    %cst_19 = arith.constant 3.200000e+01 : f32
    %43 = vector.broadcast %cst_19 : f32 to vector<1x128xf32>
    %44 = arith.divf %42, %43 : vector<1x128xf32>
    %45 = arith.mulf %39, %39 : vector<1x128xf32>
    %46 = arith.subf %44, %45 : vector<1x128xf32>
    %cst_20 = arith.constant 0.000000e+00 : f32
    %47 = vector.broadcast %cst_20 : f32 to vector<1x128xf32>
    %48 = arith.maximumf %46, %47 : vector<1x128xf32>
    %49 = vector.broadcast %39 : vector<1x128xf32> to vector<32x128xf32>
    %50 = arith.subf %34, %49 : vector<32x128xf32>
    %cst_21 = arith.constant 9.99999974E-6 : f32
    %51 = vector.broadcast %cst_21 : f32 to vector<1x128xf32>
    %52 = arith.addf %48, %51 : vector<1x128xf32>
    %53 = math.rsqrt %52 : vector<1x128xf32>
    %54 = vector.broadcast %53 : vector<1x128xf32> to vector<32x128xf32>
    %55 = arith.mulf %50, %54 : vector<32x128xf32>
    %56 = vector.extract_strided_slice %35 {offsets = [0, 0], sizes = [1, 128], strides = [1, 1]} : vector<2x128xf32> to vector<1x128xf32>
    %57 = vector.broadcast %56 : vector<1x128xf32> to vector<32x128xf32>
    %58 = arith.mulf %55, %57 : vector<32x128xf32>
    %59 = vector.extract_strided_slice %35 {offsets = [1, 0], sizes = [1, 128], strides = [1, 1]} : vector<2x128xf32> to vector<1x128xf32>
    %60 = vector.broadcast %59 : vector<1x128xf32> to vector<32x128xf32>
    %61 = arith.addf %58, %60 : vector<32x128xf32>
    %cst_22 = arith.constant 0.000000e+00 : f32
    %62 = vector.broadcast %cst_22 : f32 to vector<32x128xf32>
    %63 = arith.maximumf %61, %62 : vector<32x128xf32>
    %64 = arith.truncf %63 : vector<32x128xf32> to vector<32x128xbf16>
    %c0_23 = arith.constant 0 : index
    %c128_24 = arith.constant 128 : index
    %65 = vector.load %arg3[%c0_23, %c128_24] : memref<128x1152xbf16, #tpu.memory_space<vmem>>, vector<128x256xbf16>
    %cst_25 = arith.constant dense<0.000000e+00> : vector<32x256xf32>
    %66 = tpu.matmul %64, %65, %cst_25 {dimension_numbers = #tpu.dot_dimension_numbers<[1], [0], [0], [1], [0, 0, 1, 1], [], []>} : vector<32x128xbf16>, vector<128x256xbf16>, vector<32x256xf32> -> vector<32x256xf32>
    %c0_26 = arith.constant 0 : index
    %c256 = arith.constant 256 : index
    %67 = vector.load %arg6[%c0_26, %c256] : memref<2x2816xf32, #tpu.memory_space<vmem>>, vector<2x256xf32>
    %cst_27 = arith.constant dense<0.000000e+00> : vector<256xf32>
    %68 = vector.multi_reduction <add>, %66, %cst_27 [0] : vector<32x256xf32> to vector<256xf32>
    %69 = vector.shape_cast %68 : vector<256xf32> to vector<1x256xf32>
    %cst_28 = arith.constant 3.200000e+01 : f32
    %70 = vector.broadcast %cst_28 : f32 to vector<1x256xf32>
    %71 = arith.divf %69, %70 : vector<1x256xf32>
    %72 = arith.mulf %66, %66 : vector<32x256xf32>
    %cst_29 = arith.constant dense<0.000000e+00> : vector<256xf32>
    %73 = vector.multi_reduction <add>, %72, %cst_29 [0] : vector<32x256xf32> to vector<256xf32>
    %74 = vector.shape_cast %73 : vector<256xf32> to vector<1x256xf32>
    %cst_30 = arith.constant 3.200000e+01 : f32
    %75 = vector.broadcast %cst_30 : f32 to vector<1x256xf32>
    %76 = arith.divf %74, %75 : vector<1x256xf32>
    %77 = arith.mulf %71, %71 : vector<1x256xf32>
    %78 = arith.subf %76, %77 : vector<1x256xf32>
    %cst_31 = arith.constant 0.000000e+00 : f32
    %79 = vector.broadcast %cst_31 : f32 to vector<1x256xf32>
    %80 = arith.maximumf %78, %79 : vector<1x256xf32>
    %81 = vector.broadcast %71 : vector<1x256xf32> to vector<32x256xf32>
    %82 = arith.subf %66, %81 : vector<32x256xf32>
    %cst_32 = arith.constant 9.99999974E-6 : f32
    %83 = vector.broadcast %cst_32 : f32 to vector<1x256xf32>
    %84 = arith.addf %80, %83 : vector<1x256xf32>
    %85 = math.rsqrt %84 : vector<1x256xf32>
    %86 = vector.broadcast %85 : vector<1x256xf32> to vector<32x256xf32>
    %87 = arith.mulf %82, %86 : vector<32x256xf32>
    %88 = vector.extract_strided_slice %67 {offsets = [0, 0], sizes = [1, 256], strides = [1, 1]} : vector<2x256xf32> to vector<1x256xf32>
    %89 = vector.broadcast %88 : vector<1x256xf32> to vector<32x256xf32>
    %90 = arith.mulf %87, %89 : vector<32x256xf32>
    %91 = vector.extract_strided_slice %67 {offsets = [1, 0], sizes = [1, 256], strides = [1, 1]} : vector<2x256xf32> to vector<1x256xf32>
    %92 = vector.broadcast %91 : vector<1x256xf32> to vector<32x256xf32>
    %93 = arith.addf %90, %92 : vector<32x256xf32>
    %cst_33 = arith.constant 0.000000e+00 : f32
    %94 = vector.broadcast %cst_33 : f32 to vector<32x256xf32>
    %95 = arith.maximumf %93, %94 : vector<32x256xf32>
    %96 = arith.truncf %95 : vector<32x256xf32> to vector<32x256xbf16>
    %c0_34 = arith.constant 0 : index
    %c0_35 = arith.constant 0 : index
    %97 = vector.load %arg4[%c0_34, %c0_35] : memref<256x768xbf16, #tpu.memory_space<vmem>>, vector<256x512xbf16>
    %cst_36 = arith.constant dense<0.000000e+00> : vector<32x512xf32>
    %98 = tpu.matmul %96, %97, %cst_36 {dimension_numbers = #tpu.dot_dimension_numbers<[1], [0], [0], [1], [0, 0, 1, 1], [], []>} : vector<32x256xbf16>, vector<256x512xbf16>, vector<32x512xf32> -> vector<32x512xf32>
    %c0_37 = arith.constant 0 : index
    %c512 = arith.constant 512 : index
    %99 = vector.load %arg6[%c0_37, %c512] : memref<2x2816xf32, #tpu.memory_space<vmem>>, vector<2x512xf32>
    %cst_38 = arith.constant dense<0.000000e+00> : vector<512xf32>
    %100 = vector.multi_reduction <add>, %98, %cst_38 [0] : vector<32x512xf32> to vector<512xf32>
    %101 = vector.shape_cast %100 : vector<512xf32> to vector<1x512xf32>
    %cst_39 = arith.constant 3.200000e+01 : f32
    %102 = vector.broadcast %cst_39 : f32 to vector<1x512xf32>
    %103 = arith.divf %101, %102 : vector<1x512xf32>
    %104 = arith.mulf %98, %98 : vector<32x512xf32>
    %cst_40 = arith.constant dense<0.000000e+00> : vector<512xf32>
    %105 = vector.multi_reduction <add>, %104, %cst_40 [0] : vector<32x512xf32> to vector<512xf32>
    %106 = vector.shape_cast %105 : vector<512xf32> to vector<1x512xf32>
    %cst_41 = arith.constant 3.200000e+01 : f32
    %107 = vector.broadcast %cst_41 : f32 to vector<1x512xf32>
    %108 = arith.divf %106, %107 : vector<1x512xf32>
    %109 = arith.mulf %103, %103 : vector<1x512xf32>
    %110 = arith.subf %108, %109 : vector<1x512xf32>
    %cst_42 = arith.constant 0.000000e+00 : f32
    %111 = vector.broadcast %cst_42 : f32 to vector<1x512xf32>
    %112 = arith.maximumf %110, %111 : vector<1x512xf32>
    %113 = vector.broadcast %103 : vector<1x512xf32> to vector<32x512xf32>
    %114 = arith.subf %98, %113 : vector<32x512xf32>
    %cst_43 = arith.constant 9.99999974E-6 : f32
    %115 = vector.broadcast %cst_43 : f32 to vector<1x512xf32>
    %116 = arith.addf %112, %115 : vector<1x512xf32>
    %117 = math.rsqrt %116 : vector<1x512xf32>
    %118 = vector.broadcast %117 : vector<1x512xf32> to vector<32x512xf32>
    %119 = arith.mulf %114, %118 : vector<32x512xf32>
    %120 = vector.extract_strided_slice %99 {offsets = [0, 0], sizes = [1, 512], strides = [1, 1]} : vector<2x512xf32> to vector<1x512xf32>
    %121 = vector.broadcast %120 : vector<1x512xf32> to vector<32x512xf32>
    %122 = arith.mulf %119, %121 : vector<32x512xf32>
    %123 = vector.extract_strided_slice %99 {offsets = [1, 0], sizes = [1, 512], strides = [1, 1]} : vector<2x512xf32> to vector<1x512xf32>
    %124 = vector.broadcast %123 : vector<1x512xf32> to vector<32x512xf32>
    %125 = arith.addf %122, %124 : vector<32x512xf32>
    %126 = vector.shape_cast %125 : vector<32x512xf32> to vector<2x16x512xf32>
    %cst_44 = arith.constant dense<0xFF800000> : vector<2x512xf32>
    %127 = vector.multi_reduction <maximumf>, %126, %cst_44 [1] : vector<2x16x512xf32> to vector<2x512xf32>
    %cst_45 = arith.constant 0.000000e+00 : f32
    %128 = vector.broadcast %cst_45 : f32 to vector<6x512xf32>
    %129 = tpu.concatenate %127, %128 in 0 : vector<2x512xf32>, vector<6x512xf32> -> vector<8x512xf32>
    %130 = tpu.iota {dimensions = array<i32: 0>} : vector<8x1xi32>
    %c2_i32 = arith.constant 2 : i32
    %131 = vector.broadcast %c2_i32 : i32 to vector<8x1xi32>
    %132 = arith.cmpi slt, %130, %131 : vector<8x1xi32>
    %133 = arith.extui %132 : vector<8x1xi1> to vector<8x1xi32>
    %134 = arith.sitofp %133 : vector<8x1xi32> to vector<8x1xf32>
    %135 = arith.truncf %129 : vector<8x512xf32> to vector<8x512xbf16>
    %c0_46 = arith.constant 0 : index
    %c0_47 = arith.constant 0 : index
    %136 = vector.load %arg5[%c0_46, %c0_47] : memref<512x768xbf16, #tpu.memory_space<vmem>>, vector<512x512xbf16>
    %cst_48 = arith.constant dense<0.000000e+00> : vector<8x512xf32>
    %137 = tpu.matmul %135, %136, %cst_48 {dimension_numbers = #tpu.dot_dimension_numbers<[1], [0], [0], [1], [0, 0, 1, 1], [], []>} : vector<8x512xbf16>, vector<512x512xbf16>, vector<8x512xf32> -> vector<8x512xf32>
    %c0_49 = arith.constant 0 : index
    %c1024 = arith.constant 1024 : index
    %138 = vector.load %arg6[%c0_49, %c1024] : memref<2x2816xf32, #tpu.memory_space<vmem>>, vector<2x512xf32>
    %cst_50 = arith.constant dense<0.000000e+00> : vector<512xf32>
    %139 = vector.multi_reduction <add>, %137, %cst_50 [0] : vector<8x512xf32> to vector<512xf32>
    %140 = vector.shape_cast %139 : vector<512xf32> to vector<1x512xf32>
    %cst_51 = arith.constant 5.000000e-01 : f32
    %141 = vector.broadcast %cst_51 : f32 to vector<1x512xf32>
    %142 = arith.mulf %140, %141 : vector<1x512xf32>
    %143 = arith.mulf %137, %137 : vector<8x512xf32>
    %cst_52 = arith.constant dense<0.000000e+00> : vector<512xf32>
    %144 = vector.multi_reduction <add>, %143, %cst_52 [0] : vector<8x512xf32> to vector<512xf32>
    %145 = vector.shape_cast %144 : vector<512xf32> to vector<1x512xf32>
    %cst_53 = arith.constant 5.000000e-01 : f32
    %146 = vector.broadcast %cst_53 : f32 to vector<1x512xf32>
    %147 = arith.mulf %145, %146 : vector<1x512xf32>
    %148 = arith.mulf %142, %142 : vector<1x512xf32>
    %149 = arith.subf %147, %148 : vector<1x512xf32>
    %cst_54 = arith.constant 0.000000e+00 : f32
    %150 = vector.broadcast %cst_54 : f32 to vector<1x512xf32>
    %151 = arith.maximumf %149, %150 : vector<1x512xf32>
    %152 = vector.broadcast %142 : vector<1x512xf32> to vector<8x512xf32>
    %153 = arith.subf %137, %152 : vector<8x512xf32>
    %cst_55 = arith.constant 9.99999974E-6 : f32
    %154 = vector.broadcast %cst_55 : f32 to vector<1x512xf32>
    %155 = arith.addf %151, %154 : vector<1x512xf32>
    %156 = math.rsqrt %155 : vector<1x512xf32>
    %157 = vector.broadcast %156 : vector<1x512xf32> to vector<8x512xf32>
    %158 = arith.mulf %153, %157 : vector<8x512xf32>
    %159 = vector.extract_strided_slice %138 {offsets = [0, 0], sizes = [1, 512], strides = [1, 1]} : vector<2x512xf32> to vector<1x512xf32>
    %160 = vector.broadcast %159 : vector<1x512xf32> to vector<8x512xf32>
    %161 = arith.mulf %158, %160 : vector<8x512xf32>
    %162 = vector.extract_strided_slice %138 {offsets = [1, 0], sizes = [1, 512], strides = [1, 1]} : vector<2x512xf32> to vector<1x512xf32>
    %163 = vector.broadcast %162 : vector<1x512xf32> to vector<8x512xf32>
    %164 = arith.addf %161, %163 : vector<8x512xf32>
    %cst_56 = arith.constant 0.000000e+00 : f32
    %165 = vector.broadcast %cst_56 : f32 to vector<8x512xf32>
    %166 = arith.maximumf %164, %165 : vector<8x512xf32>
    %167 = vector.broadcast %134 : vector<8x1xf32> to vector<8x512xf32>
    %168 = arith.mulf %166, %167 : vector<8x512xf32>
    %169 = arith.truncf %168 : vector<8x512xf32> to vector<8x512xbf16>
    %c0_57 = arith.constant 0 : index
    %c512_58 = arith.constant 512 : index
    %170 = vector.load %arg5[%c0_57, %c512_58] : memref<512x768xbf16, #tpu.memory_space<vmem>>, vector<512x256xbf16>
    %cst_59 = arith.constant dense<0.000000e+00> : vector<8x256xf32>
    %171 = tpu.matmul %169, %170, %cst_59 {dimension_numbers = #tpu.dot_dimension_numbers<[1], [0], [0], [1], [0, 0, 1, 1], [], []>} : vector<8x512xbf16>, vector<512x256xbf16>, vector<8x256xf32> -> vector<8x256xf32>
    %c0_60 = arith.constant 0 : index
    %c1536 = arith.constant 1536 : index
    %172 = vector.load %arg6[%c0_60, %c1536] : memref<2x2816xf32, #tpu.memory_space<vmem>>, vector<2x256xf32>
    %cst_61 = arith.constant dense<0.000000e+00> : vector<256xf32>
    %173 = vector.multi_reduction <add>, %171, %cst_61 [0] : vector<8x256xf32> to vector<256xf32>
    %174 = vector.shape_cast %173 : vector<256xf32> to vector<1x256xf32>
    %cst_62 = arith.constant 5.000000e-01 : f32
    %175 = vector.broadcast %cst_62 : f32 to vector<1x256xf32>
    %176 = arith.mulf %174, %175 : vector<1x256xf32>
    %177 = arith.mulf %171, %171 : vector<8x256xf32>
    %cst_63 = arith.constant dense<0.000000e+00> : vector<256xf32>
    %178 = vector.multi_reduction <add>, %177, %cst_63 [0] : vector<8x256xf32> to vector<256xf32>
    %179 = vector.shape_cast %178 : vector<256xf32> to vector<1x256xf32>
    %cst_64 = arith.constant 5.000000e-01 : f32
    %180 = vector.broadcast %cst_64 : f32 to vector<1x256xf32>
    %181 = arith.mulf %179, %180 : vector<1x256xf32>
    %182 = arith.mulf %176, %176 : vector<1x256xf32>
    %183 = arith.subf %181, %182 : vector<1x256xf32>
    %cst_65 = arith.constant 0.000000e+00 : f32
    %184 = vector.broadcast %cst_65 : f32 to vector<1x256xf32>
    %185 = arith.maximumf %183, %184 : vector<1x256xf32>
    %186 = vector.broadcast %176 : vector<1x256xf32> to vector<8x256xf32>
    %187 = arith.subf %171, %186 : vector<8x256xf32>
    %cst_66 = arith.constant 9.99999974E-6 : f32
    %188 = vector.broadcast %cst_66 : f32 to vector<1x256xf32>
    %189 = arith.addf %185, %188 : vector<1x256xf32>
    %190 = math.rsqrt %189 : vector<1x256xf32>
    %191 = vector.broadcast %190 : vector<1x256xf32> to vector<8x256xf32>
    %192 = arith.mulf %187, %191 : vector<8x256xf32>
    %193 = vector.extract_strided_slice %172 {offsets = [0, 0], sizes = [1, 256], strides = [1, 1]} : vector<2x256xf32> to vector<1x256xf32>
    %194 = vector.broadcast %193 : vector<1x256xf32> to vector<8x256xf32>
    %195 = arith.mulf %192, %194 : vector<8x256xf32>
    %196 = vector.extract_strided_slice %172 {offsets = [1, 0], sizes = [1, 256], strides = [1, 1]} : vector<2x256xf32> to vector<1x256xf32>
    %197 = vector.broadcast %196 : vector<1x256xf32> to vector<8x256xf32>
    %198 = arith.addf %195, %197 : vector<8x256xf32>
    %cst_67 = arith.constant 0.000000e+00 : f32
    %199 = vector.broadcast %cst_67 : f32 to vector<8x256xf32>
    %200 = arith.maximumf %198, %199 : vector<8x256xf32>
    %201 = vector.broadcast %134 : vector<8x1xf32> to vector<8x256xf32>
    %202 = arith.mulf %200, %201 : vector<8x256xf32>
    %203 = arith.truncf %202 : vector<8x256xf32> to vector<8x256xbf16>
    %c0_68 = arith.constant 0 : index
    %c512_69 = arith.constant 512 : index
    %204 = vector.load %arg4[%c0_68, %c512_69] : memref<256x768xbf16, #tpu.memory_space<vmem>>, vector<256x256xbf16>
    %cst_70 = arith.constant dense<0.000000e+00> : vector<8x256xf32>
    %205 = tpu.matmul %203, %204, %cst_70 {dimension_numbers = #tpu.dot_dimension_numbers<[1], [0], [0], [1], [0, 0, 1, 1], [], []>} : vector<8x256xbf16>, vector<256x256xbf16>, vector<8x256xf32> -> vector<8x256xf32>
    %c0_71 = arith.constant 0 : index
    %c1792 = arith.constant 1792 : index
    %206 = vector.load %arg6[%c0_71, %c1792] : memref<2x2816xf32, #tpu.memory_space<vmem>>, vector<1x256xf32>
    %207 = vector.broadcast %206 : vector<1x256xf32> to vector<8x256xf32>
    %208 = arith.addf %205, %207 : vector<8x256xf32>
    %209 = vector.extract_strided_slice %208 {offsets = [0, 0], sizes = [8, 128], strides = [1, 1]} : vector<8x256xf32> to vector<8x128xf32>
    %210 = vector.extract_strided_slice %208 {offsets = [0, 128], sizes = [8, 128], strides = [1, 1]} : vector<8x256xf32> to vector<8x128xf32>
    %cst_72 = arith.constant 5.000000e-01 : f32
    %211 = vector.broadcast %cst_72 : f32 to vector<8x128xf32>
    %212 = arith.mulf %211, %210 : vector<8x128xf32>
    %213 = math.exp %212 : vector<8x128xf32>
    %c0_73 = arith.constant 0 : index
    %c0_74 = arith.constant 0 : index
    %214 = vector.load %arg1[%c0_73, %c0_74] : memref<8x128xf32, #tpu.memory_space<vmem>>, vector<8x128xf32>
    %215 = arith.mulf %213, %214 : vector<8x128xf32>
    %216 = arith.addf %209, %215 : vector<8x128xf32>
    %c0_75 = arith.constant 0 : index
    %c0_76 = arith.constant 0 : index
    %217 = vector.load %arg8[%c0_75, %c0_76] : memref<8x128xf32, #tpu.memory_space<vmem>>, vector<8x128xf32>
    tpu.vector_store %arg8[%c0_75, %c0_76], %216 {strides = array<i32>} : memref<8x128xf32, #tpu.memory_space<vmem>>, vector<8x128xf32>,
    %218 = arith.truncf %216 : vector<8x128xf32> to vector<8x128xbf16>
    %c0_77 = arith.constant 0 : index
    %c384 = arith.constant 384 : index
    %219 = vector.load %arg3[%c0_77, %c384] : memref<128x1152xbf16, #tpu.memory_space<vmem>>, vector<128x128xbf16>
    %cst_78 = arith.constant dense<0.000000e+00> : vector<8x128xf32>
    %220 = tpu.matmul %218, %219, %cst_78 {dimension_numbers = #tpu.dot_dimension_numbers<[1], [0], [0], [1], [0, 0, 1, 1], [], []>} : vector<8x128xbf16>, vector<128x128xbf16>, vector<8x128xf32> -> vector<8x128xf32>
    %c0_79 = arith.constant 0 : index
    %c2048 = arith.constant 2048 : index
    %221 = vector.load %arg6[%c0_79, %c2048] : memref<2x2816xf32, #tpu.memory_space<vmem>>, vector<1x128xf32>
    %222 = vector.broadcast %221 : vector<1x128xf32> to vector<8x128xf32>
    %223 = arith.addf %220, %222 : vector<8x128xf32>
    %cst_80 = arith.constant 0.000000e+00 : f32
    %224 = vector.broadcast %cst_80 : f32 to vector<8x128xf32>
    %225 = arith.maximumf %223, %224 : vector<8x128xf32>
    %226 = arith.truncf %225 : vector<8x128xf32> to vector<8x128xbf16>
    %c0_81 = arith.constant 0 : index
    %c512_82 = arith.constant 512 : index
    %227 = vector.load %arg3[%c0_81, %c512_82] : memref<128x1152xbf16, #tpu.memory_space<vmem>>, vector<128x128xbf16>
    %cst_83 = arith.constant dense<0.000000e+00> : vector<8x128xf32>
    %228 = tpu.matmul %226, %227, %cst_83 {dimension_numbers = #tpu.dot_dimension_numbers<[1], [0], [0], [1], [0, 0, 1, 1], [], []>} : vector<8x128xbf16>, vector<128x128xbf16>, vector<8x128xf32> -> vector<8x128xf32>
    %c0_84 = arith.constant 0 : index
    %c2176 = arith.constant 2176 : index
    %229 = vector.load %arg6[%c0_84, %c2176] : memref<2x2816xf32, #tpu.memory_space<vmem>>, vector<1x128xf32>
    %230 = vector.broadcast %229 : vector<1x128xf32> to vector<8x128xf32>
    %231 = arith.addf %228, %230 : vector<8x128xf32>
    %232 = arith.truncf %231 : vector<8x128xf32> to vector<8x128xbf16>
    %c0_85 = arith.constant 0 : index
    %c640 = arith.constant 640 : index
    %233 = vector.load %arg3[%c0_85, %c640] : memref<128x1152xbf16, #tpu.memory_space<vmem>>, vector<128x512xbf16>
    %cst_86 = arith.constant dense<0.000000e+00> : vector<8x512xf32>
    %234 = tpu.matmul %232, %233, %cst_86 {dimension_numbers = #tpu.dot_dimension_numbers<[1], [0], [0], [1], [0, 0, 1, 1], [], []>} : vector<8x128xbf16>, vector<128x512xbf16>, vector<8x512xf32> -> vector<8x512xf32>
    %c0_87 = arith.constant 0 : index
    %c2304 = arith.constant 2304 : index
    %235 = vector.load %arg6[%c0_87, %c2304] : memref<2x2816xf32, #tpu.memory_space<vmem>>, vector<1x512xf32>
    %236 = vector.broadcast %235 : vector<1x512xf32> to vector<8x512xf32>
    %237 = arith.addf %234, %236 : vector<8x512xf32>
    %c0_88 = arith.constant 0 : index
    %c0_89 = arith.constant 0 : index
    %238 = vector.load %arg7[%c0_88, %c0_89] : memref<8x512xf32, #tpu.memory_space<vmem>>, vector<8x512xf32>
    tpu.vector_store %arg7[%c0_88, %c0_89], %237 {strides = array<i32>} : memref<8x512xf32, #tpu.memory_space<vmem>>, vector<8x512xf32>,
    %239 = arith.mulf %0, %0 : vector<32x8xf32>
    %240 = vector.shape_cast %239 : vector<32x8xf32> to vector<1x32x8xf32>
    %cst_90 = arith.constant dense<0.000000e+00> : vector<1xf32>
    %241 = vector.multi_reduction <add>, %240, %cst_90 [1, 2] : vector<1x32x8xf32> to vector<1xf32>
    %242 = vector.shape_cast %241 : vector<1xf32> to vector<1x1x1xf32>
    %243 = vector.extract %242[0, 0, 0] : f32 from vector<1x1x1xf32>
    %cst_91 = arith.constant -5.000000e-01 : f32
    %244 = arith.mulf %cst_91, %243 : f32
    %cst_92 = arith.constant 8.821810e+01 : f32
    %245 = arith.subf %244, %cst_92 : f32
    %246 = vector.broadcast %134 : vector<8x1xf32> to vector<8x128xf32>
    %247 = arith.mulf %210, %246 : vector<8x128xf32>
    %248 = vector.shape_cast %247 : vector<8x128xf32> to vector<1x8x128xf32>
    %cst_93 = arith.constant dense<0.000000e+00> : vector<1xf32>
    %249 = vector.multi_reduction <add>, %248, %cst_93 [1, 2] : vector<1x8x128xf32> to vector<1xf32>
    %250 = vector.shape_cast %249 : vector<1xf32> to vector<1x1x1xf32>
    %251 = vector.extract %250[0, 0, 0] : f32 from vector<1x1x1xf32>
    %cst_94 = arith.constant 5.000000e-01 : f32
    %252 = arith.mulf %cst_94, %251 : f32
    %cst_95 = arith.constant 90.8120651 : f32
    %253 = arith.addf %252, %cst_95 : f32
    %254 = tpu.iota {dimensions = array<i32: 1>} : vector<8x128xi32>
    %c64_i32 = arith.constant 64 : i32
    %255 = vector.broadcast %c64_i32 : i32 to vector<8x128xi32>
    %256 = arith.cmpi slt, %254, %255 : vector<8x128xi32>
    %257 = vector.broadcast %253 : f32 to vector<8x128xf32>
    %258 = vector.broadcast %245 : f32 to vector<8x128xf32>
    %259 = arith.select %256, %257, %258 : vector<8x128xi1>, vector<8x128xf32>
    %c0_96 = arith.constant 0 : index
    %c0_97 = arith.constant 0 : index
    %260 = vector.load %arg9[%c0_96, %c0_97] : memref<8x128xf32, #tpu.memory_space<vmem>>, vector<8x128xf32>
    tpu.vector_store %arg9[%c0_96, %c0_97], %259 {strides = array<i32>} : memref<8x128xf32, #tpu.memory_space<vmem>>, vector<8x128xf32>,
    return
  }
}

</mosaic_0001>

<llo_original>
// kernel: tpu_custom_call.1
$region0: #{tpu_custom_call.1}
  #allocation0 [shape = 'u32[]', space=smem, size = 0x4, offset = 0x4, fixed_abs, tag = 'smem constant byte address 0x4 - core index']
  #allocation1 [shape = 'u32[144,128]{1,0:T(1,128)}', space=vmem, size = 0x12000, scoped, tag = 'internal scratch']
  %s0 = inlined_call_operand.vmem [shape: f32[32,8], index: 0, kind: input, shape index: {}]
  %s1 = inlined_call_operand.vmem [shape: f32[8,128], index: 1, kind: input, shape index: {}]
  %s2 = inlined_call_operand.vmem [shape: f32[8,128], index: 2, kind: input, shape index: {}]
  %s3 = inlined_call_operand.hbm [shape: bf16[128,1152], index: 3, kind: input, shape index: {}]
  %s4 = inlined_call_operand.hbm [shape: bf16[256,768], index: 4, kind: input, shape index: {}]
  %s5 = inlined_call_operand.hbm [shape: bf16[512,768], index: 5, kind: input, shape index: {}]
  %s6 = inlined_call_operand.vmem [shape: f32[2,2816], index: 6, kind: input, shape index: {}]
  %s7 = inlined_call_operand.hbm [shape: f32[8,512], index: 7, kind: output, shape index: {0}]
  %s8 = inlined_call_operand.hbm [shape: f32[8,128], index: 8, kind: output, shape index: {1}]
  %s9 = inlined_call_operand.hbm [shape: f32[8,128], index: 9, kind: output, shape index: {2}]
  %10 = xla_tuple %s7, %s8, %s9
  %s11 = sld [smem:[#allocation0]]
  $region66: #{tpu_custom_call.1} parent=0
    _
  %s13 = ssub.s32 1, %s11
  %s14 = scalar_select 0, %s13, %s11
  $region1: #{tpu_custom_call.1} parent=0
    #allocation2 [shape = 'u8[294912]{0}', space=vmem, size = 0x48000, scoped, tag = 'input window, operand 3, single buffered']
    #allocation3 [shape = 's32[1]{0}', space=sflag, size = 0x4, scoped, tag = 'scoped memory for tpu_custom_call.1']
    #allocation4 [shape = 's32[1]{0}', space=sflag, size = 0x4, scoped, tag = 'scoped memory for tpu_custom_call.1']
    #allocation5 [shape = 'u8[393216]{0}', space=vmem, size = 0x60000, scoped, tag = 'input window, operand 4, single buffered']
    #allocation6 [shape = 's32[1]{0}', space=sflag, size = 0x4, scoped, tag = 'scoped memory for tpu_custom_call.1']
    #allocation7 [shape = 'u8[786432]{0}', space=vmem, size = 0xc0000, scoped, tag = 'input window, operand 5, single buffered']
    #allocation8 [shape = 'u8[16384]{0}', space=vmem, size = 0x4000, scoped, tag = 'output window, operand 0, single buffered']
    #allocation9 [shape = 'u8[4096]{0}', space=vmem, size = 0x1000, scoped, tag = 'output window, operand 1, single buffered']
    #allocation10 [shape = 's32[1]{0}', space=sflag, size = 0x4, scoped, tag = 'scoped memory for tpu_custom_call.1']
    #allocation11 [shape = 'u8[4096]{0}', space=vmem, size = 0x1000, scoped, tag = 'output window, operand 2, single buffered']
    %15 = vsyncpa [#allocation3], 0
    %16 = vsyncpa [#allocation6], 0
    %17 = vsyncpa [#allocation4], 0
    %18 = vsyncpa [#allocation10], 0
    // Predicated region
    $region2: #{tpu_custom_call.1} parent=1 // pred_check
      _
    $region3: #{tpu_custom_call.1} parent=1 // pred_check_branch
      %20 = sbr.rel (0) target = $region5
    $region4: #{tpu_custom_call.1} parent=1 // pred_region
      _
    $region5: #{tpu_custom_call.1} parent=1 // pred_fallthru
      _
    // Predicated region
    $region6: #{tpu_custom_call.1} parent=1 // pred_check
      _
    $region7: #{tpu_custom_call.1} parent=1 // pred_check_branch
      %22 = sbr.rel (0) target = $region9
    $region8: #{tpu_custom_call.1} parent=1 // pred_region
      _
    $region9: #{tpu_custom_call.1} parent=1 // pred_fallthru
      _
    // Predicated region
    $region10: #{tpu_custom_call.1} parent=1 // pred_check
      _
    $region11: #{tpu_custom_call.1} parent=1 // pred_check_branch
      %24 = sbr.rel (0) target = $region13
    $region12: #{tpu_custom_call.1} parent=1 // pred_region
      _
    $region13: #{tpu_custom_call.1} parent=1 // pred_fallthru
      _
    // Predicated region
    $region14: #{tpu_custom_call.1} parent=1 // pred_check
      _
    $region15: #{tpu_custom_call.1} parent=1 // pred_check_branch
      %26 = sbr.rel (0) target = $region17
    $region16: #{tpu_custom_call.1} parent=1 // pred_region
      %s28 = ssub.s32 9216, 9216
      %29 = vsyncadd [#allocation3], %s28
      %s30 = sshll.u32 [#allocation2], 4
      %s31 = int_to_ptr.vmem [resolvable:$true] %s30
      %36 = dma.hbm_to_vmem [thread:$0]  %s3, 9216, %s31, [#allocation3], 576, 576, 36
    $region17: #{tpu_custom_call.1} parent=1 // pred_fallthru
      _
    // Predicated region
    $region18: #{tpu_custom_call.1} parent=1 // pred_check
      _
    $region19: #{tpu_custom_call.1} parent=1 // pred_check_branch
      %38 = sbr.rel (0) target = $region21
    $region20: #{tpu_custom_call.1} parent=1 // pred_region
      %s40 = ssub.s32 12288, 12288
      %41 = vsyncadd [#allocation6], %s40
      %s42 = sshll.u32 [#allocation5], 4
      %s43 = int_to_ptr.vmem [resolvable:$true] %s42
      %48 = dma.hbm_to_vmem [thread:$0]  %s4, 12288, %s43, [#allocation6], 384, 384, 24
    $region21: #{tpu_custom_call.1} parent=1 // pred_fallthru
      _
    // Predicated region
    $region22: #{tpu_custom_call.1} parent=1 // pred_check
      _
    $region23: #{tpu_custom_call.1} parent=1 // pred_check_branch
      %50 = sbr.rel (0) target = $region25
    $region24: #{tpu_custom_call.1} parent=1 // pred_region
      %s52 = ssub.s32 24576, 24576
      %53 = vsyncadd [#allocation6], %s52
      %s54 = sshll.u32 [#allocation7], 4
      %s55 = int_to_ptr.vmem [resolvable:$true] %s54
      %60 = dma.hbm_to_vmem [thread:$0]  %s5, 24576, %s55, [#allocation6], 384, 384, 24
    $region25: #{tpu_custom_call.1} parent=1 // pred_fallthru
      _
    // Predicated region
    $region26: #{tpu_custom_call.1} parent=1 // pred_check
      _
    $region27: #{tpu_custom_call.1} parent=1 // pred_check_branch
      %62 = sbr.rel (0) target = $region29
    $region28: #{tpu_custom_call.1} parent=1 // pred_region
      _
    $region29: #{tpu_custom_call.1} parent=1 // pred_fallthru
      _
    // Predicated region
    $region30: #{tpu_custom_call.1} parent=1 // pred_check
      _
    $region31: #{tpu_custom_call.1} parent=1 // pred_check_branch
      %64 = sbr.rel (0) target = $region33
    $region32: #{tpu_custom_call.1} parent=1 // pred_region
      %65 = dma.done [#allocation3], 9216
    $region33: #{tpu_custom_call.1} parent=1 // pred_fallthru
      _
    // Predicated region
    $region34: #{tpu_custom_call.1} parent=1 // pred_check
      _
    $region35: #{tpu_custom_call.1} parent=1 // pred_check_branch
      %67 = sbr.rel (0) target = $region37
    $region36: #{tpu_custom_call.1} parent=1 // pred_region
      %68 = dma.done [#allocation6], 12288
    $region37: #{tpu_custom_call.1} parent=1 // pred_fallthru
      _
    // Predicated region
    $region38: #{tpu_custom_call.1} parent=1 // pred_check
      _
    $region39: #{tpu_custom_call.1} parent=1 // pred_check_branch
      %70 = sbr.rel (0) target = $region41
    $region40: #{tpu_custom_call.1} parent=1 // pred_region
      %71 = dma.done [#allocation6], 24576
    $region41: #{tpu_custom_call.1} parent=1 // pred_fallthru
      _
    %v73 = vld [vmem:[%s0] sm:$0xff]
    %v74 = vld [vmem:[%s0 + $0x8] sm:$0xff]
    %v75 = vld [vmem:[%s0 + $0x10] sm:$0xff]
    %v76 = vld [vmem:[%s0 + $0x18] sm:$0xff]
    %v77 = vld [vmem:[%s2] sm:$0xff]
    %vm78 = vcmask 64512
    %v80 = vsel %vm78, %v73, 0
    %v83 = vsel %vm78, %v74, 0
    %v86 = vsel %vm78, %v75, 0
    %v89 = vsel %vm78, %v76, 0
    %91 = vmatprep.subr.mxu0 0.0
    %92 = vmatpush1.msra.mxu0 %v77
    %93 = vmatprep.subr.mxu0 0.0
    %94 = vmatpush1.msra.mxu0 0.0
    %95 = vmatprep.subr.mxu0 0.0
    %96 = vmatpush1.msra.mxu0 0.0
    %97 = vmatprep.subr.mxu0 0.0
    %98 = vmatpush1.msra.mxu0 0.0
    %99 = vmatprep.subr.mxu0 0.0
    %100 = vmatpush1.msra.mxu0 0.0
    %101 = vmatprep.subr.mxu0 0.0
    %102 = vmatpush1.msra.mxu0 0.0
    %103 = vmatprep.subr.mxu0 0.0
    %104 = vmatpush1.msra.mxu0 0.0
    %105 = vmatprep.subr.mxu0 0.0
    %106 = vmatpush1.msra.mxu0 0.0
    %107 = vmatprep.subr.mxu0 0.0
    %108 = vmatpush1.msra.mxu0 0.0
    %109 = vmatprep.subr.mxu0 0.0
    %110 = vmatpush1.msra.mxu0 0.0
    %111 = vmatprep.subr.mxu0 0.0
    %112 = vmatpush1.msra.mxu0 0.0
    %113 = vmatprep.subr.mxu0 0.0
    %114 = vmatpush1.msra.mxu0 0.0
    %115 = vmatprep.subr.mxu0 0.0
    %116 = vmatpush1.msra.mxu0 0.0
    %117 = vmatprep.subr.mxu0 0.0
    %118 = vmatpush1.msra.mxu0 0.0
    %119 = vmatprep.subr.mxu0 0.0
    %120 = vmatpush1.msra.mxu0 0.0
    %121 = vmatprep.subr.mxu0 0.0
    %122 = vmatpush1.msra.mxu0 0.0
    %123 = vmatprep.subr.mxu0 0.0
    %124 = vmatpush1.msra.mxu0 0.0
    %125 = vmatprep.subr.mxu0 0.0
    %126 = vmatpush1.msra.mxu0 0.0
    %127 = vmatprep.subr.mxu0 0.0
    %128 = vmatpush1.msra.mxu0 0.0
    %129 = vmatprep.subr.mxu0 0.0
    %130 = vmatpush1.msra.mxu0 0.0
    %131 = vmatprep.subr.mxu0 0.0
    %132 = vmatpush1.msra.mxu0 0.0
    %133 = vmatprep.subr.mxu0 0.0
    %134 = vmatpush1.msra.mxu0 0.0
    %135 = vmatprep.subr.mxu0 0.0
    %136 = vmatpush1.msra.mxu0 0.0
    %137 = vmatprep.subr.mxu0 0.0
    %138 = vmatpush1.msra.mxu0 0.0
    %139 = vmatprep.subr.mxu0 0.0
    %140 = vmatpush1.msra.mxu0 0.0
    %141 = vmatprep.subr.mxu0 0.0
    %142 = vmatpush1.msra.mxu0 0.0
    %143 = vmatprep.subr.mxu0 0.0
    %144 = vmatpush1.msra.mxu0 0.0
    %145 = vmatprep.subr.mxu0 0.0
    %146 = vmatpush1.msra.mxu0 0.0
    %147 = vmatprep.subr.mxu0 0.0
    %148 = vmatpush1.msra.mxu0 0.0
    %149 = vmatprep.subr.mxu0 0.0
    %150 = vmatpush1.msra.mxu0 0.0
    %151 = vmatprep.subr.mxu0 0.0
    %152 = vmatpush1.msra.mxu0 0.0
    %153 = vmatprep.subr.mxu0 0.0
    %154 = vmatpush1.msra.mxu0 0.0
    %155 = vmatprep.mubr.f32.mxu0 0.0
    %156 = vmatmul.mubr.f32.gmra.mrb[0].mxu0 %v80
    %v157 = vpop.f32.mrb[0].mxu0
    %v158 = vadd.f32 0.0, %v157
    %v159 = vpop.f32.mrb[0].mxu0
    %160 = vmatprep.mubr.f32.mxu0 0.0
    %161 = vmatmul.mubr.f32.gmra.mrb[0].mxu0 %v83
    %v162 = vpop.f32.mrb[0].mxu0
    %v163 = vadd.f32 0.0, %v162
    %v164 = vpop.f32.mrb[0].mxu0
    %165 = vmatprep.mubr.f32.mxu0 0.0
    %166 = vmatmul.mubr.f32.gmra.mrb[0].mxu0 %v86
    %v167 = vpop.f32.mrb[0].mxu0
    %v168 = vadd.f32 0.0, %v167
    %v169 = vpop.f32.mrb[0].mxu0
    %170 = vmatprep.mubr.f32.mxu0 0.0
    %171 = vmatmul.mubr.f32.gmra.mrb[0].mxu0 %v89
    %v172 = vpop.f32.mrb[0].mxu0
    %v173 = vadd.f32 0.0, %v172
    %v174 = vpop.f32.mrb[0].mxu0
    %175 = vdwg.mxu0
    %v176 = vld [vmem:[%s6] sm:$0x3]
    %v177 = vadd.f32 %v158, %v163
    %v178 = vadd.f32 %v177, %v168
    %v179 = vadd.f32 %v178, %v173
    %v180 = vrot.slane %v179, 4
    %v181 = vadd.f32 %v179, %v180
    %v182 = vrot.slane %v181, 2
    %v183 = vadd.f32 %v181, %v182
    %v184 = vrot.slane %v183, 1
    %v185 = vadd.f32 %v183, %v184
    %v186 = vrcp.pop 32.0
    %v187 = vmul.f32 %v185, %v186
    %v188 = vmul.f32 %v158, %v158
    %v189 = vmul.f32 %v163, %v163
    %v190 = vmul.f32 %v168, %v168
    %v191 = vmul.f32 %v173, %v173
    %v192 = vadd.f32 %v188, %v189
    %v193 = vadd.f32 %v192, %v190
    %v194 = vadd.f32 %v193, %v191
    %v195 = vrot.slane %v194, 4
    %v196 = vadd.f32 %v194, %v195
    %v197 = vrot.slane %v196, 2
    %v198 = vadd.f32 %v196, %v197
    %v199 = vrot.slane %v198, 1
    %v200 = vadd.f32 %v198, %v199
    %v201 = vmul.f32 %v200, %v186
    %v202 = vmul.f32 %v187, %v187
    %v203 = vsub.f32 %v201, %v202
    %v204 = vmax.f32 %v203, 0.0
    %v205 = vsub.f32 %v158, %v187
    %v206 = vsub.f32 %v163, %v187
    %v207 = vsub.f32 %v168, %v187
    %v208 = vsub.f32 %v173, %v187
    %v209 = vadd.f32 %v204, 1e-05
    %v210 = vrsqrt.pop %v209
    %v211 = vmul.f32 %v205, %v210
    %v212 = vmul.f32 %v206, %v210
    %v213 = vmul.f32 %v207, %v210
    %v214 = vmul.f32 %v208, %v210
    %v215 = vlaneseq
    %v216 = vshrl.u32 %v215, 7
    %v217 = vsub.s32 0, %v216
    %v218 = vrot.slane %v176, %v217
    %v219 = vmul.f32 %v211, %v218
    %v220 = vmul.f32 %v212, %v218
    %v221 = vmul.f32 %v213, %v218
    %v222 = vmul.f32 %v214, %v218
    %v223 = vlaneseq
    %v224 = vshrl.u32 %v223, 7
    %v225 = vsub.s32 1, %v224
    %v226 = vrot.slane %v176, %v225
    %v227 = vadd.f32 %v219, %v226
    %v228 = vadd.f32 %v220, %v226
    %v229 = vadd.f32 %v221, %v226
    %v230 = vadd.f32 %v222, %v226
    %v231 = vmax.f32 %v227, 0.0
    %v232 = vmax.f32 %v228, 0.0
    %v233 = vmax.f32 %v229, 0.0
    %v234 = vmax.f32 %v230, 0.0
    %v235 = vpack.c.bf16 %v232, %v231
    %v236 = vpack.c.bf16 %v234, %v233
    %v237 = vld [vmem:[#allocation2] sm:$0xf]
    %v238 = vld [vmem:[#allocation2 + $0x24] sm:$0xf]
    %v239 = vld [vmem:[#allocation2 + $0x48] sm:$0xf]
    %v240 = vld [vmem:[#allocation2 + $0x6c] sm:$0xf]
    %v241 = vld [vmem:[#allocation2 + $0x90] sm:$0xf]
    %v242 = vld [vmem:[#allocation2 + $0xb4] sm:$0xf]
    %v243 = vld [vmem:[#allocation2 + $0xd8] sm:$0xf]
    %v244 = vld [vmem:[#allocation2 + $0xfc] sm:$0xf]
    %v245 = vld [vmem:[#allocation2 + $0x120] sm:$0xf]
    %v246 = vld [vmem:[#allocation2 + $0x144] sm:$0xf]
    %v247 = vld [vmem:[#allocation2 + $0x168] sm:$0xf]
    %v248 = vld [vmem:[#allocation2 + $0x18c] sm:$0xf]
    %v249 = vld [vmem:[#allocation2 + $0x1b0] sm:$0xf]
    %v250 = vld [vmem:[#allocation2 + $0x1d4] sm:$0xf]
    %v251 = vld [vmem:[#allocation2 + $0x1f8] sm:$0xf]
    %v252 = vld [vmem:[#allocation2 + $0x21c] sm:$0xf]
    %v269 = vunpack.c.l.b16 %v237
    %v270 = vunpack.c.l.b16 %v238
    %v271 = vunpack.c.l.b16 %v239
    %v272 = vunpack.c.l.b16 %v240
    %v273 = vunpack.c.l.b16 %v241
    %v274 = vunpack.c.l.b16 %v242
    %v275 = vunpack.c.l.b16 %v243
    %v276 = vunpack.c.l.b16 %v244
    %v277 = vunpack.c.l.b16 %v245
    %v278 = vunpack.c.l.b16 %v246
    %v279 = vunpack.c.l.b16 %v247
    %v280 = vunpack.c.l.b16 %v248
    %v281 = vunpack.c.l.b16 %v249
    %v282 = vunpack.c.l.b16 %v250
    %v283 = vunpack.c.l.b16 %v251
    %v284 = vunpack.c.l.b16 %v252
    %v285 = vpack.c.b16 %v270, %v269
    %v286 = vpack.c.b16 %v272, %v271
    %v287 = vpack.c.b16 %v274, %v273
    %v288 = vpack.c.b16 %v276, %v275
    %v289 = vpack.c.b16 %v278, %v277
    %v290 = vpack.c.b16 %v280, %v279
    %v291 = vpack.c.b16 %v282, %v281
    %v292 = vpack.c.b16 %v284, %v283
    %301 = vmatprep.subr.bf16.mxu0 0
    %302 = vmatpush1.bf16.msra.mxu0 %v285
    %303 = vmatprep.subr.bf16.mxu0 0
    %304 = vmatpush1.bf16.msra.mxu0 %v286
    %305 = vmatprep.subr.bf16.mxu0 0
    %306 = vmatpush1.bf16.msra.mxu0 %v287
    %307 = vmatprep.subr.bf16.mxu0 0
    %308 = vmatpush1.bf16.msra.mxu0 %v288
    %309 = vmatprep.subr.bf16.mxu0 0
    %310 = vmatpush1.bf16.msra.mxu0 %v289
    %311 = vmatprep.subr.bf16.mxu0 0
    %312 = vmatpush1.bf16.msra.mxu0 %v290
    %313 = vmatprep.subr.bf16.mxu0 0
    %314 = vmatpush1.bf16.msra.mxu0 %v291
    %315 = vmatprep.subr.bf16.mxu0 0
    %316 = vmatpush1.bf16.msra.mxu0 %v292
    %317 = vmatprep.subr.bf16.mxu0 0
    %318 = vmatpush1.bf16.msra.mxu0 0
    %319 = vmatprep.subr.bf16.mxu0 0
    %320 = vmatpush1.bf16.msra.mxu0 0
    %321 = vmatprep.subr.bf16.mxu0 0
    %322 = vmatpush1.bf16.msra.mxu0 0
    %323 = vmatprep.subr.bf16.mxu0 0
    %324 = vmatpush1.bf16.msra.mxu0 0
    %325 = vmatprep.subr.bf16.mxu0 0
    %326 = vmatpush1.bf16.msra.mxu0 0
    %327 = vmatprep.subr.bf16.mxu0 0
    %328 = vmatpush1.bf16.msra.mxu0 0
    %329 = vmatprep.subr.bf16.mxu0 0
    %330 = vmatpush1.bf16.msra.mxu0 0
    %331 = vmatprep.subr.bf16.mxu0 0
    %332 = vmatpush1.bf16.msra.mxu0 0
    %333 = vmatprep.mubr.bf16.mxu0 0
    %334 = vmatmul.mubr.bf16.gmra.mrb[0].mxu0 %v235
    %v335 = vpop.f32.mrb[0].mxu0
    %v336 = vadd.f32 0.0, %v335
    %v337 = vpop.f32.mrb[0].mxu0
    %v338 = vpop.f32.mrb[0].mxu0
    %v339 = vadd.f32 0.0, %v338
    %v340 = vpop.f32.mrb[0].mxu0
    %341 = vmatprep.mubr.bf16.mxu0 0
    %342 = vmatmul.mubr.bf16.gmra.mrb[0].mxu0 %v236
    %v343 = vpop.f32.mrb[0].mxu0
    %v344 = vadd.f32 0.0, %v343
    %v345 = vpop.f32.mrb[0].mxu0
    %v346 = vpop.f32.mrb[0].mxu0
    %v347 = vadd.f32 0.0, %v346
    %v348 = vpop.f32.mrb[0].mxu0
    %349 = vdwg.mxu0
    %v350 = vld [vmem:[%s6 + $0x2] sm:$0x3]
    %v351 = vadd.f32 %v336, %v339
    %v352 = vadd.f32 %v351, %v344
    %v353 = vadd.f32 %v352, %v347
    %v354 = vrot.slane %v353, 4
    %v355 = vadd.f32 %v353, %v354
    %v356 = vrot.slane %v355, 2
    %v357 = vadd.f32 %v355, %v356
    %v358 = vrot.slane %v357, 1
    %v359 = vadd.f32 %v357, %v358
    %v360 = vmul.f32 %v359, %v186
    %v361 = vmul.f32 %v336, %v336
    %v362 = vmul.f32 %v339, %v339
    %v363 = vmul.f32 %v344, %v344
    %v364 = vmul.f32 %v347, %v347
    %v365 = vadd.f32 %v361, %v362
    %v366 = vadd.f32 %v365, %v363
    %v367 = vadd.f32 %v366, %v364
    %v368 = vrot.slane %v367, 4
    %v369 = vadd.f32 %v367, %v368
    %v370 = vrot.slane %v369, 2
    %v371 = vadd.f32 %v369, %v370
    %v372 = vrot.slane %v371, 1
    %v373 = vadd.f32 %v371, %v372
    %v374 = vmul.f32 %v373, %v186
    %v375 = vmul.f32 %v360, %v360
    %v376 = vsub.f32 %v374, %v375
    %v377 = vmax.f32 %v376, 0.0
    %v378 = vsub.f32 %v336, %v360
    %v379 = vsub.f32 %v339, %v360
    %v380 = vsub.f32 %v344, %v360
    %v381 = vsub.f32 %v347, %v360
    %v382 = vadd.f32 %v377, 1e-05
    %v383 = vrsqrt.pop %v382
    %v384 = vmul.f32 %v378, %v383
    %v385 = vmul.f32 %v379, %v383
    %v386 = vmul.f32 %v380, %v383
    %v387 = vmul.f32 %v381, %v383
    %v388 = vlaneseq
    %v389 = vshrl.u32 %v388, 7
    %v390 = vsub.s32 0, %v389
    %v391 = vrot.slane %v350, %v390
    %v392 = vmul.f32 %v384, %v391
    %v393 = vmul.f32 %v385, %v391
    %v394 = vmul.f32 %v386, %v391
    %v395 = vmul.f32 %v387, %v391
    %v396 = vlaneseq
    %v397 = vshrl.u32 %v396, 7
    %v398 = vsub.s32 1, %v397
    %v399 = vrot.slane %v350, %v398
    %v400 = vadd.f32 %v392, %v399
    %v401 = vadd.f32 %v393, %v399
    %v402 = vadd.f32 %v394, %v399
    %v403 = vadd.f32 %v395, %v399
    %v404 = vmax.f32 %v400, 0.0
    %v405 = vmax.f32 %v401, 0.0
    %v406 = vmax.f32 %v402, 0.0
    %v407 = vmax.f32 %v403, 0.0
    %v408 = vpack.c.bf16 %v405, %v404
    %v409 = vpack.c.bf16 %v407, %v406
    %v410 = vld [vmem:[#allocation2 + $0x4] sm:$0xff]
    %v411 = vld [vmem:[#allocation2 + $0x28] sm:$0xff]
    %v412 = vld [vmem:[#allocation2 + $0x4c] sm:$0xff]
    %v413 = vld [vmem:[#allocation2 + $0x70] sm:$0xff]
    %v414 = vld [vmem:[#allocation2 + $0x94] sm:$0xff]
    %v415 = vld [vmem:[#allocation2 + $0xb8] sm:$0xff]
    %v416 = vld [vmem:[#allocation2 + $0xdc] sm:$0xff]
    %v417 = vld [vmem:[#allocation2 + $0x100] sm:$0xff]
    %v418 = vld [vmem:[#allocation2 + $0x124] sm:$0xff]
    %v419 = vld [vmem:[#allocation2 + $0x148] sm:$0xff]
    %v420 = vld [vmem:[#allocation2 + $0x16c] sm:$0xff]
    %v421 = vld [vmem:[#allocation2 + $0x190] sm:$0xff]
    %v422 = vld [vmem:[#allocation2 + $0x1b4] sm:$0xff]
    %v423 = vld [vmem:[#allocation2 + $0x1d8] sm:$0xff]
    %v424 = vld [vmem:[#allocation2 + $0x1fc] sm:$0xff]
    %v425 = vld [vmem:[#allocation2 + $0x220] sm:$0xff]
    %v442 = vunpack.c.l.b16 %v410
    %v443 = vunpack.c.h.b16 %v410
    %v444 = vunpack.c.l.b16 %v411
    %v445 = vunpack.c.h.b16 %v411
    %v446 = vunpack.c.l.b16 %v412
    %v447 = vunpack.c.h.b16 %v412
    %v448 = vunpack.c.l.b16 %v413
    %v449 = vunpack.c.h.b16 %v413
    %v450 = vunpack.c.l.b16 %v414
    %v451 = vunpack.c.h.b16 %v414
    %v452 = vunpack.c.l.b16 %v415
    %v453 = vunpack.c.h.b16 %v415
    %v454 = vunpack.c.l.b16 %v416
    %v455 = vunpack.c.h.b16 %v416
    %v456 = vunpack.c.l.b16 %v417
    %v457 = vunpack.c.h.b16 %v417
    %v458 = vunpack.c.l.b16 %v418
    %v459 = vunpack.c.h.b16 %v418
    %v460 = vunpack.c.l.b16 %v419
    %v461 = vunpack.c.h.b16 %v419
    %v462 = vunpack.c.l.b16 %v420
    %v463 = vunpack.c.h.b16 %v420
    %v464 = vunpack.c.l.b16 %v421
    %v465 = vunpack.c.h.b16 %v421
    %v466 = vunpack.c.l.b16 %v422
    %v467 = vunpack.c.h.b16 %v422
    %v468 = vunpack.c.l.b16 %v423
    %v469 = vunpack.c.h.b16 %v423
    %v470 = vunpack.c.l.b16 %v424
    %v471 = vunpack.c.h.b16 %v424
    %v472 = vunpack.c.l.b16 %v425
    %v473 = vunpack.c.h.b16 %v425
    %v474 = vpack.c.b16 %v444, %v442
    %v475 = vpack.c.b16 %v445, %v443
    %v476 = vpack.c.b16 %v448, %v446
    %v477 = vpack.c.b16 %v449, %v447
    %v478 = vpack.c.b16 %v452, %v450
    %v479 = vpack.c.b16 %v453, %v451
    %v480 = vpack.c.b16 %v456, %v454
    %v481 = vpack.c.b16 %v457, %v455
    %v482 = vpack.c.b16 %v460, %v458
    %v483 = vpack.c.b16 %v461, %v459
    %v484 = vpack.c.b16 %v464, %v462
    %v485 = vpack.c.b16 %v465, %v463
    %v486 = vpack.c.b16 %v468, %v466
    %v487 = vpack.c.b16 %v469, %v467
    %v488 = vpack.c.b16 %v472, %v470
    %v489 = vpack.c.b16 %v473, %v471
    %506 = vmatprep.subr.bf16.mxu0 %v475
    %507 = vmatpush1.bf16.msra.mxu0 %v474
    %508 = vmatprep.subr.bf16.mxu0 %v477
    %509 = vmatpush1.bf16.msra.mxu0 %v476
    %510 = vmatprep.subr.bf16.mxu0 %v479
    %511 = vmatpush1.bf16.msra.mxu0 %v478
    %512 = vmatprep.subr.bf16.mxu0 %v481
    %513 = vmatpush1.bf16.msra.mxu0 %v480
    %514 = vmatprep.subr.bf16.mxu0 %v483
    %515 = vmatpush1.bf16.msra.mxu0 %v482
    %516 = vmatprep.subr.bf16.mxu0 %v485
    %517 = vmatpush1.bf16.msra.mxu0 %v484
    %518 = vmatprep.subr.bf16.mxu0 %v487
    %519 = vmatpush1.bf16.msra.mxu0 %v486
    %520 = vmatprep.subr.bf16.mxu0 %v489
    %521 = vmatpush1.bf16.msra.mxu0 %v488
    %522 = vmatprep.subr.bf16.mxu0 0
    %523 = vmatpush1.bf16.msra.mxu0 0
    %524 = vmatprep.subr.bf16.mxu0 0
    %525 = vmatpush1.bf16.msra.mxu0 0
    %526 = vmatprep.subr.bf16.mxu0 0
    %527 = vmatpush1.bf16.msra.mxu0 0
    %528 = vmatprep.subr.bf16.mxu0 0
    %529 = vmatpush1.bf16.msra.mxu0 0
    %530 = vmatprep.subr.bf16.mxu0 0
    %531 = vmatpush1.bf16.msra.mxu0 0
    %532 = vmatprep.subr.bf16.mxu0 0
    %533 = vmatpush1.bf16.msra.mxu0 0
    %534 = vmatprep.subr.bf16.mxu0 0
    %535 = vmatpush1.bf16.msra.mxu0 0
    %536 = vmatprep.subr.bf16.mxu0 0
    %537 = vmatpush1.bf16.msra.mxu0 0
    %538 = vmatprep.mubr.bf16.mxu0 0
    %539 = vmatmul.mubr.bf16.gmra.mrb[0].mxu0 %v408
    %v540 = vpop.f32.mrb[0].mxu0
    %v541 = vadd.f32 0.0, %v540
    %v542 = vpop.f32.mrb[0].mxu0
    %v543 = vadd.f32 0.0, %v542
    %v544 = vpop.f32.mrb[0].mxu0
    %v545 = vadd.f32 0.0, %v544
    %v546 = vpop.f32.mrb[0].mxu0
    %v547 = vadd.f32 0.0, %v546
    %548 = vmatprep.mubr.bf16.mxu0 0
    %549 = vmatmul.mubr.bf16.gmra.mrb[0].mxu0 %v409
    %v550 = vpop.f32.mrb[0].mxu0
    %v551 = vadd.f32 0.0, %v550
    %v552 = vpop.f32.mrb[0].mxu0
    %v553 = vadd.f32 0.0, %v552
    %v554 = vpop.f32.mrb[0].mxu0
    %v555 = vadd.f32 0.0, %v554
    %v556 = vpop.f32.mrb[0].mxu0
    %v557 = vadd.f32 0.0, %v556
    %558 = vdwg.mxu0
    %v559 = vld [vmem:[%s6 + $0x4] sm:$0xf]
    %v560 = vadd.f32 %v541, %v545
    %v561 = vadd.f32 %v560, %v551
    %v562 = vadd.f32 %v561, %v555
    %v563 = vrot.slane %v562, 4
    %v564 = vadd.f32 %v562, %v563
    %v565 = vrot.slane %v564, 2
    %v566 = vadd.f32 %v564, %v565
    %v567 = vrot.slane %v566, 1
    %v568 = vadd.f32 %v566, %v567
    %v569 = vadd.f32 %v543, %v547
    %v570 = vadd.f32 %v569, %v553
    %v571 = vadd.f32 %v570, %v557
    %v572 = vrot.slane %v571, 4
    %v573 = vadd.f32 %v571, %v572
    %v574 = vrot.slane %v573, 2
    %v575 = vadd.f32 %v573, %v574
    %v576 = vrot.slane %v575, 1
    %v577 = vadd.f32 %v575, %v576
    %v578 = vmul.f32 %v568, %v186
    %v579 = vmul.f32 %v577, %v186
    %v580 = vmul.f32 %v541, %v541
    %v581 = vmul.f32 %v543, %v543
    %v582 = vmul.f32 %v545, %v545
    %v583 = vmul.f32 %v547, %v547
    %v584 = vmul.f32 %v551, %v551
    %v585 = vmul.f32 %v553, %v553
    %v586 = vmul.f32 %v555, %v555
    %v587 = vmul.f32 %v557, %v557
    %v588 = vadd.f32 %v580, %v582
    %v589 = vadd.f32 %v588, %v584
    %v590 = vadd.f32 %v589, %v586
    %v591 = vrot.slane %v590, 4
    %v592 = vadd.f32 %v590, %v591
    %v593 = vrot.slane %v592, 2
    %v594 = vadd.f32 %v592, %v593
    %v595 = vrot.slane %v594, 1
    %v596 = vadd.f32 %v594, %v595
    %v597 = vadd.f32 %v581, %v583
    %v598 = vadd.f32 %v597, %v585
    %v599 = vadd.f32 %v598, %v587
    %v600 = vrot.slane %v599, 4
    %v601 = vadd.f32 %v599, %v600
    %v602 = vrot.slane %v601, 2
    %v603 = vadd.f32 %v601, %v602
    %v604 = vrot.slane %v603, 1
    %v605 = vadd.f32 %v603, %v604
    %v606 = vmul.f32 %v596, %v186
    %v607 = vmul.f32 %v605, %v186
    %v608 = vmul.f32 %v578, %v578
    %v609 = vmul.f32 %v579, %v579
    %v610 = vsub.f32 %v606, %v608
    %v611 = vsub.f32 %v607, %v609
    %v612 = vmax.f32 %v610, 0.0
    %v613 = vmax.f32 %v611, 0.0
    %v614 = vsub.f32 %v541, %v578
    %v615 = vsub.f32 %v543, %v579
    %v616 = vsub.f32 %v545, %v578
    %v617 = vsub.f32 %v547, %v579
    %v618 = vsub.f32 %v551, %v578
    %v619 = vsub.f32 %v553, %v579
    %v620 = vsub.f32 %v555, %v578
    %v621 = vsub.f32 %v557, %v579
    %v622 = vadd.f32 %v612, 1e-05
    %v623 = vadd.f32 %v613, 1e-05
    %v624 = vrsqrt.pop %v622
    %v625 = vrsqrt.pop %v623
    %v626 = vmul.f32 %v614, %v624
    %v627 = vmul.f32 %v615, %v625
    %v628 = vmul.f32 %v616, %v624
    %v629 = vmul.f32 %v617, %v625
    %v630 = vmul.f32 %v618, %v624
    %v631 = vmul.f32 %v619, %v625
    %v632 = vmul.f32 %v620, %v624
    %v633 = vmul.f32 %v621, %v625
    %v635 = vlaneseq
    %v636 = vshrl.u32 %v635, 7
    %v637 = vsub.s32 0, %v636
    %v638 = vrot.slane %v559, %v637
    %v639 = vlaneseq
    %v640 = vshrl.u32 %v639, 7
    %v641 = vsub.s32 2, %v640
    %v642 = vrot.slane %v559, %v641
    %v645 = vlaneseq
    %v646 = vshrl.u32 %v645, 7
    %v647 = vsub.s32 0, %v646
    %v648 = vrot.slane %v638, %v647
    %v649 = vlaneseq
    %v650 = vshrl.u32 %v649, 7
    %v651 = vsub.s32 0, %v650
    %v652 = vrot.slane %v642, %v651
    %v653 = vmul.f32 %v626, %v648
    %v654 = vmul.f32 %v627, %v652
    %v655 = vmul.f32 %v628, %v648
    %v656 = vmul.f32 %v629, %v652
    %v657 = vmul.f32 %v630, %v648
    %v658 = vmul.f32 %v631, %v652
    %v659 = vmul.f32 %v632, %v648
    %v660 = vmul.f32 %v633, %v652
    %v661 = vlaneseq
    %v662 = vshrl.u32 %v661, 7
    %v663 = vsub.s32 1, %v662
    %v664 = vrot.slane %v559, %v663
    %v665 = vlaneseq
    %v666 = vshrl.u32 %v665, 7
    %v667 = vsub.s32 3, %v666
    %v668 = vrot.slane %v559, %v667
    %v671 = vlaneseq
    %v672 = vshrl.u32 %v671, 7
    %v673 = vsub.s32 1, %v672
    %v674 = vrot.slane %v664, %v673
    %v675 = vlaneseq
    %v676 = vshrl.u32 %v675, 7
    %v677 = vsub.s32 1, %v676
    %v678 = vrot.slane %v668, %v677
    %v679 = vadd.f32 %v653, %v674
    %v680 = vadd.f32 %v654, %v678
    %v681 = vadd.f32 %v655, %v674
    %v682 = vadd.f32 %v656, %v678
    %v683 = vadd.f32 %v657, %v674
    %v684 = vadd.f32 %v658, %v678
    %v685 = vadd.f32 %v659, %v674
    %v686 = vadd.f32 %v660, %v678
    %v687 = vmax.f32 %v679, 0.0
    %v688 = vmax.f32 %v680, 0.0
    %v689 = vmax.f32 %v681, 0.0
    %v690 = vmax.f32 %v682, 0.0
    %v691 = vmax.f32 %v683, 0.0
    %v692 = vmax.f32 %v684, 0.0
    %v693 = vmax.f32 %v685, 0.0
    %v694 = vmax.f32 %v686, 0.0
    %v695 = vpack.c.bf16 %v689, %v687
    %v696 = vpack.c.bf16 %v690, %v688
    %v697 = vpack.c.bf16 %v693, %v691
    %v698 = vpack.c.bf16 %v694, %v692
    %v699 = vld [vmem:[#allocation5] sm:$0xff]
    %v700 = vld [vmem:[#allocation5 + $0x8] sm:$0xff]
    %v701 = vld [vmem:[#allocation5 + $0x18] sm:$0xff]
    %v702 = vld [vmem:[#allocation5 + $0x20] sm:$0xff]
    %v703 = vld [vmem:[#allocation5 + $0x30] sm:$0xff]
    %v704 = vld [vmem:[#allocation5 + $0x38] sm:$0xff]
    %v705 = vld [vmem:[#allocation5 + $0x48] sm:$0xff]
    %v706 = vld [vmem:[#allocation5 + $0x50] sm:$0xff]
    %v707 = vld [vmem:[#allocation5 + $0x60] sm:$0xff]
    %v708 = vld [vmem:[#allocation5 + $0x68] sm:$0xff]
    %v709 = vld [vmem:[#allocation5 + $0x78] sm:$0xff]
    %v710 = vld [vmem:[#allocation5 + $0x80] sm:$0xff]
    %v711 = vld [vmem:[#allocation5 + $0x90] sm:$0xff]
    %v712 = vld [vmem:[#allocation5 + $0x98] sm:$0xff]
    %v713 = vld [vmem:[#allocation5 + $0xa8] sm:$0xff]
    %v714 = vld [vmem:[#allocation5 + $0xb0] sm:$0xff]
    %v715 = vld [vmem:[#allocation5 + $0xc0] sm:$0xff]
    %v716 = vld [vmem:[#allocation5 + $0xc8] sm:$0xff]
    %v717 = vld [vmem:[#allocation5 + $0xd8] sm:$0xff]
    %v718 = vld [vmem:[#allocation5 + $0xe0] sm:$0xff]
    %v719 = vld [vmem:[#allocation5 + $0xf0] sm:$0xff]
    %v720 = vld [vmem:[#allocation5 + $0xf8] sm:$0xff]
    %v721 = vld [vmem:[#allocation5 + $0x108] sm:$0xff]
    %v722 = vld [vmem:[#allocation5 + $0x110] sm:$0xff]
    %v723 = vld [vmem:[#allocation5 + $0x120] sm:$0xff]
    %v724 = vld [vmem:[#allocation5 + $0x128] sm:$0xff]
    %v725 = vld [vmem:[#allocation5 + $0x138] sm:$0xff]
    %v726 = vld [vmem:[#allocation5 + $0x140] sm:$0xff]
    %v727 = vld [vmem:[#allocation5 + $0x150] sm:$0xff]
    %v728 = vld [vmem:[#allocation5 + $0x158] sm:$0xff]
    %v729 = vld [vmem:[#allocation5 + $0x168] sm:$0xff]
    %v730 = vld [vmem:[#allocation5 + $0x170] sm:$0xff]
    %v731 = vld [vmem:[#allocation5 + $0x180] sm:$0xff]
    %v732 = vld [vmem:[#allocation5 + $0x188] sm:$0xff]
    %v733 = vld [vmem:[#allocation5 + $0x198] sm:$0xff]
    %v734 = vld [vmem:[#allocation5 + $0x1a0] sm:$0xff]
    %v735 = vld [vmem:[#allocation5 + $0x1b0] sm:$0xff]
    %v736 = vld [vmem:[#allocation5 + $0x1b8] sm:$0xff]
    %v737 = vld [vmem:[#allocation5 + $0x1c8] sm:$0xff]
    %v738 = vld [vmem:[#allocation5 + $0x1d0] sm:$0xff]
    %v739 = vld [vmem:[#allocation5 + $0x1e0] sm:$0xff]
    %v740 = vld [vmem:[#allocation5 + $0x1e8] sm:$0xff]
    %v741 = vld [vmem:[#allocation5 + $0x1f8] sm:$0xff]
    %v742 = vld [vmem:[#allocation5 + $0x200] sm:$0xff]
    %v743 = vld [vmem:[#allocation5 + $0x210] sm:$0xff]
    %v744 = vld [vmem:[#allocation5 + $0x218] sm:$0xff]
    %v745 = vld [vmem:[#allocation5 + $0x228] sm:$0xff]
    %v746 = vld [vmem:[#allocation5 + $0x230] sm:$0xff]
    %v747 = vld [vmem:[#allocation5 + $0x240] sm:$0xff]
    %v748 = vld [vmem:[#allocation5 + $0x248] sm:$0xff]
    %v749 = vld [vmem:[#allocation5 + $0x258] sm:$0xff]
    %v750 = vld [vmem:[#allocation5 + $0x260] sm:$0xff]
    %v751 = vld [vmem:[#allocation5 + $0x270] sm:$0xff]
    %v752 = vld [vmem:[#allocation5 + $0x278] sm:$0xff]
    %v753 = vld [vmem:[#allocation5 + $0x288] sm:$0xff]
    %v754 = vld [vmem:[#allocation5 + $0x290] sm:$0xff]
    %v755 = vld [vmem:[#allocation5 + $0x2a0] sm:$0xff]
    %v756 = vld [vmem:[#allocation5 + $0x2a8] sm:$0xff]
    %v757 = vld [vmem:[#allocation5 + $0x2b8] sm:$0xff]
    %v758 = vld [vmem:[#allocation5 + $0x2c0] sm:$0xff]
    %v759 = vld [vmem:[#allocation5 + $0x2d0] sm:$0xff]
    %v760 = vld [vmem:[#allocation5 + $0x2d8] sm:$0xff]
    %v761 = vld [vmem:[#allocation5 + $0x2e8] sm:$0xff]
    %v762 = vld [vmem:[#allocation5 + $0x2f0] sm:$0xff]
    %v827 = vunpack.c.l.b16 %v699
    %v828 = vunpack.c.h.b16 %v699
    %v829 = vunpack.c.l.b16 %v700
    %v830 = vunpack.c.h.b16 %v700
    %v831 = vunpack.c.l.b16 %v701
    %v832 = vunpack.c.h.b16 %v701
    %v833 = vunpack.c.l.b16 %v702
    %v834 = vunpack.c.h.b16 %v702
    %v835 = vunpack.c.l.b16 %v703
    %v836 = vunpack.c.h.b16 %v703
    %v837 = vunpack.c.l.b16 %v704
    %v838 = vunpack.c.h.b16 %v704
    %v839 = vunpack.c.l.b16 %v705
    %v840 = vunpack.c.h.b16 %v705
    %v841 = vunpack.c.l.b16 %v706
    %v842 = vunpack.c.h.b16 %v706
    %v843 = vunpack.c.l.b16 %v707
    %v844 = vunpack.c.h.b16 %v707
    %v845 = vunpack.c.l.b16 %v708
    %v846 = vunpack.c.h.b16 %v708
    %v847 = vunpack.c.l.b16 %v709
    %v848 = vunpack.c.h.b16 %v709
    %v849 = vunpack.c.l.b16 %v710
    %v850 = vunpack.c.h.b16 %v710
    %v851 = vunpack.c.l.b16 %v711
    %v852 = vunpack.c.h.b16 %v711
    %v853 = vunpack.c.l.b16 %v712
    %v854 = vunpack.c.h.b16 %v712
    %v855 = vunpack.c.l.b16 %v713
    %v856 = vunpack.c.h.b16 %v713
    %v857 = vunpack.c.l.b16 %v714
    %v858 = vunpack.c.h.b16 %v714
    %v859 = vunpack.c.l.b16 %v715
    %v860 = vunpack.c.h.b16 %v715
    %v861 = vunpack.c.l.b16 %v716
    %v862 = vunpack.c.h.b16 %v716
    %v863 = vunpack.c.l.b16 %v717
    %v864 = vunpack.c.h.b16 %v717
    %v865 = vunpack.c.l.b16 %v718
    %v866 = vunpack.c.h.b16 %v718
    %v867 = vunpack.c.l.b16 %v719
    %v868 = vunpack.c.h.b16 %v719
    %v869 = vunpack.c.l.b16 %v720
    %v870 = vunpack.c.h.b16 %v720
    %v871 = vunpack.c.l.b16 %v721
    %v872 = vunpack.c.h.b16 %v721
    %v873 = vunpack.c.l.b16 %v722
    %v874 = vunpack.c.h.b16 %v722
    %v875 = vunpack.c.l.b16 %v723
    %v876 = vunpack.c.h.b16 %v723
    %v877 = vunpack.c.l.b16 %v724
    %v878 = vunpack.c.h.b16 %v724
    %v879 = vunpack.c.l.b16 %v725
    %v880 = vunpack.c.h.b16 %v725
    %v881 = vunpack.c.l.b16 %v726
    %v882 = vunpack.c.h.b16 %v726
    %v883 = vunpack.c.l.b16 %v727
    %v884 = vunpack.c.h.b16 %v727
    %v885 = vunpack.c.l.b16 %v728
    %v886 = vunpack.c.h.b16 %v728
    %v887 = vunpack.c.l.b16 %v729
    %v888 = vunpack.c.h.b16 %v729
    %v889 = vunpack.c.l.b16 %v730
    %v890 = vunpack.c.h.b16 %v730
    %v891 = vunpack.c.l.b16 %v731
    %v892 = vunpack.c.h.b16 %v731
    %v893 = vunpack.c.l.b16 %v732
    %v894 = vunpack.c.h.b16 %v732
    %v895 = vunpack.c.l.b16 %v733
    %v896 = vunpack.c.h.b16 %v733
    %v897 = vunpack.c.l.b16 %v734
    %v898 = vunpack.c.h.b16 %v734
    %v899 = vunpack.c.l.b16 %v735
    %v900 = vunpack.c.h.b16 %v735
    %v901 = vunpack.c.l.b16 %v736
    %v902 = vunpack.c.h.b16 %v736
    %v903 = vunpack.c.l.b16 %v737
    %v904 = vunpack.c.h.b16 %v737
    %v905 = vunpack.c.l.b16 %v738
    %v906 = vunpack.c.h.b16 %v738
    %v907 = vunpack.c.l.b16 %v739
    %v908 = vunpack.c.h.b16 %v739
    %v909 = vunpack.c.l.b16 %v740
    %v910 = vunpack.c.h.b16 %v740
    %v911 = vunpack.c.l.b16 %v741
    %v912 = vunpack.c.h.b16 %v741
    %v913 = vunpack.c.l.b16 %v742
    %v914 = vunpack.c.h.b16 %v742
    %v915 = vunpack.c.l.b16 %v743
    %v916 = vunpack.c.h.b16 %v743
    %v917 = vunpack.c.l.b16 %v744
    %v918 = vunpack.c.h.b16 %v744
    %v919 = vunpack.c.l.b16 %v745
    %v920 = vunpack.c.h.b16 %v745
    %v921 = vunpack.c.l.b16 %v746
    %v922 = vunpack.c.h.b16 %v746
    %v923 = vunpack.c.l.b16 %v747
    %v924 = vunpack.c.h.b16 %v747
    %v925 = vunpack.c.l.b16 %v748
    %v926 = vunpack.c.h.b16 %v748
    %v927 = vunpack.c.l.b16 %v749
    %v928 = vunpack.c.h.b16 %v749
    %v929 = vunpack.c.l.b16 %v750
    %v930 = vunpack.c.h.b16 %v750
    %v931 = vunpack.c.l.b16 %v751
    %v932 = vunpack.c.h.b16 %v751
    %v933 = vunpack.c.l.b16 %v752
    %v934 = vunpack.c.h.b16 %v752
    %v935 = vunpack.c.l.b16 %v753
    %v936 = vunpack.c.h.b16 %v753
    %v937 = vunpack.c.l.b16 %v754
    %v938 = vunpack.c.h.b16 %v754
    %v939 = vunpack.c.l.b16 %v755
    %v940 = vunpack.c.h.b16 %v755
    %v941 = vunpack.c.l.b16 %v756
    %v942 = vunpack.c.h.b16 %v756
    %v943 = vunpack.c.l.b16 %v757
    %v944 = vunpack.c.h.b16 %v757
    %v945 = vunpack.c.l.b16 %v758
    %v946 = vunpack.c.h.b16 %v758
    %v947 = vunpack.c.l.b16 %v759
    %v948 = vunpack.c.h.b16 %v759
    %v949 = vunpack.c.l.b16 %v760
    %v950 = vunpack.c.h.b16 %v760
    %v951 = vunpack.c.l.b16 %v761
    %v952 = vunpack.c.h.b16 %v761
    %v953 = vunpack.c.l.b16 %v762
    %v954 = vunpack.c.h.b16 %v762
    %v955 = vpack.c.b16 %v831, %v827
    %v956 = vpack.c.b16 %v832, %v828
    %v957 = vpack.c.b16 %v833, %v829
    %v958 = vpack.c.b16 %v834, %v830
    %v959 = vpack.c.b16 %v839, %v835
    %v960 = vpack.c.b16 %v840, %v836
    %v961 = vpack.c.b16 %v841, %v837
    %v962 = vpack.c.b16 %v842, %v838
    %v963 = vpack.c.b16 %v847, %v843
    %v964 = vpack.c.b16 %v848, %v844
    %v965 = vpack.c.b16 %v849, %v845
    %v966 = vpack.c.b16 %v850, %v846
    %v967 = vpack.c.b16 %v855, %v851
    %v968 = vpack.c.b16 %v856, %v852
    %v969 = vpack.c.b16 %v857, %v853
    %v970 = vpack.c.b16 %v858, %v854
    %v971 = vpack.c.b16 %v863, %v859
    %v972 = vpack.c.b16 %v864, %v860
    %v973 = vpack.c.b16 %v865, %v861
    %v974 = vpack.c.b16 %v866, %v862
    %v975 = vpack.c.b16 %v871, %v867
    %v976 = vpack.c.b16 %v872, %v868
    %v977 = vpack.c.b16 %v873, %v869
    %v978 = vpack.c.b16 %v874, %v870
    %v979 = vpack.c.b16 %v879, %v875
    %v980 = vpack.c.b16 %v880, %v876
    %v981 = vpack.c.b16 %v881, %v877
    %v982 = vpack.c.b16 %v882, %v878
    %v983 = vpack.c.b16 %v887, %v883
    %v984 = vpack.c.b16 %v888, %v884
    %v985 = vpack.c.b16 %v889, %v885
    %v986 = vpack.c.b16 %v890, %v886
    %v987 = vpack.c.b16 %v895, %v891
    %v988 = vpack.c.b16 %v896, %v892
    %v989 = vpack.c.b16 %v897, %v893
    %v990 = vpack.c.b16 %v898, %v894
    %v991 = vpack.c.b16 %v903, %v899
    %v992 = vpack.c.b16 %v904, %v900
    %v993 = vpack.c.b16 %v905, %v901
    %v994 = vpack.c.b16 %v906, %v902
    %v995 = vpack.c.b16 %v911, %v907
    %v996 = vpack.c.b16 %v912, %v908
    %v997 = vpack.c.b16 %v913, %v909
    %v998 = vpack.c.b16 %v914, %v910
    %v999 = vpack.c.b16 %v919, %v915
    %v1000 = vpack.c.b16 %v920, %v916
    %v1001 = vpack.c.b16 %v921, %v917
    %v1002 = vpack.c.b16 %v922, %v918
    %v1003 = vpack.c.b16 %v927, %v923
    %v1004 = vpack.c.b16 %v928, %v924
    %v1005 = vpack.c.b16 %v929, %v925
    %v1006 = vpack.c.b16 %v930, %v926
    %v1007 = vpack.c.b16 %v935, %v931
    %v1008 = vpack.c.b16 %v936, %v932
    %v1009 = vpack.c.b16 %v937, %v933
    %v1010 = vpack.c.b16 %v938, %v934
    %v1011 = vpack.c.b16 %v943, %v939
    %v1012 = vpack.c.b16 %v944, %v940
    %v1013 = vpack.c.b16 %v945, %v941
    %v1014 = vpack.c.b16 %v946, %v942
    %v1015 = vpack.c.b16 %v951, %v947
    %v1016 = vpack.c.b16 %v952, %v948
    %v1017 = vpack.c.b16 %v953, %v949
    %v1018 = vpack.c.b16 %v954, %v950
    %1083 = vmatprep.subr.bf16.mxu0 %v956
    %1084 = vmatpush1.bf16.msra.mxu0 %v955
    %1085 = vmatprep.subr.bf16.mxu0 %v960
    %1086 = vmatpush1.bf16.msra.mxu0 %v959
    %1087 = vmatprep.subr.bf16.mxu0 %v964
    %1088 = vmatpush1.bf16.msra.mxu0 %v963
    %1089 = vmatprep.subr.bf16.mxu0 %v968
    %1090 = vmatpush1.bf16.msra.mxu0 %v967
    %1091 = vmatprep.subr.bf16.mxu0 %v972
    %1092 = vmatpush1.bf16.msra.mxu0 %v971
    %1093 = vmatprep.subr.bf16.mxu0 %v976
    %1094 = vmatpush1.bf16.msra.mxu0 %v975
    %1095 = vmatprep.subr.bf16.mxu0 %v980
    %1096 = vmatpush1.bf16.msra.mxu0 %v979
    %1097 = vmatprep.subr.bf16.mxu0 %v984
    %1098 = vmatpush1.bf16.msra.mxu0 %v983
    %1099 = vmatprep.subr.bf16.mxu0 %v988
    %1100 = vmatpush1.bf16.msra.mxu0 %v987
    %1101 = vmatprep.subr.bf16.mxu0 %v992
    %1102 = vmatpush1.bf16.msra.mxu0 %v991
    %1103 = vmatprep.subr.bf16.mxu0 %v996
    %1104 = vmatpush1.bf16.msra.mxu0 %v995
    %1105 = vmatprep.subr.bf16.mxu0 %v1000
    %1106 = vmatpush1.bf16.msra.mxu0 %v999
    %1107 = vmatprep.subr.bf16.mxu0 %v1004
    %1108 = vmatpush1.bf16.msra.mxu0 %v1003
    %1109 = vmatprep.subr.bf16.mxu0 %v1008
    %1110 = vmatpush1.bf16.msra.mxu0 %v1007
    %1111 = vmatprep.subr.bf16.mxu0 %v1012
    %1112 = vmatpush1.bf16.msra.mxu0 %v1011
    %1113 = vmatprep.subr.bf16.mxu0 %v1016
    %1114 = vmatpush1.bf16.msra.mxu0 %v1015
    %1115 = vmatprep.mubr.bf16.mxu0 %v696
    %1116 = vmatmul.mubr.bf16.gmra.mrb[0].mxu0 %v695
    %v1117 = vpop.f32.mrb[0].mxu0
    %v1118 = vadd.f32 0.0, %v1117
    %v1119 = vpop.f32.mrb[0].mxu0
    %v1120 = vadd.f32 0.0, %v1119
    %v1121 = vpop.f32.mrb[0].mxu0
    %v1122 = vadd.f32 0.0, %v1121
    %v1123 = vpop.f32.mrb[0].mxu0
    %v1124 = vadd.f32 0.0, %v1123
    %1125 = vmatprep.mubr.bf16.mxu0 %v698
    %1126 = vmatmul.mubr.bf16.gmra.mrb[0].mxu0 %v697
    %v1127 = vpop.f32.mrb[0].mxu0
    %v1128 = vadd.f32 0.0, %v1127
    %v1129 = vpop.f32.mrb[0].mxu0
    %v1130 = vadd.f32 0.0, %v1129
    %v1131 = vpop.f32.mrb[0].mxu0
    %v1132 = vadd.f32 0.0, %v1131
    %v1133 = vpop.f32.mrb[0].mxu0
    %v1134 = vadd.f32 0.0, %v1133
    %1135 = vdwg.mxu0
    %1136 = vmatprep.subr.bf16.mxu0 %v958
    %1137 = vmatpush1.bf16.msra.mxu0 %v957
    %1138 = vmatprep.subr.bf16.mxu0 %v962
    %1139 = vmatpush1.bf16.msra.mxu0 %v961
    %1140 = vmatprep.subr.bf16.mxu0 %v966
    %1141 = vmatpush1.bf16.msra.mxu0 %v965
    %1142 = vmatprep.subr.bf16.mxu0 %v970
    %1143 = vmatpush1.bf16.msra.mxu0 %v969
    %1144 = vmatprep.subr.bf16.mxu0 %v974
    %1145 = vmatpush1.bf16.msra.mxu0 %v973
    %1146 = vmatprep.subr.bf16.mxu0 %v978
    %1147 = vmatpush1.bf16.msra.mxu0 %v977
    %1148 = vmatprep.subr.bf16.mxu0 %v982
    %1149 = vmatpush1.bf16.msra.mxu0 %v981
    %1150 = vmatprep.subr.bf16.mxu0 %v986
    %1151 = vmatpush1.bf16.msra.mxu0 %v985
    %1152 = vmatprep.subr.bf16.mxu0 %v990
    %1153 = vmatpush1.bf16.msra.mxu0 %v989
    %1154 = vmatprep.subr.bf16.mxu0 %v994
    %1155 = vmatpush1.bf16.msra.mxu0 %v993
    %1156 = vmatprep.subr.bf16.mxu0 %v998
    %1157 = vmatpush1.bf16.msra.mxu0 %v997
    %1158 = vmatprep.subr.bf16.mxu0 %v1002
    %1159 = vmatpush1.bf16.msra.mxu0 %v1001
    %1160 = vmatprep.subr.bf16.mxu0 %v1006
    %1161 = vmatpush1.bf16.msra.mxu0 %v1005
    %1162 = vmatprep.subr.bf16.mxu0 %v1010
    %1163 = vmatpush1.bf16.msra.mxu0 %v1009
    %1164 = vmatprep.subr.bf16.mxu0 %v1014
    %1165 = vmatpush1.bf16.msra.mxu0 %v1013
    %1166 = vmatprep.subr.bf16.mxu0 %v1018
    %1167 = vmatpush1.bf16.msra.mxu0 %v1017
    %1168 = vmatprep.mubr.bf16.mxu0 %v696
    %1169 = vmatmul.mubr.bf16.gmra.mrb[0].mxu0 %v695
    %v1170 = vpop.f32.mrb[0].mxu0
    %v1171 = vadd.f32 0.0, %v1170
    %v1172 = vpop.f32.mrb[0].mxu0
    %v1173 = vadd.f32 0.0, %v1172
    %v1174 = vpop.f32.mrb[0].mxu0
    %v1175 = vadd.f32 0.0, %v1174
    %v1176 = vpop.f32.mrb[0].mxu0
    %v1177 = vadd.f32 0.0, %v1176
    %1178 = vmatprep.mubr.bf16.mxu0 %v698
    %1179 = vmatmul.mubr.bf16.gmra.mrb[0].mxu0 %v697
    %v1180 = vpop.f32.mrb[0].mxu0
    %v1181 = vadd.f32 0.0, %v1180
    %v1182 = vpop.f32.mrb[0].mxu0
    %v1183 = vadd.f32 0.0, %v1182
    %v1184 = vpop.f32.mrb[0].mxu0
    %v1185 = vadd.f32 0.0, %v1184
    %v1186 = vpop.f32.mrb[0].mxu0
    %v1187 = vadd.f32 0.0, %v1186
    %1188 = vdwg.mxu0
    %v1189 = vld [vmem:[%s6 + $0x8] sm:$0xff]
    %v1190 = vadd.f32 %v1118, %v1122
    %v1191 = vadd.f32 %v1190, %v1128
    %v1192 = vadd.f32 %v1191, %v1132
    %v1193 = vrot.slane %v1192, 4
    %v1194 = vadd.f32 %v1192, %v1193
    %v1195 = vrot.slane %v1194, 2
    %v1196 = vadd.f32 %v1194, %v1195
    %v1197 = vrot.slane %v1196, 1
    %v1198 = vadd.f32 %v1196, %v1197
    %v1199 = vadd.f32 %v1120, %v1124
    %v1200 = vadd.f32 %v1199, %v1130
    %v1201 = vadd.f32 %v1200, %v1134
    %v1202 = vrot.slane %v1201, 4
    %v1203 = vadd.f32 %v1201, %v1202
    %v1204 = vrot.slane %v1203, 2
    %v1205 = vadd.f32 %v1203, %v1204
    %v1206 = vrot.slane %v1205, 1
    %v1207 = vadd.f32 %v1205, %v1206
    %v1208 = vadd.f32 %v1171, %v1175
    %v1209 = vadd.f32 %v1208, %v1181
    %v1210 = vadd.f32 %v1209, %v1185
    %v1211 = vrot.slane %v1210, 4
    %v1212 = vadd.f32 %v1210, %v1211
    %v1213 = vrot.slane %v1212, 2
    %v1214 = vadd.f32 %v1212, %v1213
    %v1215 = vrot.slane %v1214, 1
    %v1216 = vadd.f32 %v1214, %v1215
    %v1217 = vadd.f32 %v1173, %v1177
    %v1218 = vadd.f32 %v1217, %v1183
    %v1219 = vadd.f32 %v1218, %v1187
    %v1220 = vrot.slane %v1219, 4
    %v1221 = vadd.f32 %v1219, %v1220
    %v1222 = vrot.slane %v1221, 2
    %v1223 = vadd.f32 %v1221, %v1222
    %v1224 = vrot.slane %v1223, 1
    %v1225 = vadd.f32 %v1223, %v1224
    %v1226 = vmul.f32 %v1198, %v186
    %v1227 = vmul.f32 %v1207, %v186
    %v1228 = vmul.f32 %v1216, %v186
    %v1229 = vmul.f32 %v1225, %v186
    %v1230 = vmul.f32 %v1118, %v1118
    %v1231 = vmul.f32 %v1120, %v1120
    %v1232 = vmul.f32 %v1171, %v1171
    %v1233 = vmul.f32 %v1173, %v1173
    %v1234 = vmul.f32 %v1122, %v1122
    %v1235 = vmul.f32 %v1124, %v1124
    %v1236 = vmul.f32 %v1175, %v1175
    %v1237 = vmul.f32 %v1177, %v1177
    %v1238 = vmul.f32 %v1128, %v1128
    %v1239 = vmul.f32 %v1130, %v1130
    %v1240 = vmul.f32 %v1181, %v1181
    %v1241 = vmul.f32 %v1183, %v1183
    %v1242 = vmul.f32 %v1132, %v1132
    %v1243 = vmul.f32 %v1134, %v1134
    %v1244 = vmul.f32 %v1185, %v1185
    %v1245 = vmul.f32 %v1187, %v1187
    %v1246 = vadd.f32 %v1230, %v1234
    %v1247 = vadd.f32 %v1246, %v1238
    %v1248 = vadd.f32 %v1247, %v1242
    %v1249 = vrot.slane %v1248, 4
    %v1250 = vadd.f32 %v1248, %v1249
    %v1251 = vrot.slane %v1250, 2
    %v1252 = vadd.f32 %v1250, %v1251
    %v1253 = vrot.slane %v1252, 1
    %v1254 = vadd.f32 %v1252, %v1253
    %v1255 = vadd.f32 %v1231, %v1235
    %v1256 = vadd.f32 %v1255, %v1239
    %v1257 = vadd.f32 %v1256, %v1243
    %v1258 = vrot.slane %v1257, 4
    %v1259 = vadd.f32 %v1257, %v1258
    %v1260 = vrot.slane %v1259, 2
    %v1261 = vadd.f32 %v1259, %v1260
    %v1262 = vrot.slane %v1261, 1
    %v1263 = vadd.f32 %v1261, %v1262
    %v1264 = vadd.f32 %v1232, %v1236
    %v1265 = vadd.f32 %v1264, %v1240
    %v1266 = vadd.f32 %v1265, %v1244
    %v1267 = vrot.slane %v1266, 4
    %v1268 = vadd.f32 %v1266, %v1267
    %v1269 = vrot.slane %v1268, 2
    %v1270 = vadd.f32 %v1268, %v1269
    %v1271 = vrot.slane %v1270, 1
    %v1272 = vadd.f32 %v1270, %v1271
    %v1273 = vadd.f32 %v1233, %v1237
    %v1274 = vadd.f32 %v1273, %v1241
    %v1275 = vadd.f32 %v1274, %v1245
    %v1276 = vrot.slane %v1275, 4
    %v1277 = vadd.f32 %v1275, %v1276
    %v1278 = vrot.slane %v1277, 2
    %v1279 = vadd.f32 %v1277, %v1278
    %v1280 = vrot.slane %v1279, 1
    %v1281 = vadd.f32 %v1279, %v1280
    %v1282 = vmul.f32 %v1254, %v186
    %v1283 = vmul.f32 %v1263, %v186
    %v1284 = vmul.f32 %v1272, %v186
    %v1285 = vmul.f32 %v1281, %v186
    %v1286 = vmul.f32 %v1226, %v1226
    %v1287 = vmul.f32 %v1227, %v1227
    %v1288 = vmul.f32 %v1228, %v1228
    %v1289 = vmul.f32 %v1229, %v1229
    %v1290 = vsub.f32 %v1282, %v1286
    %v1291 = vsub.f32 %v1283, %v1287
    %v1292 = vsub.f32 %v1284, %v1288
    %v1293 = vsub.f32 %v1285, %v1289
    %v1294 = vmax.f32 %v1290, 0.0
    %v1295 = vmax.f32 %v1291, 0.0
    %v1296 = vmax.f32 %v1292, 0.0
    %v1297 = vmax.f32 %v1293, 0.0
    %v1298 = vsub.f32 %v1118, %v1226
    %v1299 = vsub.f32 %v1120, %v1227
    %v1300 = vsub.f32 %v1171, %v1228
    %v1301 = vsub.f32 %v1173, %v1229
    %v1302 = vsub.f32 %v1122, %v1226
    %v1303 = vsub.f32 %v1124, %v1227
    %v1304 = vsub.f32 %v1175, %v1228
    %v1305 = vsub.f32 %v1177, %v1229
    %v1306 = vsub.f32 %v1128, %v1226
    %v1307 = vsub.f32 %v1130, %v1227
    %v1308 = vsub.f32 %v1181, %v1228
    %v1309 = vsub.f32 %v1183, %v1229
    %v1310 = vsub.f32 %v1132, %v1226
    %v1311 = vsub.f32 %v1134, %v1227
    %v1312 = vsub.f32 %v1185, %v1228
    %v1313 = vsub.f32 %v1187, %v1229
    %v1314 = vadd.f32 %v1294, 1e-05
    %v1315 = vadd.f32 %v1295, 1e-05
    %v1316 = vadd.f32 %v1296, 1e-05
    %v1317 = vadd.f32 %v1297, 1e-05
    %v1318 = vrsqrt.pop %v1314
    %v1319 = vrsqrt.pop %v1315
    %v1320 = vrsqrt.pop %v1316
    %v1321 = vrsqrt.pop %v1317
    %v1322 = vmul.f32 %v1298, %v1318
    %v1323 = vmul.f32 %v1299, %v1319
    %v1324 = vmul.f32 %v1300, %v1320
    %v1325 = vmul.f32 %v1301, %v1321
    %v1326 = vmul.f32 %v1302, %v1318
    %v1327 = vmul.f32 %v1303, %v1319
    %v1328 = vmul.f32 %v1304, %v1320
    %v1329 = vmul.f32 %v1305, %v1321
    %v1330 = vmul.f32 %v1306, %v1318
    %v1331 = vmul.f32 %v1307, %v1319
    %v1332 = vmul.f32 %v1308, %v1320
    %v1333 = vmul.f32 %v1309, %v1321
    %v1334 = vmul.f32 %v1310, %v1318
    %v1335 = vmul.f32 %v1311, %v1319
    %v1336 = vmul.f32 %v1312, %v1320
    %v1337 = vmul.f32 %v1313, %v1321
    %v1339 = vlaneseq
    %v1340 = vshrl.u32 %v1339, 7
    %v1341 = vsub.s32 0, %v1340
    %v1342 = vrot.slane %v1189, %v1341
    %v1343 = vlaneseq
    %v1344 = vshrl.u32 %v1343, 7
    %v1345 = vsub.s32 2, %v1344
    %v1346 = vrot.slane %v1189, %v1345
    %v1347 = vlaneseq
    %v1348 = vshrl.u32 %v1347, 7
    %v1349 = vsub.s32 4, %v1348
    %v1350 = vrot.slane %v1189, %v1349
    %v1351 = vlaneseq
    %v1352 = vshrl.u32 %v1351, 7
    %v1353 = vsub.s32 6, %v1352
    %v1354 = vrot.slane %v1189, %v1353
    %v1359 = vlaneseq
    %v1360 = vshrl.u32 %v1359, 7
    %v1361 = vsub.s32 0, %v1360
    %v1362 = vrot.slane %v1342, %v1361
    %v1363 = vlaneseq
    %v1364 = vshrl.u32 %v1363, 7
    %v1365 = vsub.s32 0, %v1364
    %v1366 = vrot.slane %v1346, %v1365
    %v1367 = vlaneseq
    %v1368 = vshrl.u32 %v1367, 7
    %v1369 = vsub.s32 0, %v1368
    %v1370 = vrot.slane %v1350, %v1369
    %v1371 = vlaneseq
    %v1372 = vshrl.u32 %v1371, 7
    %v1373 = vsub.s32 0, %v1372
    %v1374 = vrot.slane %v1354, %v1373
    %v1375 = vmul.f32 %v1322, %v1362
    %v1376 = vmul.f32 %v1323, %v1366
    %v1377 = vmul.f32 %v1324, %v1370
    %v1378 = vmul.f32 %v1325, %v1374
    %v1379 = vmul.f32 %v1326, %v1362
    %v1380 = vmul.f32 %v1327, %v1366
    %v1381 = vmul.f32 %v1328, %v1370
    %v1382 = vmul.f32 %v1329, %v1374
    %v1383 = vmul.f32 %v1330, %v1362
    %v1384 = vmul.f32 %v1331, %v1366
    %v1385 = vmul.f32 %v1332, %v1370
    %v1386 = vmul.f32 %v1333, %v1374
    %v1387 = vmul.f32 %v1334, %v1362
    %v1388 = vmul.f32 %v1335, %v1366
    %v1389 = vmul.f32 %v1336, %v1370
    %v1390 = vmul.f32 %v1337, %v1374
    %v1391 = vlaneseq
    %v1392 = vshrl.u32 %v1391, 7
    %v1393 = vsub.s32 1, %v1392
    %v1394 = vrot.slane %v1189, %v1393
    %v1395 = vlaneseq
    %v1396 = vshrl.u32 %v1395, 7
    %v1397 = vsub.s32 3, %v1396
    %v1398 = vrot.slane %v1189, %v1397
    %v1399 = vlaneseq
    %v1400 = vshrl.u32 %v1399, 7
    %v1401 = vsub.s32 5, %v1400
    %v1402 = vrot.slane %v1189, %v1401
    %v1403 = vlaneseq
    %v1404 = vshrl.u32 %v1403, 7
    %v1405 = vsub.s32 7, %v1404
    %v1406 = vrot.slane %v1189, %v1405
    %v1411 = vlaneseq
    %v1412 = vshrl.u32 %v1411, 7
    %v1413 = vsub.s32 1, %v1412
    %v1414 = vrot.slane %v1394, %v1413
    %v1415 = vlaneseq
    %v1416 = vshrl.u32 %v1415, 7
    %v1417 = vsub.s32 1, %v1416
    %v1418 = vrot.slane %v1398, %v1417
    %v1419 = vlaneseq
    %v1420 = vshrl.u32 %v1419, 7
    %v1421 = vsub.s32 1, %v1420
    %v1422 = vrot.slane %v1402, %v1421
    %v1423 = vlaneseq
    %v1424 = vshrl.u32 %v1423, 7
    %v1425 = vsub.s32 1, %v1424
    %v1426 = vrot.slane %v1406, %v1425
    %v1427 = vadd.f32 %v1375, %v1414
    %v1428 = vadd.f32 %v1376, %v1418
    %v1429 = vadd.f32 %v1377, %v1422
    %v1430 = vadd.f32 %v1378, %v1426
    %v1431 = vadd.f32 %v1379, %v1414
    %v1432 = vadd.f32 %v1380, %v1418
    %v1433 = vadd.f32 %v1381, %v1422
    %v1434 = vadd.f32 %v1382, %v1426
    %v1435 = vadd.f32 %v1383, %v1414
    %v1436 = vadd.f32 %v1384, %v1418
    %v1437 = vadd.f32 %v1385, %v1422
    %v1438 = vadd.f32 %v1386, %v1426
    %v1439 = vadd.f32 %v1387, %v1414
    %v1440 = vadd.f32 %v1388, %v1418
    %v1441 = vadd.f32 %v1389, %v1422
    %v1442 = vadd.f32 %v1390, %v1426
    %v1443 = vmax.f32 %v1427, %v1431
    %v1444 = vrot.slane %v1443, 4
    %v1445 = vmax.f32 %v1443, %v1444
    %v1446 = vrot.slane %v1445, 2
    %v1447 = vmax.f32 %v1445, %v1446
    %v1448 = vrot.slane %v1447, 1
    %v1449 = vmax.f32 %v1447, %v1448
    %v1450 = vmax.f32 %v1428, %v1432
    %v1451 = vrot.slane %v1450, 4
    %v1452 = vmax.f32 %v1450, %v1451
    %v1453 = vrot.slane %v1452, 2
    %v1454 = vmax.f32 %v1452, %v1453
    %v1455 = vrot.slane %v1454, 1
    %v1456 = vmax.f32 %v1454, %v1455
    %v1457 = vmax.f32 %v1429, %v1433
    %v1458 = vrot.slane %v1457, 4
    %v1459 = vmax.f32 %v1457, %v1458
    %v1460 = vrot.slane %v1459, 2
    %v1461 = vmax.f32 %v1459, %v1460
    %v1462 = vrot.slane %v1461, 1
    %v1463 = vmax.f32 %v1461, %v1462
    %v1464 = vmax.f32 %v1430, %v1434
    %v1465 = vrot.slane %v1464, 4
    %v1466 = vmax.f32 %v1464, %v1465
    %v1467 = vrot.slane %v1466, 2
    %v1468 = vmax.f32 %v1466, %v1467
    %v1469 = vrot.slane %v1468, 1
    %v1470 = vmax.f32 %v1468, %v1469
    %v1471 = vmax.f32 %v1435, %v1439
    %v1472 = vrot.slane %v1471, 4
    %v1473 = vmax.f32 %v1471, %v1472
    %v1474 = vrot.slane %v1473, 2
    %v1475 = vmax.f32 %v1473, %v1474
    %v1476 = vrot.slane %v1475, 1
    %v1477 = vmax.f32 %v1475, %v1476
    %v1478 = vmax.f32 %v1436, %v1440
    %v1479 = vrot.slane %v1478, 4
    %v1480 = vmax.f32 %v1478, %v1479
    %v1481 = vrot.slane %v1480, 2
    %v1482 = vmax.f32 %v1480, %v1481
    %v1483 = vrot.slane %v1482, 1
    %v1484 = vmax.f32 %v1482, %v1483
    %v1485 = vmax.f32 %v1437, %v1441
    %v1486 = vrot.slane %v1485, 4
    %v1487 = vmax.f32 %v1485, %v1486
    %v1488 = vrot.slane %v1487, 2
    %v1489 = vmax.f32 %v1487, %v1488
    %v1490 = vrot.slane %v1489, 1
    %v1491 = vmax.f32 %v1489, %v1490
    %v1492 = vmax.f32 %v1438, %v1442
    %v1493 = vrot.slane %v1492, 4
    %v1494 = vmax.f32 %v1492, %v1493
    %v1495 = vrot.slane %v1494, 2
    %v1496 = vmax.f32 %v1494, %v1495
    %v1497 = vrot.slane %v1496, 1
    %v1498 = vmax.f32 %v1496, %v1497
    %vm1507 = vcmask 1041409
    %v1508 = vsel %vm1507, %v1477, %v1449
    %v1509 = vsel %vm1507, %v1484, %v1456
    %v1510 = vsel %vm1507, %v1491, %v1463
    %v1511 = vsel %vm1507, %v1498, %v1470
    %vm1516 = vcmask 1041408
    %v1517 = vsel %vm1516, %v1508, 0.0
    %v1518 = vsel %vm1516, %v1509, 0.0
    %v1519 = vsel %vm1516, %v1510, 0.0
    %v1520 = vsel %vm1516, %v1511, 0.0
    %v1521 = vlaneseq
    %v1522 = vshrl.u32 %v1521, 7
    %vm1523 = vcmp.lt.s32.totalorder %v1522, 2
    %v1524 = vsel %vm1523, 1, 0
    %v1525 = vcvt.s32.f32 %v1524
    %v1526 = vpack.c.bf16 %v1517, %v1517
    %v1527 = vpack.c.bf16 %v1518, %v1518
    %v1528 = vpack.c.bf16 %v1519, %v1519
    %v1529 = vpack.c.bf16 %v1520, %v1520
    %v1530 = vld [vmem:[#allocation7] sm:$0xff]
    %v1531 = vld [vmem:[#allocation7 + $0x8] sm:$0xff]
    %v1532 = vld [vmem:[#allocation7 + $0x18] sm:$0xff]
    %v1533 = vld [vmem:[#allocation7 + $0x20] sm:$0xff]
    %v1534 = vld [vmem:[#allocation7 + $0x30] sm:$0xff]
    %v1535 = vld [vmem:[#allocation7 + $0x38] sm:$0xff]
    %v1536 = vld [vmem:[#allocation7 + $0x48] sm:$0xff]
    %v1537 = vld [vmem:[#allocation7 + $0x50] sm:$0xff]
    %v1538 = vld [vmem:[#allocation7 + $0x60] sm:$0xff]
    %v1539 = vld [vmem:[#allocation7 + $0x68] sm:$0xff]
    %v1540 = vld [vmem:[#allocation7 + $0x78] sm:$0xff]
    %v1541 = vld [vmem:[#allocation7 + $0x80] sm:$0xff]
    %v1542 = vld [vmem:[#allocation7 + $0x90] sm:$0xff]
    %v1543 = vld [vmem:[#allocation7 + $0x98] sm:$0xff]
    %v1544 = vld [vmem:[#allocation7 + $0xa8] sm:$0xff]
    %v1545 = vld [vmem:[#allocation7 + $0xb0] sm:$0xff]
    %v1546 = vld [vmem:[#allocation7 + $0xc0] sm:$0xff]
    %v1547 = vld [vmem:[#allocation7 + $0xc8] sm:$0xff]
    %v1548 = vld [vmem:[#allocation7 + $0xd8] sm:$0xff]
    %v1549 = vld [vmem:[#allocation7 + $0xe0] sm:$0xff]
    %v1550 = vld [vmem:[#allocation7 + $0xf0] sm:$0xff]
    %v1551 = vld [vmem:[#allocation7 + $0xf8] sm:$0xff]
    %v1552 = vld [vmem:[#allocation7 + $0x108] sm:$0xff]
    %v1553 = vld [vmem:[#allocation7 + $0x110] sm:$0xff]
    %v1554 = vld [vmem:[#allocation7 + $0x120] sm:$0xff]
    %v1555 = vld [vmem:[#allocation7 + $0x128] sm:$0xff]
    %v1556 = vld [vmem:[#allocation7 + $0x138] sm:$0xff]
    %v1557 = vld [vmem:[#allocation7 + $0x140] sm:$0xff]
    %v1558 = vld [vmem:[#allocation7 + $0x150] sm:$0xff]
    %v1559 = vld [vmem:[#allocation7 + $0x158] sm:$0xff]
    %v1560 = vld [vmem:[#allocation7 + $0x168] sm:$0xff]
    %v1561 = vld [vmem:[#allocation7 + $0x170] sm:$0xff]
    %v1562 = vld [vmem:[#allocation7 + $0x180] sm:$0xff]
    %v1563 = vld [vmem:[#allocation7 + $0x188] sm:$0xff]
    %v1564 = vld [vmem:[#allocation7 + $0x198] sm:$0xff]
    %v1565 = vld [vmem:[#allocation7 + $0x1a0] sm:$0xff]
    %v1566 = vld [vmem:[#allocation7 + $0x1b0] sm:$0xff]
    %v1567 = vld [vmem:[#allocation7 + $0x1b8] sm:$0xff]
    %v1568 = vld [vmem:[#allocation7 + $0x1c8] sm:$0xff]
    %v1569 = vld [vmem:[#allocation7 + $0x1d0] sm:$0xff]
    %v1570 = vld [vmem:[#allocation7 + $0x1e0] sm:$0xff]
    %v1571 = vld [vmem:[#allocation7 + $0x1e8] sm:$0xff]
    %v1572 = vld [vmem:[#allocation7 + $0x1f8] sm:$0xff]
    %v1573 = vld [vmem:[#allocation7 + $0x200] sm:$0xff]
    %v1574 = vld [vmem:[#allocation7 + $0x210] sm:$0xff]
    %v1575 = vld [vmem:[#allocation7 + $0x218] sm:$0xff]
    %v1576 = vld [vmem:[#allocation7 + $0x228] sm:$0xff]
    %v1577 = vld [vmem:[#allocation7 + $0x230] sm:$0xff]
    %v1578 = vld [vmem:[#allocation7 + $0x240] sm:$0xff]
    %v1579 = vld [vmem:[#allocation7 + $0x248] sm:$0xff]
    %v1580 = vld [vmem:[#allocation7 + $0x258] sm:$0xff]
    %v1581 = vld [vmem:[#allocation7 + $0x260] sm:$0xff]
    %v1582 = vld [vmem:[#allocation7 + $0x270] sm:$0xff]
    %v1583 = vld [vmem:[#allocation7 + $0x278] sm:$0xff]
    %v1584 = vld [vmem:[#allocation7 + $0x288] sm:$0xff]
    %v1585 = vld [vmem:[#allocation7 + $0x290] sm:$0xff]
    %v1586 = vld [vmem:[#allocation7 + $0x2a0] sm:$0xff]
    %v1587 = vld [vmem:[#allocation7 + $0x2a8] sm:$0xff]
    %v1588 = vld [vmem:[#allocation7 + $0x2b8] sm:$0xff]
    %v1589 = vld [vmem:[#allocation7 + $0x2c0] sm:$0xff]
    %v1590 = vld [vmem:[#allocation7 + $0x2d0] sm:$0xff]
    %v1591 = vld [vmem:[#allocation7 + $0x2d8] sm:$0xff]
    %v1592 = vld [vmem:[#allocation7 + $0x2e8] sm:$0xff]
    %v1593 = vld [vmem:[#allocation7 + $0x2f0] sm:$0xff]
    %v1594 = vld [vmem:[#allocation7 + $0x300] sm:$0xff]
    %v1595 = vld [vmem:[#allocation7 + $0x308] sm:$0xff]
    %v1596 = vld [vmem:[#allocation7 + $0x318] sm:$0xff]
    %v1597 = vld [vmem:[#allocation7 + $0x320] sm:$0xff]
    %v1598 = vld [vmem:[#allocation7 + $0x330] sm:$0xff]
    %v1599 = vld [vmem:[#allocation7 + $0x338] sm:$0xff]
    %v1600 = vld [vmem:[#allocation7 + $0x348] sm:$0xff]
    %v1601 = vld [vmem:[#allocation7 + $0x350] sm:$0xff]
    %v1602 = vld [vmem:[#allocation7 + $0x360] sm:$0xff]
    %v1603 = vld [vmem:[#allocation7 + $0x368] sm:$0xff]
    %v1604 = vld [vmem:[#allocation7 + $0x378] sm:$0xff]
    %v1605 = vld [vmem:[#allocation7 + $0x380] sm:$0xff]
    %v1606 = vld [vmem:[#allocation7 + $0x390] sm:$0xff]
    %v1607 = vld [vmem:[#allocation7 + $0x398] sm:$0xff]
    %v1608 = vld [vmem:[#allocation7 + $0x3a8] sm:$0xff]
    %v1609 = vld [vmem:[#allocation7 + $0x3b0] sm:$0xff]
    %v1610 = vld [vmem:[#allocation7 + $0x3c0] sm:$0xff]
    %v1611 = vld [vmem:[#allocation7 + $0x3c8] sm:$0xff]
    %v1612 = vld [vmem:[#allocation7 + $0x3d8] sm:$0xff]
    %v1613 = vld [vmem:[#allocation7 + $0x3e0] sm:$0xff]
    %v1614 = vld [vmem:[#allocation7 + $0x3f0] sm:$0xff]
    %v1615 = vld [vmem:[#allocation7 + $0x3f8] sm:$0xff]
    %v1616 = vld [vmem:[#allocation7 + $0x408] sm:$0xff]
    %v1617 = vld [vmem:[#allocation7 + $0x410] sm:$0xff]
    %v1618 = vld [vmem:[#allocation7 + $0x420] sm:$0xff]
    %v1619 = vld [vmem:[#allocation7 + $0x428] sm:$0xff]
    %v1620 = vld [vmem:[#allocation7 + $0x438] sm:$0xff]
    %v1621 = vld [vmem:[#allocation7 + $0x440] sm:$0xff]
    %v1622 = vld [vmem:[#allocation7 + $0x450] sm:$0xff]
    %v1623 = vld [vmem:[#allocation7 + $0x458] sm:$0xff]
    %v1624 = vld [vmem:[#allocation7 + $0x468] sm:$0xff]
    %v1625 = vld [vmem:[#allocation7 + $0x470] sm:$0xff]
    %v1626 = vld [vmem:[#allocation7 + $0x480] sm:$0xff]
    %v1627 = vld [vmem:[#allocation7 + $0x488] sm:$0xff]
    %v1628 = vld [vmem:[#allocation7 + $0x498] sm:$0xff]
    %v1629 = vld [vmem:[#allocation7 + $0x4a0] sm:$0xff]
    %v1630 = vld [vmem:[#allocation7 + $0x4b0] sm:$0xff]
    %v1631 = vld [vmem:[#allocation7 + $0x4b8] sm:$0xff]
    %v1632 = vld [vmem:[#allocation7 + $0x4c8] sm:$0xff]
    %v1633 = vld [vmem:[#allocation7 + $0x4d0] sm:$0xff]
    %v1634 = vld [vmem:[#allocation7 + $0x4e0] sm:$0xff]
    %v1635 = vld [vmem:[#allocation7 + $0x4e8] sm:$0xff]
    %v1636 = vld [vmem:[#allocation7 + $0x4f8] sm:$0xff]
    %v1637 = vld [vmem:[#allocation7 + $0x500] sm:$0xff]
    %v1638 = vld [vmem:[#allocation7 + $0x510] sm:$0xff]
    %v1639 = vld [vmem:[#allocation7 + $0x518] sm:$0xff]
    %v1640 = vld [vmem:[#allocation7 + $0x528] sm:$0xff]
    %v1641 = vld [vmem:[#allocation7 + $0x530] sm:$0xff]
    %v1642 = vld [vmem:[#allocation7 + $0x540] sm:$0xff]
    %v1643 = vld [vmem:[#allocation7 + $0x548] sm:$0xff]
    %v1644 = vld [vmem:[#allocation7 + $0x558] sm:$0xff]
    %v1645 = vld [vmem:[#allocation7 + $0x560] sm:$0xff]
    %v1646 = vld [vmem:[#allocation7 + $0x570] sm:$0xff]
    %v1647 = vld [vmem:[#allocation7 + $0x578] sm:$0xff]
    %v1648 = vld [vmem:[#allocation7 + $0x588] sm:$0xff]
    %v1649 = vld [vmem:[#allocation7 + $0x590] sm:$0xff]
    %v1650 = vld [vmem:[#allocation7 + $0x5a0] sm:$0xff]
    %v1651 = vld [vmem:[#allocation7 + $0x5a8] sm:$0xff]
    %v1652 = vld [vmem:[#allocation7 + $0x5b8] sm:$0xff]
    %v1653 = vld [vmem:[#allocation7 + $0x5c0] sm:$0xff]
    %v1654 = vld [vmem:[#allocation7 + $0x5d0] sm:$0xff]
    %v1655 = vld [vmem:[#allocation7 + $0x5d8] sm:$0xff]
    %v1656 = vld [vmem:[#allocation7 + $0x5e8] sm:$0xff]
    %v1657 = vld [vmem:[#allocation7 + $0x5f0] sm:$0xff]
    %v1786 = vunpack.c.l.b16 %v1530
    %v1787 = vunpack.c.h.b16 %v1530
    %v1788 = vunpack.c.l.b16 %v1531
    %v1789 = vunpack.c.h.b16 %v1531
    %v1790 = vunpack.c.l.b16 %v1532
    %v1791 = vunpack.c.h.b16 %v1532
    %v1792 = vunpack.c.l.b16 %v1533
    %v1793 = vunpack.c.h.b16 %v1533
    %v1794 = vunpack.c.l.b16 %v1534
    %v1795 = vunpack.c.h.b16 %v1534
    %v1796 = vunpack.c.l.b16 %v1535
    %v1797 = vunpack.c.h.b16 %v1535
    %v1798 = vunpack.c.l.b16 %v1536
    %v1799 = vunpack.c.h.b16 %v1536
    %v1800 = vunpack.c.l.b16 %v1537
    %v1801 = vunpack.c.h.b16 %v1537
    %v1802 = vunpack.c.l.b16 %v1538
    %v1803 = vunpack.c.h.b16 %v1538
    %v1804 = vunpack.c.l.b16 %v1539
    %v1805 = vunpack.c.h.b16 %v1539
    %v1806 = vunpack.c.l.b16 %v1540
    %v1807 = vunpack.c.h.b16 %v1540
    %v1808 = vunpack.c.l.b16 %v1541
    %v1809 = vunpack.c.h.b16 %v1541
    %v1810 = vunpack.c.l.b16 %v1542
    %v1811 = vunpack.c.h.b16 %v1542
    %v1812 = vunpack.c.l.b16 %v1543
    %v1813 = vunpack.c.h.b16 %v1543
    %v1814 = vunpack.c.l.b16 %v1544
    %v1815 = vunpack.c.h.b16 %v1544
    %v1816 = vunpack.c.l.b16 %v1545
    %v1817 = vunpack.c.h.b16 %v1545
    %v1818 = vunpack.c.l.b16 %v1546
    %v1819 = vunpack.c.h.b16 %v1546
    %v1820 = vunpack.c.l.b16 %v1547
    %v1821 = vunpack.c.h.b16 %v1547
    %v1822 = vunpack.c.l.b16 %v1548
    %v1823 = vunpack.c.h.b16 %v1548
    %v1824 = vunpack.c.l.b16 %v1549
    %v1825 = vunpack.c.h.b16 %v1549
    %v1826 = vunpack.c.l.b16 %v1550
    %v1827 = vunpack.c.h.b16 %v1550
    %v1828 = vunpack.c.l.b16 %v1551
    %v1829 = vunpack.c.h.b16 %v1551
    %v1830 = vunpack.c.l.b16 %v1552
    %v1831 = vunpack.c.h.b16 %v1552
    %v1832 = vunpack.c.l.b16 %v1553
    %v1833 = vunpack.c.h.b16 %v1553
    %v1834 = vunpack.c.l.b16 %v1554
    %v1835 = vunpack.c.h.b16 %v1554
    %v1836 = vunpack.c.l.b16 %v1555
    %v1837 = vunpack.c.h.b16 %v1555
    %v1838 = vunpack.c.l.b16 %v1556
    %v1839 = vunpack.c.h.b16 %v1556
    %v1840 = vunpack.c.l.b16 %v1557
    %v1841 = vunpack.c.h.b16 %v1557
    %v1842 = vunpack.c.l.b16 %v1558
    %v1843 = vunpack.c.h.b16 %v1558
    %v1844 = vunpack.c.l.b16 %v1559
    %v1845 = vunpack.c.h.b16 %v1559
    %v1846 = vunpack.c.l.b16 %v1560
    %v1847 = vunpack.c.h.b16 %v1560
    %v1848 = vunpack.c.l.b16 %v1561
    %v1849 = vunpack.c.h.b16 %v1561
    %v1850 = vunpack.c.l.b16 %v1562
    %v1851 = vunpack.c.h.b16 %v1562
    %v1852 = vunpack.c.l.b16 %v1563
    %v1853 = vunpack.c.h.b16 %v1563
    %v1854 = vunpack.c.l.b16 %v1564
    %v1855 = vunpack.c.h.b16 %v1564
    %v1856 = vunpack.c.l.b16 %v1565
    %v1857 = vunpack.c.h.b16 %v1565
    %v1858 = vunpack.c.l.b16 %v1566
    %v1859 = vunpack.c.h.b16 %v1566
    %v1860 = vunpack.c.l.b16 %v1567
    %v1861 = vunpack.c.h.b16 %v1567
    %v1862 = vunpack.c.l.b16 %v1568
    %v1863 = vunpack.c.h.b16 %v1568
    %v1864 = vunpack.c.l.b16 %v1569
    %v1865 = vunpack.c.h.b16 %v1569
    %v1866 = vunpack.c.l.b16 %v1570
    %v1867 = vunpack.c.h.b16 %v1570
    %v1868 = vunpack.c.l.b16 %v1571
    %v1869 = vunpack.c.h.b16 %v1571
    %v1870 = vunpack.c.l.b16 %v1572
    %v1871 = vunpack.c.h.b16 %v1572
    %v1872 = vunpack.c.l.b16 %v1573
    %v1873 = vunpack.c.h.b16 %v1573
    %v1874 = vunpack.c.l.b16 %v1574
    %v1875 = vunpack.c.h.b16 %v1574
    %v1876 = vunpack.c.l.b16 %v1575
    %v1877 = vunpack.c.h.b16 %v1575
    %v1878 = vunpack.c.l.b16 %v1576
    %v1879 = vunpack.c.h.b16 %v1576
    %v1880 = vunpack.c.l.b16 %v1577
    %v1881 = vunpack.c.h.b16 %v1577
    %v1882 = vunpack.c.l.b16 %v1578
    %v1883 = vunpack.c.h.b16 %v1578
    %v1884 = vunpack.c.l.b16 %v1579
    %v1885 = vunpack.c.h.b16 %v1579
    %v1886 = vunpack.c.l.b16 %v1580
    %v1887 = vunpack.c.h.b16 %v1580
    %v1888 = vunpack.c.l.b16 %v1581
    %v1889 = vunpack.c.h.b16 %v1581
    %v1890 = vunpack.c.l.b16 %v1582
    %v1891 = vunpack.c.h.b16 %v1582
    %v1892 = vunpack.c.l.b16 %v1583
    %v1893 = vunpack.c.h.b16 %v1583
    %v1894 = vunpack.c.l.b16 %v1584
    %v1895 = vunpack.c.h.b16 %v1584
    %v1896 = vunpack.c.l.b16 %v1585
    %v1897 = vunpack.c.h.b16 %v1585
    %v1898 = vunpack.c.l.b16 %v1586
    %v1899 = vunpack.c.h.b16 %v1586
    %v1900 = vunpack.c.l.b16 %v1587
    %v1901 = vunpack.c.h.b16 %v1587
    %v1902 = vunpack.c.l.b16 %v1588
    %v1903 = vunpack.c.h.b16 %v1588
    %v1904 = vunpack.c.l.b16 %v1589
    %v1905 = vunpack.c.h.b16 %v1589
    %v1906 = vunpack.c.l.b16 %v1590
    %v1907 = vunpack.c.h.b16 %v1590
    %v1908 = vunpack.c.l.b16 %v1591
    %v1909 = vunpack.c.h.b16 %v1591
    %v1910 = vunpack.c.l.b16 %v1592
    %v1911 = vunpack.c.h.b16 %v1592
    %v1912 = vunpack.c.l.b16 %v1593
    %v1913 = vunpack.c.h.b16 %v1593
    %v1914 = vunpack.c.l.b16 %v1594
    %v1915 = vunpack.c.h.b16 %v1594
    %v1916 = vunpack.c.l.b16 %v1595
    %v1917 = vunpack.c.h.b16 %v1595
    %v1918 = vunpack.c.l.b16 %v1596
    %v1919 = vunpack.c.h.b16 %v1596
    %v1920 = vunpack.c.l.b16 %v1597
    %v1921 = vunpack.c.h.b16 %v1597
    %v1922 = vunpack.c.l.b16 %v1598
    %v1923 = vunpack.c.h.b16 %v1598
    %v1924 = vunpack.c.l.b16 %v1599
    %v1925 = vunpack.c.h.b16 %v1599
    %v1926 = vunpack.c.l.b16 %v1600
    %v1927 = vunpack.c.h.b16 %v1600
    %v1928 = vunpack.c.l.b16 %v1601
    %v1929 = vunpack.c.h.b16 %v1601
    %v1930 = vunpack.c.l.b16 %v1602
    %v1931 = vunpack.c.h.b16 %v1602
    %v1932 = vunpack.c.l.b16 %v1603
    %v1933 = vunpack.c.h.b16 %v1603
    %v1934 = vunpack.c.l.b16 %v1604
    %v1935 = vunpack.c.h.b16 %v1604
    %v1936 = vunpack.c.l.b16 %v1605
    %v1937 = vunpack.c.h.b16 %v1605
    %v1938 = vunpack.c.l.b16 %v1606
    %v1939 = vunpack.c.h.b16 %v1606
    %v1940 = vunpack.c.l.b16 %v1607
    %v1941 = vunpack.c.h.b16 %v1607
    %v1942 = vunpack.c.l.b16 %v1608
    %v1943 = vunpack.c.h.b16 %v1608
    %v1944 = vunpack.c.l.b16 %v1609
    %v1945 = vunpack.c.h.b16 %v1609
    %v1946 = vunpack.c.l.b16 %v1610
    %v1947 = vunpack.c.h.b16 %v1610
    %v1948 = vunpack.c.l.b16 %v1611
    %v1949 = vunpack.c.h.b16 %v1611
    %v1950 = vunpack.c.l.b16 %v1612
    %v1951 = vunpack.c.h.b16 %v1612
    %v1952 = vunpack.c.l.b16 %v1613
    %v1953 = vunpack.c.h.b16 %v1613
    %v1954 = vunpack.c.l.b16 %v1614
    %v1955 = vunpack.c.h.b16 %v1614
    %v1956 = vunpack.c.l.b16 %v1615
    %v1957 = vunpack.c.h.b16 %v1615
    %v1958 = vunpack.c.l.b16 %v1616
    %v1959 = vunpack.c.h.b16 %v1616
    %v1960 = vunpack.c.l.b16 %v1617
    %v1961 = vunpack.c.h.b16 %v1617
    %v1962 = vunpack.c.l.b16 %v1618
    %v1963 = vunpack.c.h.b16 %v1618
    %v1964 = vunpack.c.l.b16 %v1619
    %v1965 = vunpack.c.h.b16 %v1619
    %v1966 = vunpack.c.l.b16 %v1620
    %v1967 = vunpack.c.h.b16 %v1620
    %v1968 = vunpack.c.l.b16 %v1621
    %v1969 = vunpack.c.h.b16 %v1621
    %v1970 = vunpack.c.l.b16 %v1622
    %v1971 = vunpack.c.h.b16 %v1622
    %v1972 = vunpack.c.l.b16 %v1623
    %v1973 = vunpack.c.h.b16 %v1623
    %v1974 = vunpack.c.l.b16 %v1624
    %v1975 = vunpack.c.h.b16 %v1624
    %v1976 = vunpack.c.l.b16 %v1625
    %v1977 = vunpack.c.h.b16 %v1625
    %v1978 = vunpack.c.l.b16 %v1626
    %v1979 = vunpack.c.h.b16 %v1626
    %v1980 = vunpack.c.l.b16 %v1627
    %v1981 = vunpack.c.h.b16 %v1627
    %v1982 = vunpack.c.l.b16 %v1628
    %v1983 = vunpack.c.h.b16 %v1628
    %v1984 = vunpack.c.l.b16 %v1629
    %v1985 = vunpack.c.h.b16 %v1629
    %v1986 = vunpack.c.l.b16 %v1630
    %v1987 = vunpack.c.h.b16 %v1630
    %v1988 = vunpack.c.l.b16 %v1631
    %v1989 = vunpack.c.h.b16 %v1631
    %v1990 = vunpack.c.l.b16 %v1632
    %v1991 = vunpack.c.h.b16 %v1632
    %v1992 = vunpack.c.l.b16 %v1633
    %v1993 = vunpack.c.h.b16 %v1633
    %v1994 = vunpack.c.l.b16 %v1634
    %v1995 = vunpack.c.h.b16 %v1634
    %v1996 = vunpack.c.l.b16 %v1635
    %v1997 = vunpack.c.h.b16 %v1635
    %v1998 = vunpack.c.l.b16 %v1636
    %v1999 = vunpack.c.h.b16 %v1636
    %v2000 = vunpack.c.l.b16 %v1637
    %v2001 = vunpack.c.h.b16 %v1637
    %v2002 = vunpack.c.l.b16 %v1638
    %v2003 = vunpack.c.h.b16 %v1638
    %v2004 = vunpack.c.l.b16 %v1639
    %v2005 = vunpack.c.h.b16 %v1639
    %v2006 = vunpack.c.l.b16 %v1640
    %v2007 = vunpack.c.h.b16 %v1640
    %v2008 = vunpack.c.l.b16 %v1641
    %v2009 = vunpack.c.h.b16 %v1641
    %v2010 = vunpack.c.l.b16 %v1642
    %v2011 = vunpack.c.h.b16 %v1642
    %v2012 = vunpack.c.l.b16 %v1643
    %v2013 = vunpack.c.h.b16 %v1643
    %v2014 = vunpack.c.l.b16 %v1644
    %v2015 = vunpack.c.h.b16 %v1644
    %v2016 = vunpack.c.l.b16 %v1645
    %v2017 = vunpack.c.h.b16 %v1645
    %v2018 = vunpack.c.l.b16 %v1646
    %v2019 = vunpack.c.h.b16 %v1646
    %v2020 = vunpack.c.l.b16 %v1647
    %v2021 = vunpack.c.h.b16 %v1647
    %v2022 = vunpack.c.l.b16 %v1648
    %v2023 = vunpack.c.h.b16 %v1648
    %v2024 = vunpack.c.l.b16 %v1649
    %v2025 = vunpack.c.h.b16 %v1649
    %v2026 = vunpack.c.l.b16 %v1650
    %v2027 = vunpack.c.h.b16 %v1650
    %v2028 = vunpack.c.l.b16 %v1651
    %v2029 = vunpack.c.h.b16 %v1651
    %v2030 = vunpack.c.l.b16 %v1652
    %v2031 = vunpack.c.h.b16 %v1652
    %v2032 = vunpack.c.l.b16 %v1653
    %v2033 = vunpack.c.h.b16 %v1653
    %v2034 = vunpack.c.l.b16 %v1654
    %v2035 = vunpack.c.h.b16 %v1654
    %v2036 = vunpack.c.l.b16 %v1655
    %v2037 = vunpack.c.h.b16 %v1655
    %v2038 = vunpack.c.l.b16 %v1656
    %v2039 = vunpack.c.h.b16 %v1656
    %v2040 = vunpack.c.l.b16 %v1657
    %v2041 = vunpack.c.h.b16 %v1657
    %v2042 = vpack.c.b16 %v1790, %v1786
    %v2043 = vpack.c.b16 %v1791, %v1787
    %v2044 = vpack.c.b16 %v1792, %v1788
    %v2045 = vpack.c.b16 %v1793, %v1789
    %v2046 = vpack.c.b16 %v1798, %v1794
    %v2047 = vpack.c.b16 %v1799, %v1795
    %v2048 = vpack.c.b16 %v1800, %v1796
    %v2049 = vpack.c.b16 %v1801, %v1797
    %v2050 = vpack.c.b16 %v1806, %v1802
    %v2051 = vpack.c.b16 %v1807, %v1803
    %v2052 = vpack.c.b16 %v1808, %v1804
    %v2053 = vpack.c.b16 %v1809, %v1805
    %v2054 = vpack.c.b16 %v1814, %v1810
    %v2055 = vpack.c.b16 %v1815, %v1811
    %v2056 = vpack.c.b16 %v1816, %v1812
    %v2057 = vpack.c.b16 %v1817, %v1813
    %v2058 = vpack.c.b16 %v1822, %v1818
    %v2059 = vpack.c.b16 %v1823, %v1819
    %v2060 = vpack.c.b16 %v1824, %v1820
    %v2061 = vpack.c.b16 %v1825, %v1821
    %v2062 = vpack.c.b16 %v1830, %v1826
    %v2063 = vpack.c.b16 %v1831, %v1827
    %v2064 = vpack.c.b16 %v1832, %v1828
    %v2065 = vpack.c.b16 %v1833, %v1829
    %v2066 = vpack.c.b16 %v1838, %v1834
    %v2067 = vpack.c.b16 %v1839, %v1835
    %v2068 = vpack.c.b16 %v1840, %v1836
    %v2069 = vpack.c.b16 %v1841, %v1837
    %v2070 = vpack.c.b16 %v1846, %v1842
    %v2071 = vpack.c.b16 %v1847, %v1843
    %v2072 = vpack.c.b16 %v1848, %v1844
    %v2073 = vpack.c.b16 %v1849, %v1845
    %v2074 = vpack.c.b16 %v1854, %v1850
    %v2075 = vpack.c.b16 %v1855, %v1851
    %v2076 = vpack.c.b16 %v1856, %v1852
    %v2077 = vpack.c.b16 %v1857, %v1853
    %v2078 = vpack.c.b16 %v1862, %v1858
    %v2079 = vpack.c.b16 %v1863, %v1859
    %v2080 = vpack.c.b16 %v1864, %v1860
    %v2081 = vpack.c.b16 %v1865, %v1861
    %v2082 = vpack.c.b16 %v1870, %v1866
    %v2083 = vpack.c.b16 %v1871, %v1867
    %v2084 = vpack.c.b16 %v1872, %v1868
    %v2085 = vpack.c.b16 %v1873, %v1869
    %v2086 = vpack.c.b16 %v1878, %v1874
    %v2087 = vpack.c.b16 %v1879, %v1875
    %v2088 = vpack.c.b16 %v1880, %v1876
    %v2089 = vpack.c.b16 %v1881, %v1877
    %v2090 = vpack.c.b16 %v1886, %v1882
    %v2091 = vpack.c.b16 %v1887, %v1883
    %v2092 = vpack.c.b16 %v1888, %v1884
    %v2093 = vpack.c.b16 %v1889, %v1885
    %v2094 = vpack.c.b16 %v1894, %v1890
    %v2095 = vpack.c.b16 %v1895, %v1891
    %v2096 = vpack.c.b16 %v1896, %v1892
    %v2097 = vpack.c.b16 %v1897, %v1893
    %v2098 = vpack.c.b16 %v1902, %v1898
    %v2099 = vpack.c.b16 %v1903, %v1899
    %v2100 = vpack.c.b16 %v1904, %v1900
    %v2101 = vpack.c.b16 %v1905, %v1901
    %v2102 = vpack.c.b16 %v1910, %v1906
    %v2103 = vpack.c.b16 %v1911, %v1907
    %v2104 = vpack.c.b16 %v1912, %v1908
    %v2105 = vpack.c.b16 %v1913, %v1909
    %v2106 = vpack.c.b16 %v1918, %v1914
    %v2107 = vpack.c.b16 %v1919, %v1915
    %v2108 = vpack.c.b16 %v1920, %v1916
    %v2109 = vpack.c.b16 %v1921, %v1917
    %v2110 = vpack.c.b16 %v1926, %v1922
    %v2111 = vpack.c.b16 %v1927, %v1923
    %v2112 = vpack.c.b16 %v1928, %v1924
    %v2113 = vpack.c.b16 %v1929, %v1925
    %v2114 = vpack.c.b16 %v1934, %v1930
    %v2115 = vpack.c.b16 %v1935, %v1931
    %v2116 = vpack.c.b16 %v1936, %v1932
    %v2117 = vpack.c.b16 %v1937, %v1933
    %v2118 = vpack.c.b16 %v1942, %v1938
    %v2119 = vpack.c.b16 %v1943, %v1939
    %v2120 = vpack.c.b16 %v1944, %v1940
    %v2121 = vpack.c.b16 %v1945, %v1941
    %v2122 = vpack.c.b16 %v1950, %v1946
    %v2123 = vpack.c.b16 %v1951, %v1947
    %v2124 = vpack.c.b16 %v1952, %v1948
    %v2125 = vpack.c.b16 %v1953, %v1949
    %v2126 = vpack.c.b16 %v1958, %v1954
    %v2127 = vpack.c.b16 %v1959, %v1955
    %v2128 = vpack.c.b16 %v1960, %v1956
    %v2129 = vpack.c.b16 %v1961, %v1957
    %v2130 = vpack.c.b16 %v1966, %v1962
    %v2131 = vpack.c.b16 %v1967, %v1963
    %v2132 = vpack.c.b16 %v1968, %v1964
    %v2133 = vpack.c.b16 %v1969, %v1965
    %v2134 = vpack.c.b16 %v1974, %v1970
    %v2135 = vpack.c.b16 %v1975, %v1971
    %v2136 = vpack.c.b16 %v1976, %v1972
    %v2137 = vpack.c.b16 %v1977, %v1973
    %v2138 = vpack.c.b16 %v1982, %v1978
    %v2139 = vpack.c.b16 %v1983, %v1979
    %v2140 = vpack.c.b16 %v1984, %v1980
    %v2141 = vpack.c.b16 %v1985, %v1981
    %v2142 = vpack.c.b16 %v1990, %v1986
    %v2143 = vpack.c.b16 %v1991, %v1987
    %v2144 = vpack.c.b16 %v1992, %v1988
    %v2145 = vpack.c.b16 %v1993, %v1989
    %v2146 = vpack.c.b16 %v1998, %v1994
    %v2147 = vpack.c.b16 %v1999, %v1995
    %v2148 = vpack.c.b16 %v2000, %v1996
    %v2149 = vpack.c.b16 %v2001, %v1997
    %v2150 = vpack.c.b16 %v2006, %v2002
    %v2151 = vpack.c.b16 %v2007, %v2003
    %v2152 = vpack.c.b16 %v2008, %v2004
    %v2153 = vpack.c.b16 %v2009, %v2005
    %v2154 = vpack.c.b16 %v2014, %v2010
    %v2155 = vpack.c.b16 %v2015, %v2011
    %v2156 = vpack.c.b16 %v2016, %v2012
    %v2157 = vpack.c.b16 %v2017, %v2013
    %v2158 = vpack.c.b16 %v2022, %v2018
    %v2159 = vpack.c.b16 %v2023, %v2019
    %v2160 = vpack.c.b16 %v2024, %v2020
    %v2161 = vpack.c.b16 %v2025, %v2021
    %v2162 = vpack.c.b16 %v2030, %v2026
    %v2163 = vpack.c.b16 %v2031, %v2027
    %v2164 = vpack.c.b16 %v2032, %v2028
    %v2165 = vpack.c.b16 %v2033, %v2029
    %v2166 = vpack.c.b16 %v2038, %v2034
    %v2167 = vpack.c.b16 %v2039, %v2035
    %v2168 = vpack.c.b16 %v2040, %v2036
    %v2169 = vpack.c.b16 %v2041, %v2037
    %2298 = vmatprep.subr.bf16.mxu0 %v2043
    %2299 = vmatpush1.bf16.msra.mxu0 %v2042
    %2300 = vmatprep.subr.bf16.mxu0 %v2047
    %2301 = vmatpush1.bf16.msra.mxu0 %v2046
    %2302 = vmatprep.subr.bf16.mxu0 %v2051
    %2303 = vmatpush1.bf16.msra.mxu0 %v2050
    %2304 = vmatprep.subr.bf16.mxu0 %v2055
    %2305 = vmatpush1.bf16.msra.mxu0 %v2054
    %2306 = vmatprep.subr.bf16.mxu0 %v2059
    %2307 = vmatpush1.bf16.msra.mxu0 %v2058
    %2308 = vmatprep.subr.bf16.mxu0 %v2063
    %2309 = vmatpush1.bf16.msra.mxu0 %v2062
    %2310 = vmatprep.subr.bf16.mxu0 %v2067
    %2311 = vmatpush1.bf16.msra.mxu0 %v2066
    %2312 = vmatprep.subr.bf16.mxu0 %v2071
    %2313 = vmatpush1.bf16.msra.mxu0 %v2070
    %2314 = vmatprep.subr.bf16.mxu0 %v2075
    %2315 = vmatpush1.bf16.msra.mxu0 %v2074
    %2316 = vmatprep.subr.bf16.mxu0 %v2079
    %2317 = vmatpush1.bf16.msra.mxu0 %v2078
    %2318 = vmatprep.subr.bf16.mxu0 %v2083
    %2319 = vmatpush1.bf16.msra.mxu0 %v2082
    %2320 = vmatprep.subr.bf16.mxu0 %v2087
    %2321 = vmatpush1.bf16.msra.mxu0 %v2086
    %2322 = vmatprep.subr.bf16.mxu0 %v2091
    %2323 = vmatpush1.bf16.msra.mxu0 %v2090
    %2324 = vmatprep.subr.bf16.mxu0 %v2095
    %2325 = vmatpush1.bf16.msra.mxu0 %v2094
    %2326 = vmatprep.subr.bf16.mxu0 %v2099
    %2327 = vmatpush1.bf16.msra.mxu0 %v2098
    %2328 = vmatprep.subr.bf16.mxu0 %v2103
    %2329 = vmatpush1.bf16.msra.mxu0 %v2102
    %2330 = vmatprep.mubr.bf16.mxu0 %v1527
    %2331 = vmatmul.mubr.bf16.gmra.mrb[0].mxu0 %v1526
    %v2332 = vpop.f32.mrb[0].mxu0
    %v2333 = vadd.f32 0.0, %v2332
    %v2334 = vpop.f32.mrb[0].mxu0
    %v2335 = vadd.f32 0.0, %v2334
    %v2336 = vpop.f32.mrb[0].mxu0
    %v2337 = vpop.f32.mrb[0].mxu0
    %2338 = vdwg.mxu0
    %2339 = vmatprep.subr.bf16.mxu0 %v2107
    %2340 = vmatpush1.bf16.msra.mxu0 %v2106
    %2341 = vmatprep.subr.bf16.mxu0 %v2111
    %2342 = vmatpush1.bf16.msra.mxu0 %v2110
    %2343 = vmatprep.subr.bf16.mxu0 %v2115
    %2344 = vmatpush1.bf16.msra.mxu0 %v2114
    %2345 = vmatprep.subr.bf16.mxu0 %v2119
    %2346 = vmatpush1.bf16.msra.mxu0 %v2118
    %2347 = vmatprep.subr.bf16.mxu0 %v2123
    %2348 = vmatpush1.bf16.msra.mxu0 %v2122
    %2349 = vmatprep.subr.bf16.mxu0 %v2127
    %2350 = vmatpush1.bf16.msra.mxu0 %v2126
    %2351 = vmatprep.subr.bf16.mxu0 %v2131
    %2352 = vmatpush1.bf16.msra.mxu0 %v2130
    %2353 = vmatprep.subr.bf16.mxu0 %v2135
    %2354 = vmatpush1.bf16.msra.mxu0 %v2134
    %2355 = vmatprep.subr.bf16.mxu0 %v2139
    %2356 = vmatpush1.bf16.msra.mxu0 %v2138
    %2357 = vmatprep.subr.bf16.mxu0 %v2143
    %2358 = vmatpush1.bf16.msra.mxu0 %v2142
    %2359 = vmatprep.subr.bf16.mxu0 %v2147
    %2360 = vmatpush1.bf16.msra.mxu0 %v2146
    %2361 = vmatprep.subr.bf16.mxu0 %v2151
    %2362 = vmatpush1.bf16.msra.mxu0 %v2150
    %2363 = vmatprep.subr.bf16.mxu0 %v2155
    %2364 = vmatpush1.bf16.msra.mxu0 %v2154
    %2365 = vmatprep.subr.bf16.mxu0 %v2159
    %2366 = vmatpush1.bf16.msra.mxu0 %v2158
    %2367 = vmatprep.subr.bf16.mxu0 %v2163
    %2368 = vmatpush1.bf16.msra.mxu0 %v2162
    %2369 = vmatprep.subr.bf16.mxu0 %v2167
    %2370 = vmatpush1.bf16.msra.mxu0 %v2166
    %2371 = vmatprep.mubr.bf16.mxu0 %v1529
    %2372 = vmatmul.mubr.bf16.gmra.mrb[0].mxu0 %v1528
    %v2373 = vpop.f32.mrb[0].mxu0
    %v2374 = vadd.f32 %v2333, %v2373
    %v2375 = vpop.f32.mrb[0].mxu0
    %v2376 = vadd.f32 %v2335, %v2375
    %v2377 = vpop.f32.mrb[0].mxu0
    %v2378 = vpop.f32.mrb[0].mxu0
    %2379 = vdwg.mxu0
    %2380 = vmatprep.subr.bf16.mxu0 %v2045
    %2381 = vmatpush1.bf16.msra.mxu0 %v2044
    %2382 = vmatprep.subr.bf16.mxu0 %v2049
    %2383 = vmatpush1.bf16.msra.mxu0 %v2048
    %2384 = vmatprep.subr.bf16.mxu0 %v2053
    %2385 = vmatpush1.bf16.msra.mxu0 %v2052
    %2386 = vmatprep.subr.bf16.mxu0 %v2057
    %2387 = vmatpush1.bf16.msra.mxu0 %v2056
    %2388 = vmatprep.subr.bf16.mxu0 %v2061
    %2389 = vmatpush1.bf16.msra.mxu0 %v2060
    %2390 = vmatprep.subr.bf16.mxu0 %v2065
    %2391 = vmatpush1.bf16.msra.mxu0 %v2064
    %2392 = vmatprep.subr.bf16.mxu0 %v2069
    %2393 = vmatpush1.bf16.msra.mxu0 %v2068
    %2394 = vmatprep.subr.bf16.mxu0 %v2073
    %2395 = vmatpush1.bf16.msra.mxu0 %v2072
    %2396 = vmatprep.subr.bf16.mxu0 %v2077
    %2397 = vmatpush1.bf16.msra.mxu0 %v2076
    %2398 = vmatprep.subr.bf16.mxu0 %v2081
    %2399 = vmatpush1.bf16.msra.mxu0 %v2080
    %2400 = vmatprep.subr.bf16.mxu0 %v2085
    %2401 = vmatpush1.bf16.msra.mxu0 %v2084
    %2402 = vmatprep.subr.bf16.mxu0 %v2089
    %2403 = vmatpush1.bf16.msra.mxu0 %v2088
    %2404 = vmatprep.subr.bf16.mxu0 %v2093
    %2405 = vmatpush1.bf16.msra.mxu0 %v2092
    %2406 = vmatprep.subr.bf16.mxu0 %v2097
    %2407 = vmatpush1.bf16.msra.mxu0 %v2096
    %2408 = vmatprep.subr.bf16.mxu0 %v2101
    %2409 = vmatpush1.bf16.msra.mxu0 %v2100
    %2410 = vmatprep.subr.bf16.mxu0 %v2105
    %2411 = vmatpush1.bf16.msra.mxu0 %v2104
    %2412 = vmatprep.mubr.bf16.mxu0 %v1527
    %2413 = vmatmul.mubr.bf16.gmra.mrb[0].mxu0 %v1526
    %v2414 = vpop.f32.mrb[0].mxu0
    %v2415 = vadd.f32 0.0, %v2414
    %v2416 = vpop.f32.mrb[0].mxu0
    %v2417 = vadd.f32 0.0, %v2416
    %v2418 = vpop.f32.mrb[0].mxu0
    %v2419 = vpop.f32.mrb[0].mxu0
    %2420 = vdwg.mxu0
    %2421 = vmatprep.subr.bf16.mxu0 %v2109
    %2422 = vmatpush1.bf16.msra.mxu0 %v2108
    %2423 = vmatprep.subr.bf16.mxu0 %v2113
    %2424 = vmatpush1.bf16.msra.mxu0 %v2112
    %2425 = vmatprep.subr.bf16.mxu0 %v2117
    %2426 = vmatpush1.bf16.msra.mxu0 %v2116
    %2427 = vmatprep.subr.bf16.mxu0 %v2121
    %2428 = vmatpush1.bf16.msra.mxu0 %v2120
    %2429 = vmatprep.subr.bf16.mxu0 %v2125
    %2430 = vmatpush1.bf16.msra.mxu0 %v2124
    %2431 = vmatprep.subr.bf16.mxu0 %v2129
    %2432 = vmatpush1.bf16.msra.mxu0 %v2128
    %2433 = vmatprep.subr.bf16.mxu0 %v2133
    %2434 = vmatpush1.bf16.msra.mxu0 %v2132
    %2435 = vmatprep.subr.bf16.mxu0 %v2137
    %2436 = vmatpush1.bf16.msra.mxu0 %v2136
    %2437 = vmatprep.subr.bf16.mxu0 %v2141
    %2438 = vmatpush1.bf16.msra.mxu0 %v2140
    %2439 = vmatprep.subr.bf16.mxu0 %v2145
    %2440 = vmatpush1.bf16.msra.mxu0 %v2144
    %2441 = vmatprep.subr.bf16.mxu0 %v2149
    %2442 = vmatpush1.bf16.msra.mxu0 %v2148
    %2443 = vmatprep.subr.bf16.mxu0 %v2153
    %2444 = vmatpush1.bf16.msra.mxu0 %v2152
    %2445 = vmatprep.subr.bf16.mxu0 %v2157
    %2446 = vmatpush1.bf16.msra.mxu0 %v2156
    %2447 = vmatprep.subr.bf16.mxu0 %v2161
    %2448 = vmatpush1.bf16.msra.mxu0 %v2160
    %2449 = vmatprep.subr.bf16.mxu0 %v2165
    %2450 = vmatpush1.bf16.msra.mxu0 %v2164
    %2451 = vmatprep.subr.bf16.mxu0 %v2169
    %2452 = vmatpush1.bf16.msra.mxu0 %v2168
    %2453 = vmatprep.mubr.bf16.mxu0 %v1529
    %2454 = vmatmul.mubr.bf16.gmra.mrb[0].mxu0 %v1528
    %v2455 = vpop.f32.mrb[0].mxu0
    %v2456 = vadd.f32 %v2415, %v2455
    %v2457 = vpop.f32.mrb[0].mxu0
    %v2458 = vadd.f32 %v2417, %v2457
    %v2459 = vpop.f32.mrb[0].mxu0
    %v2460 = vpop.f32.mrb[0].mxu0
    %2461 = vdwg.mxu0
    %v2462 = vld [vmem:[%s6 + $0x10] sm:$0xff]
    %v2463 = vrot.slane %v2374, 4
    %v2464 = vadd.f32 %v2374, %v2463
    %v2465 = vrot.slane %v2464, 2
    %v2466 = vadd.f32 %v2464, %v2465
    %v2467 = vrot.slane %v2466, 1
    %v2468 = vadd.f32 %v2466, %v2467
    %v2469 = vrot.slane %v2376, 4
    %v2470 = vadd.f32 %v2376, %v2469
    %v2471 = vrot.slane %v2470, 2
    %v2472 = vadd.f32 %v2470, %v2471
    %v2473 = vrot.slane %v2472, 1
    %v2474 = vadd.f32 %v2472, %v2473
    %v2475 = vrot.slane %v2456, 4
    %v2476 = vadd.f32 %v2456, %v2475
    %v2477 = vrot.slane %v2476, 2
    %v2478 = vadd.f32 %v2476, %v2477
    %v2479 = vrot.slane %v2478, 1
    %v2480 = vadd.f32 %v2478, %v2479
    %v2481 = vrot.slane %v2458, 4
    %v2482 = vadd.f32 %v2458, %v2481
    %v2483 = vrot.slane %v2482, 2
    %v2484 = vadd.f32 %v2482, %v2483
    %v2485 = vrot.slane %v2484, 1
    %v2486 = vadd.f32 %v2484, %v2485
    %v2487 = vmul.f32 %v2468, 0.5
    %v2488 = vmul.f32 %v2474, 0.5
    %v2489 = vmul.f32 %v2480, 0.5
    %v2490 = vmul.f32 %v2486, 0.5
    %v2491 = vmul.f32 %v2374, %v2374
    %v2492 = vmul.f32 %v2376, %v2376
    %v2493 = vmul.f32 %v2456, %v2456
    %v2494 = vmul.f32 %v2458, %v2458
    %v2495 = vrot.slane %v2491, 4
    %v2496 = vadd.f32 %v2491, %v2495
    %v2497 = vrot.slane %v2496, 2
    %v2498 = vadd.f32 %v2496, %v2497
    %v2499 = vrot.slane %v2498, 1
    %v2500 = vadd.f32 %v2498, %v2499
    %v2501 = vrot.slane %v2492, 4
    %v2502 = vadd.f32 %v2492, %v2501
    %v2503 = vrot.slane %v2502, 2
    %v2504 = vadd.f32 %v2502, %v2503
    %v2505 = vrot.slane %v2504, 1
    %v2506 = vadd.f32 %v2504, %v2505
    %v2507 = vrot.slane %v2493, 4
    %v2508 = vadd.f32 %v2493, %v2507
    %v2509 = vrot.slane %v2508, 2
    %v2510 = vadd.f32 %v2508, %v2509
    %v2511 = vrot.slane %v2510, 1
    %v2512 = vadd.f32 %v2510, %v2511
    %v2513 = vrot.slane %v2494, 4
    %v2514 = vadd.f32 %v2494, %v2513
    %v2515 = vrot.slane %v2514, 2
    %v2516 = vadd.f32 %v2514, %v2515
    %v2517 = vrot.slane %v2516, 1
    %v2518 = vadd.f32 %v2516, %v2517
    %v2519 = vmul.f32 %v2500, 0.5
    %v2520 = vmul.f32 %v2506, 0.5
    %v2521 = vmul.f32 %v2512, 0.5
    %v2522 = vmul.f32 %v2518, 0.5
    %v2523 = vmul.f32 %v2487, %v2487
    %v2524 = vmul.f32 %v2488, %v2488
    %v2525 = vmul.f32 %v2489, %v2489
    %v2526 = vmul.f32 %v2490, %v2490
    %v2527 = vsub.f32 %v2519, %v2523
    %v2528 = vsub.f32 %v2520, %v2524
    %v2529 = vsub.f32 %v2521, %v2525
    %v2530 = vsub.f32 %v2522, %v2526
    %v2531 = vmax.f32 %v2527, 0.0
    %v2532 = vmax.f32 %v2528, 0.0
    %v2533 = vmax.f32 %v2529, 0.0
    %v2534 = vmax.f32 %v2530, 0.0
    %v2535 = vsub.f32 %v2374, %v2487
    %v2536 = vsub.f32 %v2376, %v2488
    %v2537 = vsub.f32 %v2456, %v2489
    %v2538 = vsub.f32 %v2458, %v2490
    %v2539 = vadd.f32 %v2531, 1e-05
    %v2540 = vadd.f32 %v2532, 1e-05
    %v2541 = vadd.f32 %v2533, 1e-05
    %v2542 = vadd.f32 %v2534, 1e-05
    %v2543 = vrsqrt.pop %v2539
    %v2544 = vrsqrt.pop %v2540
    %v2545 = vrsqrt.pop %v2541
    %v2546 = vrsqrt.pop %v2542
    %v2547 = vmul.f32 %v2535, %v2543
    %v2548 = vmul.f32 %v2536, %v2544
    %v2549 = vmul.f32 %v2537, %v2545
    %v2550 = vmul.f32 %v2538, %v2546
    %v2552 = vlaneseq
    %v2553 = vshrl.u32 %v2552, 7
    %v2554 = vsub.s32 0, %v2553
    %v2555 = vrot.slane %v2462, %v2554
    %v2556 = vlaneseq
    %v2557 = vshrl.u32 %v2556, 7
    %v2558 = vsub.s32 2, %v2557
    %v2559 = vrot.slane %v2462, %v2558
    %v2560 = vlaneseq
    %v2561 = vshrl.u32 %v2560, 7
    %v2562 = vsub.s32 4, %v2561
    %v2563 = vrot.slane %v2462, %v2562
    %v2564 = vlaneseq
    %v2565 = vshrl.u32 %v2564, 7
    %v2566 = vsub.s32 6, %v2565
    %v2567 = vrot.slane %v2462, %v2566
    %v2572 = vlaneseq
    %v2573 = vshrl.u32 %v2572, 7
    %v2574 = vsub.s32 0, %v2573
    %v2575 = vrot.slane %v2555, %v2574
    %v2576 = vlaneseq
    %v2577 = vshrl.u32 %v2576, 7
    %v2578 = vsub.s32 0, %v2577
    %v2579 = vrot.slane %v2559, %v2578
    %v2580 = vlaneseq
    %v2581 = vshrl.u32 %v2580, 7
    %v2582 = vsub.s32 0, %v2581
    %v2583 = vrot.slane %v2563, %v2582
    %v2584 = vlaneseq
    %v2585 = vshrl.u32 %v2584, 7
    %v2586 = vsub.s32 0, %v2585
    %v2587 = vrot.slane %v2567, %v2586
    %v2588 = vmul.f32 %v2547, %v2575
    %v2589 = vmul.f32 %v2548, %v2579
    %v2590 = vmul.f32 %v2549, %v2583
    %v2591 = vmul.f32 %v2550, %v2587
    %v2592 = vlaneseq
    %v2593 = vshrl.u32 %v2592, 7
    %v2594 = vsub.s32 1, %v2593
    %v2595 = vrot.slane %v2462, %v2594
    %v2596 = vlaneseq
    %v2597 = vshrl.u32 %v2596, 7
    %v2598 = vsub.s32 3, %v2597
    %v2599 = vrot.slane %v2462, %v2598
    %v2600 = vlaneseq
    %v2601 = vshrl.u32 %v2600, 7
    %v2602 = vsub.s32 5, %v2601
    %v2603 = vrot.slane %v2462, %v2602
    %v2604 = vlaneseq
    %v2605 = vshrl.u32 %v2604, 7
    %v2606 = vsub.s32 7, %v2605
    %v2607 = vrot.slane %v2462, %v2606
    %v2612 = vlaneseq
    %v2613 = vshrl.u32 %v2612, 7
    %v2614 = vsub.s32 1, %v2613
    %v2615 = vrot.slane %v2595, %v2614
    %v2616 = vlaneseq
    %v2617 = vshrl.u32 %v2616, 7
    %v2618 = vsub.s32 1, %v2617
    %v2619 = vrot.slane %v2599, %v2618
    %v2620 = vlaneseq
    %v2621 = vshrl.u32 %v2620, 7
    %v2622 = vsub.s32 1, %v2621
    %v2623 = vrot.slane %v2603, %v2622
    %v2624 = vlaneseq
    %v2625 = vshrl.u32 %v2624, 7
    %v2626 = vsub.s32 1, %v2625
    %v2627 = vrot.slane %v2607, %v2626
    %v2628 = vadd.f32 %v2588, %v2615
    %v2629 = vadd.f32 %v2589, %v2619
    %v2630 = vadd.f32 %v2590, %v2623
    %v2631 = vadd.f32 %v2591, %v2627
    %v2632 = vmax.f32 %v2628, 0.0
    %v2633 = vmax.f32 %v2629, 0.0
    %v2634 = vmax.f32 %v2630, 0.0
    %v2635 = vmax.f32 %v2631, 0.0
    %v2636 = vmul.f32 %v2632, %v1525
    %v2637 = vmul.f32 %v2633, %v1525
    %v2638 = vmul.f32 %v2634, %v1525
    %v2639 = vmul.f32 %v2635, %v1525
    %v2640 = vpack.c.bf16 %v2636, %v2636
    %v2641 = vpack.c.bf16 %v2637, %v2637
    %v2642 = vpack.c.bf16 %v2638, %v2638
    %v2643 = vpack.c.bf16 %v2639, %v2639
    %v2644 = vld [vmem:[#allocation7 + $0x10] sm:$0xff]
    %v2645 = vld [vmem:[#allocation7 + $0x28] sm:$0xff]
    %v2646 = vld [vmem:[#allocation7 + $0x40] sm:$0xff]
    %v2647 = vld [vmem:[#allocation7 + $0x58] sm:$0xff]
    %v2648 = vld [vmem:[#allocation7 + $0x70] sm:$0xff]
    %v2649 = vld [vmem:[#allocation7 + $0x88] sm:$0xff]
    %v2650 = vld [vmem:[#allocation7 + $0xa0] sm:$0xff]
    %v2651 = vld [vmem:[#allocation7 + $0xb8] sm:$0xff]
    %v2652 = vld [vmem:[#allocation7 + $0xd0] sm:$0xff]
    %v2653 = vld [vmem:[#allocation7 + $0xe8] sm:$0xff]
    %v2654 = vld [vmem:[#allocation7 + $0x100] sm:$0xff]
    %v2655 = vld [vmem:[#allocation7 + $0x118] sm:$0xff]
    %v2656 = vld [vmem:[#allocation7 + $0x130] sm:$0xff]
    %v2657 = vld [vmem:[#allocation7 + $0x148] sm:$0xff]
    %v2658 = vld [vmem:[#allocation7 + $0x160] sm:$0xff]
    %v2659 = vld [vmem:[#allocation7 + $0x178] sm:$0xff]
    %v2660 = vld [vmem:[#allocation7 + $0x190] sm:$0xff]
    %v2661 = vld [vmem:[#allocation7 + $0x1a8] sm:$0xff]
    %v2662 = vld [vmem:[#allocation7 + $0x1c0] sm:$0xff]
    %v2663 = vld [vmem:[#allocation7 + $0x1d8] sm:$0xff]
    %v2664 = vld [vmem:[#allocation7 + $0x1f0] sm:$0xff]
    %v2665 = vld [vmem:[#allocation7 + $0x208] sm:$0xff]
    %v2666 = vld [vmem:[#allocation7 + $0x220] sm:$0xff]
    %v2667 = vld [vmem:[#allocation7 + $0x238] sm:$0xff]
    %v2668 = vld [vmem:[#allocation7 + $0x250] sm:$0xff]
    %v2669 = vld [vmem:[#allocation7 + $0x268] sm:$0xff]
    %v2670 = vld [vmem:[#allocation7 + $0x280] sm:$0xff]
    %v2671 = vld [vmem:[#allocation7 + $0x298] sm:$0xff]
    %v2672 = vld [vmem:[#allocation7 + $0x2b0] sm:$0xff]
    %v2673 = vld [vmem:[#allocation7 + $0x2c8] sm:$0xff]
    %v2674 = vld [vmem:[#allocation7 + $0x2e0] sm:$0xff]
    %v2675 = vld [vmem:[#allocation7 + $0x2f8] sm:$0xff]
    %v2676 = vld [vmem:[#allocation7 + $0x310] sm:$0xff]
    %v2677 = vld [vmem:[#allocation7 + $0x328] sm:$0xff]
    %v2678 = vld [vmem:[#allocation7 + $0x340] sm:$0xff]
    %v2679 = vld [vmem:[#allocation7 + $0x358] sm:$0xff]
    %v2680 = vld [vmem:[#allocation7 + $0x370] sm:$0xff]
    %v2681 = vld [vmem:[#allocation7 + $0x388] sm:$0xff]
    %v2682 = vld [vmem:[#allocation7 + $0x3a0] sm:$0xff]
    %v2683 = vld [vmem:[#allocation7 + $0x3b8] sm:$0xff]
    %v2684 = vld [vmem:[#allocation7 + $0x3d0] sm:$0xff]
    %v2685 = vld [vmem:[#allocation7 + $0x3e8] sm:$0xff]
    %v2686 = vld [vmem:[#allocation7 + $0x400] sm:$0xff]
    %v2687 = vld [vmem:[#allocation7 + $0x418] sm:$0xff]
    %v2688 = vld [vmem:[#allocation7 + $0x430] sm:$0xff]
    %v2689 = vld [vmem:[#allocation7 + $0x448] sm:$0xff]
    %v2690 = vld [vmem:[#allocation7 + $0x460] sm:$0xff]
    %v2691 = vld [vmem:[#allocation7 + $0x478] sm:$0xff]
    %v2692 = vld [vmem:[#allocation7 + $0x490] sm:$0xff]
    %v2693 = vld [vmem:[#allocation7 + $0x4a8] sm:$0xff]
    %v2694 = vld [vmem:[#allocation7 + $0x4c0] sm:$0xff]
    %v2695 = vld [vmem:[#allocation7 + $0x4d8] sm:$0xff]
    %v2696 = vld [vmem:[#allocation7 + $0x4f0] sm:$0xff]
    %v2697 = vld [vmem:[#allocation7 + $0x508] sm:$0xff]
    %v2698 = vld [vmem:[#allocation7 + $0x520] sm:$0xff]
    %v2699 = vld [vmem:[#allocation7 + $0x538] sm:$0xff]
    %v2700 = vld [vmem:[#allocation7 + $0x550] sm:$0xff]
    %v2701 = vld [vmem:[#allocation7 + $0x568] sm:$0xff]
    %v2702 = vld [vmem:[#allocation7 + $0x580] sm:$0xff]
    %v2703 = vld [vmem:[#allocation7 + $0x598] sm:$0xff]
    %v2704 = vld [vmem:[#allocation7 + $0x5b0] sm:$0xff]
    %v2705 = vld [vmem:[#allocation7 + $0x5c8] sm:$0xff]
    %v2706 = vld [vmem:[#allocation7 + $0x5e0] sm:$0xff]
    %v2707 = vld [vmem:[#allocation7 + $0x5f8] sm:$0xff]
    %v2772 = vunpack.c.l.b16 %v2644
    %v2773 = vunpack.c.h.b16 %v2644
    %v2774 = vunpack.c.l.b16 %v2645
    %v2775 = vunpack.c.h.b16 %v2645
    %v2776 = vunpack.c.l.b16 %v2646
    %v2777 = vunpack.c.h.b16 %v2646
    %v2778 = vunpack.c.l.b16 %v2647
    %v2779 = vunpack.c.h.b16 %v2647
    %v2780 = vunpack.c.l.b16 %v2648
    %v2781 = vunpack.c.h.b16 %v2648
    %v2782 = vunpack.c.l.b16 %v2649
    %v2783 = vunpack.c.h.b16 %v2649
    %v2784 = vunpack.c.l.b16 %v2650
    %v2785 = vunpack.c.h.b16 %v2650
    %v2786 = vunpack.c.l.b16 %v2651
    %v2787 = vunpack.c.h.b16 %v2651
    %v2788 = vunpack.c.l.b16 %v2652
    %v2789 = vunpack.c.h.b16 %v2652
    %v2790 = vunpack.c.l.b16 %v2653
    %v2791 = vunpack.c.h.b16 %v2653
    %v2792 = vunpack.c.l.b16 %v2654
    %v2793 = vunpack.c.h.b16 %v2654
    %v2794 = vunpack.c.l.b16 %v2655
    %v2795 = vunpack.c.h.b16 %v2655
    %v2796 = vunpack.c.l.b16 %v2656
    %v2797 = vunpack.c.h.b16 %v2656
    %v2798 = vunpack.c.l.b16 %v2657
    %v2799 = vunpack.c.h.b16 %v2657
    %v2800 = vunpack.c.l.b16 %v2658
    %v2801 = vunpack.c.h.b16 %v2658
    %v2802 = vunpack.c.l.b16 %v2659
    %v2803 = vunpack.c.h.b16 %v2659
    %v2804 = vunpack.c.l.b16 %v2660
    %v2805 = vunpack.c.h.b16 %v2660
    %v2806 = vunpack.c.l.b16 %v2661
    %v2807 = vunpack.c.h.b16 %v2661
    %v2808 = vunpack.c.l.b16 %v2662
    %v2809 = vunpack.c.h.b16 %v2662
    %v2810 = vunpack.c.l.b16 %v2663
    %v2811 = vunpack.c.h.b16 %v2663
    %v2812 = vunpack.c.l.b16 %v2664
    %v2813 = vunpack.c.h.b16 %v2664
    %v2814 = vunpack.c.l.b16 %v2665
    %v2815 = vunpack.c.h.b16 %v2665
    %v2816 = vunpack.c.l.b16 %v2666
    %v2817 = vunpack.c.h.b16 %v2666
    %v2818 = vunpack.c.l.b16 %v2667
    %v2819 = vunpack.c.h.b16 %v2667
    %v2820 = vunpack.c.l.b16 %v2668
    %v2821 = vunpack.c.h.b16 %v2668
    %v2822 = vunpack.c.l.b16 %v2669
    %v2823 = vunpack.c.h.b16 %v2669
    %v2824 = vunpack.c.l.b16 %v2670
    %v2825 = vunpack.c.h.b16 %v2670
    %v2826 = vunpack.c.l.b16 %v2671
    %v2827 = vunpack.c.h.b16 %v2671
    %v2828 = vunpack.c.l.b16 %v2672
    %v2829 = vunpack.c.h.b16 %v2672
    %v2830 = vunpack.c.l.b16 %v2673
    %v2831 = vunpack.c.h.b16 %v2673
    %v2832 = vunpack.c.l.b16 %v2674
    %v2833 = vunpack.c.h.b16 %v2674
    %v2834 = vunpack.c.l.b16 %v2675
    %v2835 = vunpack.c.h.b16 %v2675
    %v2836 = vunpack.c.l.b16 %v2676
    %v2837 = vunpack.c.h.b16 %v2676
    %v2838 = vunpack.c.l.b16 %v2677
    %v2839 = vunpack.c.h.b16 %v2677
    %v2840 = vunpack.c.l.b16 %v2678
    %v2841 = vunpack.c.h.b16 %v2678
    %v2842 = vunpack.c.l.b16 %v2679
    %v2843 = vunpack.c.h.b16 %v2679
    %v2844 = vunpack.c.l.b16 %v2680
    %v2845 = vunpack.c.h.b16 %v2680
    %v2846 = vunpack.c.l.b16 %v2681
    %v2847 = vunpack.c.h.b16 %v2681
    %v2848 = vunpack.c.l.b16 %v2682
    %v2849 = vunpack.c.h.b16 %v2682
    %v2850 = vunpack.c.l.b16 %v2683
    %v2851 = vunpack.c.h.b16 %v2683
    %v2852 = vunpack.c.l.b16 %v2684
    %v2853 = vunpack.c.h.b16 %v2684
    %v2854 = vunpack.c.l.b16 %v2685
    %v2855 = vunpack.c.h.b16 %v2685
    %v2856 = vunpack.c.l.b16 %v2686
    %v2857 = vunpack.c.h.b16 %v2686
    %v2858 = vunpack.c.l.b16 %v2687
    %v2859 = vunpack.c.h.b16 %v2687
    %v2860 = vunpack.c.l.b16 %v2688
    %v2861 = vunpack.c.h.b16 %v2688
    %v2862 = vunpack.c.l.b16 %v2689
    %v2863 = vunpack.c.h.b16 %v2689
    %v2864 = vunpack.c.l.b16 %v2690
    %v2865 = vunpack.c.h.b16 %v2690
    %v2866 = vunpack.c.l.b16 %v2691
    %v2867 = vunpack.c.h.b16 %v2691
    %v2868 = vunpack.c.l.b16 %v2692
    %v2869 = vunpack.c.h.b16 %v2692
    %v2870 = vunpack.c.l.b16 %v2693
    %v2871 = vunpack.c.h.b16 %v2693
    %v2872 = vunpack.c.l.b16 %v2694
    %v2873 = vunpack.c.h.b16 %v2694
    %v2874 = vunpack.c.l.b16 %v2695
    %v2875 = vunpack.c.h.b16 %v2695
    %v2876 = vunpack.c.l.b16 %v2696
    %v2877 = vunpack.c.h.b16 %v2696
    %v2878 = vunpack.c.l.b16 %v2697
    %v2879 = vunpack.c.h.b16 %v2697
    %v2880 = vunpack.c.l.b16 %v2698
    %v2881 = vunpack.c.h.b16 %v2698
    %v2882 = vunpack.c.l.b16 %v2699
    %v2883 = vunpack.c.h.b16 %v2699
    %v2884 = vunpack.c.l.b16 %v2700
    %v2885 = vunpack.c.h.b16 %v2700
    %v2886 = vunpack.c.l.b16 %v2701
    %v2887 = vunpack.c.h.b16 %v2701
    %v2888 = vunpack.c.l.b16 %v2702
    %v2889 = vunpack.c.h.b16 %v2702
    %v2890 = vunpack.c.l.b16 %v2703
    %v2891 = vunpack.c.h.b16 %v2703
    %v2892 = vunpack.c.l.b16 %v2704
    %v2893 = vunpack.c.h.b16 %v2704
    %v2894 = vunpack.c.l.b16 %v2705
    %v2895 = vunpack.c.h.b16 %v2705
    %v2896 = vunpack.c.l.b16 %v2706
    %v2897 = vunpack.c.h.b16 %v2706
    %v2898 = vunpack.c.l.b16 %v2707
    %v2899 = vunpack.c.h.b16 %v2707
    %v2900 = vpack.c.b16 %v2774, %v2772
    %v2901 = vpack.c.b16 %v2775, %v2773
    %v2902 = vpack.c.b16 %v2778, %v2776
    %v2903 = vpack.c.b16 %v2779, %v2777
    %v2904 = vpack.c.b16 %v2782, %v2780
    %v2905 = vpack.c.b16 %v2783, %v2781
    %v2906 = vpack.c.b16 %v2786, %v2784
    %v2907 = vpack.c.b16 %v2787, %v2785
    %v2908 = vpack.c.b16 %v2790, %v2788
    %v2909 = vpack.c.b16 %v2791, %v2789
    %v2910 = vpack.c.b16 %v2794, %v2792
    %v2911 = vpack.c.b16 %v2795, %v2793
    %v2912 = vpack.c.b16 %v2798, %v2796
    %v2913 = vpack.c.b16 %v2799, %v2797
    %v2914 = vpack.c.b16 %v2802, %v2800
    %v2915 = vpack.c.b16 %v2803, %v2801
    %v2916 = vpack.c.b16 %v2806, %v2804
    %v2917 = vpack.c.b16 %v2807, %v2805
    %v2918 = vpack.c.b16 %v2810, %v2808
    %v2919 = vpack.c.b16 %v2811, %v2809
    %v2920 = vpack.c.b16 %v2814, %v2812
    %v2921 = vpack.c.b16 %v2815, %v2813
    %v2922 = vpack.c.b16 %v2818, %v2816
    %v2923 = vpack.c.b16 %v2819, %v2817
    %v2924 = vpack.c.b16 %v2822, %v2820
    %v2925 = vpack.c.b16 %v2823, %v2821
    %v2926 = vpack.c.b16 %v2826, %v2824
    %v2927 = vpack.c.b16 %v2827, %v2825
    %v2928 = vpack.c.b16 %v2830, %v2828
    %v2929 = vpack.c.b16 %v2831, %v2829
    %v2930 = vpack.c.b16 %v2834, %v2832
    %v2931 = vpack.c.b16 %v2835, %v2833
    %v2932 = vpack.c.b16 %v2838, %v2836
    %v2933 = vpack.c.b16 %v2839, %v2837
    %v2934 = vpack.c.b16 %v2842, %v2840
    %v2935 = vpack.c.b16 %v2843, %v2841
    %v2936 = vpack.c.b16 %v2846, %v2844
    %v2937 = vpack.c.b16 %v2847, %v2845
    %v2938 = vpack.c.b16 %v2850, %v2848
    %v2939 = vpack.c.b16 %v2851, %v2849
    %v2940 = vpack.c.b16 %v2854, %v2852
    %v2941 = vpack.c.b16 %v2855, %v2853
    %v2942 = vpack.c.b16 %v2858, %v2856
    %v2943 = vpack.c.b16 %v2859, %v2857
    %v2944 = vpack.c.b16 %v2862, %v2860
    %v2945 = vpack.c.b16 %v2863, %v2861
    %v2946 = vpack.c.b16 %v2866, %v2864
    %v2947 = vpack.c.b16 %v2867, %v2865
    %v2948 = vpack.c.b16 %v2870, %v2868
    %v2949 = vpack.c.b16 %v2871, %v2869
    %v2950 = vpack.c.b16 %v2874, %v2872
    %v2951 = vpack.c.b16 %v2875, %v2873
    %v2952 = vpack.c.b16 %v2878, %v2876
    %v2953 = vpack.c.b16 %v2879, %v2877
    %v2954 = vpack.c.b16 %v2882, %v2880
    %v2955 = vpack.c.b16 %v2883, %v2881
    %v2956 = vpack.c.b16 %v2886, %v2884
    %v2957 = vpack.c.b16 %v2887, %v2885
    %v2958 = vpack.c.b16 %v2890, %v2888
    %v2959 = vpack.c.b16 %v2891, %v2889
    %v2960 = vpack.c.b16 %v2894, %v2892
    %v2961 = vpack.c.b16 %v2895, %v2893
    %v2962 = vpack.c.b16 %v2898, %v2896
    %v2963 = vpack.c.b16 %v2899, %v2897
    %3028 = vmatprep.subr.bf16.mxu0 %v2901
    %3029 = vmatpush1.bf16.msra.mxu0 %v2900
    %3030 = vmatprep.subr.bf16.mxu0 %v2903
    %3031 = vmatpush1.bf16.msra.mxu0 %v2902
    %3032 = vmatprep.subr.bf16.mxu0 %v2905
    %3033 = vmatpush1.bf16.msra.mxu0 %v2904
    %3034 = vmatprep.subr.bf16.mxu0 %v2907
    %3035 = vmatpush1.bf16.msra.mxu0 %v2906
    %3036 = vmatprep.subr.bf16.mxu0 %v2909
    %3037 = vmatpush1.bf16.msra.mxu0 %v2908
    %3038 = vmatprep.subr.bf16.mxu0 %v2911
    %3039 = vmatpush1.bf16.msra.mxu0 %v2910
    %3040 = vmatprep.subr.bf16.mxu0 %v2913
    %3041 = vmatpush1.bf16.msra.mxu0 %v2912
    %3042 = vmatprep.subr.bf16.mxu0 %v2915
    %3043 = vmatpush1.bf16.msra.mxu0 %v2914
    %3044 = vmatprep.subr.bf16.mxu0 %v2917
    %3045 = vmatpush1.bf16.msra.mxu0 %v2916
    %3046 = vmatprep.subr.bf16.mxu0 %v2919
    %3047 = vmatpush1.bf16.msra.mxu0 %v2918
    %3048 = vmatprep.subr.bf16.mxu0 %v2921
    %3049 = vmatpush1.bf16.msra.mxu0 %v2920
    %3050 = vmatprep.subr.bf16.mxu0 %v2923
    %3051 = vmatpush1.bf16.msra.mxu0 %v2922
    %3052 = vmatprep.subr.bf16.mxu0 %v2925
    %3053 = vmatpush1.bf16.msra.mxu0 %v2924
    %3054 = vmatprep.subr.bf16.mxu0 %v2927
    %3055 = vmatpush1.bf16.msra.mxu0 %v2926
    %3056 = vmatprep.subr.bf16.mxu0 %v2929
    %3057 = vmatpush1.bf16.msra.mxu0 %v2928
    %3058 = vmatprep.subr.bf16.mxu0 %v2931
    %3059 = vmatpush1.bf16.msra.mxu0 %v2930
    %3060 = vmatprep.mubr.bf16.mxu0 %v2641
    %3061 = vmatmul.mubr.bf16.gmra.mrb[0].mxu0 %v2640
    %v3062 = vpop.f32.mrb[0].mxu0
    %v3063 = vadd.f32 0.0, %v3062
    %v3064 = vpop.f32.mrb[0].mxu0
    %v3065 = vadd.f32 0.0, %v3064
    %v3066 = vpop.f32.mrb[0].mxu0
    %v3067 = vpop.f32.mrb[0].mxu0
    %3068 = vdwg.mxu0
    %3069 = vmatprep.subr.bf16.mxu0 %v2933
    %3070 = vmatpush1.bf16.msra.mxu0 %v2932
    %3071 = vmatprep.subr.bf16.mxu0 %v2935
    %3072 = vmatpush1.bf16.msra.mxu0 %v2934
    %3073 = vmatprep.subr.bf16.mxu0 %v2937
    %3074 = vmatpush1.bf16.msra.mxu0 %v2936
    %3075 = vmatprep.subr.bf16.mxu0 %v2939
    %3076 = vmatpush1.bf16.msra.mxu0 %v2938
    %3077 = vmatprep.subr.bf16.mxu0 %v2941
    %3078 = vmatpush1.bf16.msra.mxu0 %v2940
    %3079 = vmatprep.subr.bf16.mxu0 %v2943
    %3080 = vmatpush1.bf16.msra.mxu0 %v2942
    %3081 = vmatprep.subr.bf16.mxu0 %v2945
    %3082 = vmatpush1.bf16.msra.mxu0 %v2944
    %3083 = vmatprep.subr.bf16.mxu0 %v2947
    %3084 = vmatpush1.bf16.msra.mxu0 %v2946
    %3085 = vmatprep.subr.bf16.mxu0 %v2949
    %3086 = vmatpush1.bf16.msra.mxu0 %v2948
    %3087 = vmatprep.subr.bf16.mxu0 %v2951
    %3088 = vmatpush1.bf16.msra.mxu0 %v2950
    %3089 = vmatprep.subr.bf16.mxu0 %v2953
    %3090 = vmatpush1.bf16.msra.mxu0 %v2952
    %3091 = vmatprep.subr.bf16.mxu0 %v2955
    %3092 = vmatpush1.bf16.msra.mxu0 %v2954
    %3093 = vmatprep.subr.bf16.mxu0 %v2957
    %3094 = vmatpush1.bf16.msra.mxu0 %v2956
    %3095 = vmatprep.subr.bf16.mxu0 %v2959
    %3096 = vmatpush1.bf16.msra.mxu0 %v2958
    %3097 = vmatprep.subr.bf16.mxu0 %v2961
    %3098 = vmatpush1.bf16.msra.mxu0 %v2960
    %3099 = vmatprep.subr.bf16.mxu0 %v2963
    %3100 = vmatpush1.bf16.msra.mxu0 %v2962
    %3101 = vmatprep.mubr.bf16.mxu0 %v2643
    %3102 = vmatmul.mubr.bf16.gmra.mrb[0].mxu0 %v2642
    %v3103 = vpop.f32.mrb[0].mxu0
    %v3104 = vadd.f32 %v3063, %v3103
    %v3105 = vpop.f32.mrb[0].mxu0
    %v3106 = vadd.f32 %v3065, %v3105
    %v3107 = vpop.f32.mrb[0].mxu0
    %v3108 = vpop.f32.mrb[0].mxu0
    %3109 = vdwg.mxu0
    %v3110 = vld [vmem:[%s6 + $0x18] sm:$0xf]
    %v3111 = vrot.slane %v3104, 4
    %v3112 = vadd.f32 %v3104, %v3111
    %v3113 = vrot.slane %v3112, 2
    %v3114 = vadd.f32 %v3112, %v3113
    %v3115 = vrot.slane %v3114, 1
    %v3116 = vadd.f32 %v3114, %v3115
    %v3117 = vrot.slane %v3106, 4
    %v3118 = vadd.f32 %v3106, %v3117
    %v3119 = vrot.slane %v3118, 2
    %v3120 = vadd.f32 %v3118, %v3119
    %v3121 = vrot.slane %v3120, 1
    %v3122 = vadd.f32 %v3120, %v3121
    %v3123 = vmul.f32 %v3116, 0.5
    %v3124 = vmul.f32 %v3122, 0.5
    %v3125 = vmul.f32 %v3104, %v3104
    %v3126 = vmul.f32 %v3106, %v3106
    %v3127 = vrot.slane %v3125, 4
    %v3128 = vadd.f32 %v3125, %v3127
    %v3129 = vrot.slane %v3128, 2
    %v3130 = vadd.f32 %v3128, %v3129
    %v3131 = vrot.slane %v3130, 1
    %v3132 = vadd.f32 %v3130, %v3131
    %v3133 = vrot.slane %v3126, 4
    %v3134 = vadd.f32 %v3126, %v3133
    %v3135 = vrot.slane %v3134, 2
    %v3136 = vadd.f32 %v3134, %v3135
    %v3137 = vrot.slane %v3136, 1
    %v3138 = vadd.f32 %v3136, %v3137
    %v3139 = vmul.f32 %v3132, 0.5
    %v3140 = vmul.f32 %v3138, 0.5
    %v3141 = vmul.f32 %v3123, %v3123
    %v3142 = vmul.f32 %v3124, %v3124
    %v3143 = vsub.f32 %v3139, %v3141
    %v3144 = vsub.f32 %v3140, %v3142
    %v3145 = vmax.f32 %v3143, 0.0
    %v3146 = vmax.f32 %v3144, 0.0
    %v3147 = vsub.f32 %v3104, %v3123
    %v3148 = vsub.f32 %v3106, %v3124
    %v3149 = vadd.f32 %v3145, 1e-05
    %v3150 = vadd.f32 %v3146, 1e-05
    %v3151 = vrsqrt.pop %v3149
    %v3152 = vrsqrt.pop %v3150
    %v3153 = vmul.f32 %v3147, %v3151
    %v3154 = vmul.f32 %v3148, %v3152
    %v3156 = vlaneseq
    %v3157 = vshrl.u32 %v3156, 7
    %v3158 = vsub.s32 0, %v3157
    %v3159 = vrot.slane %v3110, %v3158
    %v3160 = vlaneseq
    %v3161 = vshrl.u32 %v3160, 7
    %v3162 = vsub.s32 2, %v3161
    %v3163 = vrot.slane %v3110, %v3162
    %v3166 = vlaneseq
    %v3167 = vshrl.u32 %v3166, 7
    %v3168 = vsub.s32 0, %v3167
    %v3169 = vrot.slane %v3159, %v3168
    %v3170 = vlaneseq
    %v3171 = vshrl.u32 %v3170, 7
    %v3172 = vsub.s32 0, %v3171
    %v3173 = vrot.slane %v3163, %v3172
    %v3174 = vmul.f32 %v3153, %v3169
    %v3175 = vmul.f32 %v3154, %v3173
    %v3176 = vlaneseq
    %v3177 = vshrl.u32 %v3176, 7
    %v3178 = vsub.s32 1, %v3177
    %v3179 = vrot.slane %v3110, %v3178
    %v3180 = vlaneseq
    %v3181 = vshrl.u32 %v3180, 7
    %v3182 = vsub.s32 3, %v3181
    %v3183 = vrot.slane %v3110, %v3182
    %v3186 = vlaneseq
    %v3187 = vshrl.u32 %v3186, 7
    %v3188 = vsub.s32 1, %v3187
    %v3189 = vrot.slane %v3179, %v3188
    %v3190 = vlaneseq
    %v3191 = vshrl.u32 %v3190, 7
    %v3192 = vsub.s32 1, %v3191
    %v3193 = vrot.slane %v3183, %v3192
    %v3194 = vadd.f32 %v3174, %v3189
    %v3195 = vadd.f32 %v3175, %v3193
    %v3196 = vmax.f32 %v3194, 0.0
    %v3197 = vmax.f32 %v3195, 0.0
    %v3198 = vmul.f32 %v3196, %v1525
    %v3199 = vmul.f32 %v3197, %v1525
    %v3200 = vpack.c.bf16 %v3198, %v3198
    %v3201 = vpack.c.bf16 %v3199, %v3199
    %v3202 = vld [vmem:[#allocation5 + $0x10] sm:$0xff]
    %v3203 = vld [vmem:[#allocation5 + $0x28] sm:$0xff]
    %v3204 = vld [vmem:[#allocation5 + $0x40] sm:$0xff]
    %v3205 = vld [vmem:[#allocation5 + $0x58] sm:$0xff]
    %v3206 = vld [vmem:[#allocation5 + $0x70] sm:$0xff]
    %v3207 = vld [vmem:[#allocation5 + $0x88] sm:$0xff]
    %v3208 = vld [vmem:[#allocation5 + $0xa0] sm:$0xff]
    %v3209 = vld [vmem:[#allocation5 + $0xb8] sm:$0xff]
    %v3210 = vld [vmem:[#allocation5 + $0xd0] sm:$0xff]
    %v3211 = vld [vmem:[#allocation5 + $0xe8] sm:$0xff]
    %v3212 = vld [vmem:[#allocation5 + $0x100] sm:$0xff]
    %v3213 = vld [vmem:[#allocation5 + $0x118] sm:$0xff]
    %v3214 = vld [vmem:[#allocation5 + $0x130] sm:$0xff]
    %v3215 = vld [vmem:[#allocation5 + $0x148] sm:$0xff]
    %v3216 = vld [vmem:[#allocation5 + $0x160] sm:$0xff]
    %v3217 = vld [vmem:[#allocation5 + $0x178] sm:$0xff]
    %v3218 = vld [vmem:[#allocation5 + $0x190] sm:$0xff]
    %v3219 = vld [vmem:[#allocation5 + $0x1a8] sm:$0xff]
    %v3220 = vld [vmem:[#allocation5 + $0x1c0] sm:$0xff]
    %v3221 = vld [vmem:[#allocation5 + $0x1d8] sm:$0xff]
    %v3222 = vld [vmem:[#allocation5 + $0x1f0] sm:$0xff]
    %v3223 = vld [vmem:[#allocation5 + $0x208] sm:$0xff]
    %v3224 = vld [vmem:[#allocation5 + $0x220] sm:$0xff]
    %v3225 = vld [vmem:[#allocation5 + $0x238] sm:$0xff]
    %v3226 = vld [vmem:[#allocation5 + $0x250] sm:$0xff]
    %v3227 = vld [vmem:[#allocation5 + $0x268] sm:$0xff]
    %v3228 = vld [vmem:[#allocation5 + $0x280] sm:$0xff]
    %v3229 = vld [vmem:[#allocation5 + $0x298] sm:$0xff]
    %v3230 = vld [vmem:[#allocation5 + $0x2b0] sm:$0xff]
    %v3231 = vld [vmem:[#allocation5 + $0x2c8] sm:$0xff]
    %v3232 = vld [vmem:[#allocation5 + $0x2e0] sm:$0xff]
    %v3233 = vld [vmem:[#allocation5 + $0x2f8] sm:$0xff]
    %s3234 = scalar_lea.vmem %s6, 28
    %v3235 = vld [vmem:[%s3234] ss:$2 sm:$0x3]
    %v3237 = vlaneseq
    %v3238 = vshrl.u32 %v3237, 7
    %v3239 = vsub.s32 0, %v3238
    %v3240 = vrot.slane %v3235, %v3239
    %v3241 = vlaneseq
    %v3242 = vshrl.u32 %v3241, 7
    %v3243 = vsub.s32 1, %v3242
    %v3244 = vrot.slane %v3235, %v3243
    %v3279 = vunpack.c.l.b16 %v3202
    %v3280 = vunpack.c.h.b16 %v3202
    %v3281 = vunpack.c.l.b16 %v3203
    %v3282 = vunpack.c.h.b16 %v3203
    %v3283 = vunpack.c.l.b16 %v3204
    %v3284 = vunpack.c.h.b16 %v3204
    %v3285 = vunpack.c.l.b16 %v3205
    %v3286 = vunpack.c.h.b16 %v3205
    %v3287 = vunpack.c.l.b16 %v3206
    %v3288 = vunpack.c.h.b16 %v3206
    %v3289 = vunpack.c.l.b16 %v3207
    %v3290 = vunpack.c.h.b16 %v3207
    %v3291 = vunpack.c.l.b16 %v3208
    %v3292 = vunpack.c.h.b16 %v3208
    %v3293 = vunpack.c.l.b16 %v3209
    %v3294 = vunpack.c.h.b16 %v3209
    %v3295 = vunpack.c.l.b16 %v3210
    %v3296 = vunpack.c.h.b16 %v3210
    %v3297 = vunpack.c.l.b16 %v3211
    %v3298 = vunpack.c.h.b16 %v3211
    %v3299 = vunpack.c.l.b16 %v3212
    %v3300 = vunpack.c.h.b16 %v3212
    %v3301 = vunpack.c.l.b16 %v3213
    %v3302 = vunpack.c.h.b16 %v3213
    %v3303 = vunpack.c.l.b16 %v3214
    %v3304 = vunpack.c.h.b16 %v3214
    %v3305 = vunpack.c.l.b16 %v3215
    %v3306 = vunpack.c.h.b16 %v3215
    %v3307 = vunpack.c.l.b16 %v3216
    %v3308 = vunpack.c.h.b16 %v3216
    %v3309 = vunpack.c.l.b16 %v3217
    %v3310 = vunpack.c.h.b16 %v3217
    %v3311 = vunpack.c.l.b16 %v3218
    %v3312 = vunpack.c.h.b16 %v3218
    %v3313 = vunpack.c.l.b16 %v3219
    %v3314 = vunpack.c.h.b16 %v3219
    %v3315 = vunpack.c.l.b16 %v3220
    %v3316 = vunpack.c.h.b16 %v3220
    %v3317 = vunpack.c.l.b16 %v3221
    %v3318 = vunpack.c.h.b16 %v3221
    %v3319 = vunpack.c.l.b16 %v3222
    %v3320 = vunpack.c.h.b16 %v3222
    %v3321 = vunpack.c.l.b16 %v3223
    %v3322 = vunpack.c.h.b16 %v3223
    %v3323 = vunpack.c.l.b16 %v3224
    %v3324 = vunpack.c.h.b16 %v3224
    %v3325 = vunpack.c.l.b16 %v3225
    %v3326 = vunpack.c.h.b16 %v3225
    %v3327 = vunpack.c.l.b16 %v3226
    %v3328 = vunpack.c.h.b16 %v3226
    %v3329 = vunpack.c.l.b16 %v3227
    %v3330 = vunpack.c.h.b16 %v3227
    %v3331 = vunpack.c.l.b16 %v3228
    %v3332 = vunpack.c.h.b16 %v3228
    %v3333 = vunpack.c.l.b16 %v3229
    %v3334 = vunpack.c.h.b16 %v3229
    %v3335 = vunpack.c.l.b16 %v3230
    %v3336 = vunpack.c.h.b16 %v3230
    %v3337 = vunpack.c.l.b16 %v3231
    %v3338 = vunpack.c.h.b16 %v3231
    %v3339 = vunpack.c.l.b16 %v3232
    %v3340 = vunpack.c.h.b16 %v3232
    %v3341 = vunpack.c.l.b16 %v3233
    %v3342 = vunpack.c.h.b16 %v3233
    %v3343 = vpack.c.b16 %v3281, %v3279
    %v3344 = vpack.c.b16 %v3282, %v3280
    %v3345 = vpack.c.b16 %v3285, %v3283
    %v3346 = vpack.c.b16 %v3286, %v3284
    %v3347 = vpack.c.b16 %v3289, %v3287
    %v3348 = vpack.c.b16 %v3290, %v3288
    %v3349 = vpack.c.b16 %v3293, %v3291
    %v3350 = vpack.c.b16 %v3294, %v3292
    %v3351 = vpack.c.b16 %v3297, %v3295
    %v3352 = vpack.c.b16 %v3298, %v3296
    %v3353 = vpack.c.b16 %v3301, %v3299
    %v3354 = vpack.c.b16 %v3302, %v3300
    %v3355 = vpack.c.b16 %v3305, %v3303
    %v3356 = vpack.c.b16 %v3306, %v3304
    %v3357 = vpack.c.b16 %v3309, %v3307
    %v3358 = vpack.c.b16 %v3310, %v3308
    %v3359 = vpack.c.b16 %v3313, %v3311
    %v3360 = vpack.c.b16 %v3314, %v3312
    %v3361 = vpack.c.b16 %v3317, %v3315
    %v3362 = vpack.c.b16 %v3318, %v3316
    %v3363 = vpack.c.b16 %v3321, %v3319
    %v3364 = vpack.c.b16 %v3322, %v3320
    %v3365 = vpack.c.b16 %v3325, %v3323
    %v3366 = vpack.c.b16 %v3326, %v3324
    %v3367 = vpack.c.b16 %v3329, %v3327
    %v3368 = vpack.c.b16 %v3330, %v3328
    %v3369 = vpack.c.b16 %v3333, %v3331
    %v3370 = vpack.c.b16 %v3334, %v3332
    %v3371 = vpack.c.b16 %v3337, %v3335
    %v3372 = vpack.c.b16 %v3338, %v3336
    %v3373 = vpack.c.b16 %v3341, %v3339
    %v3374 = vpack.c.b16 %v3342, %v3340
    %3407 = vmatprep.subr.bf16.mxu0 %v3344
    %3408 = vmatpush1.bf16.msra.mxu0 %v3343
    %3409 = vmatprep.subr.bf16.mxu0 %v3346
    %3410 = vmatpush1.bf16.msra.mxu0 %v3345
    %3411 = vmatprep.subr.bf16.mxu0 %v3348
    %3412 = vmatpush1.bf16.msra.mxu0 %v3347
    %3413 = vmatprep.subr.bf16.mxu0 %v3350
    %3414 = vmatpush1.bf16.msra.mxu0 %v3349
    %3415 = vmatprep.subr.bf16.mxu0 %v3352
    %3416 = vmatpush1.bf16.msra.mxu0 %v3351
    %3417 = vmatprep.subr.bf16.mxu0 %v3354
    %3418 = vmatpush1.bf16.msra.mxu0 %v3353
    %3419 = vmatprep.subr.bf16.mxu0 %v3356
    %3420 = vmatpush1.bf16.msra.mxu0 %v3355
    %3421 = vmatprep.subr.bf16.mxu0 %v3358
    %3422 = vmatpush1.bf16.msra.mxu0 %v3357
    %3423 = vmatprep.subr.bf16.mxu0 %v3360
    %3424 = vmatpush1.bf16.msra.mxu0 %v3359
    %3425 = vmatprep.subr.bf16.mxu0 %v3362
    %3426 = vmatpush1.bf16.msra.mxu0 %v3361
    %3427 = vmatprep.subr.bf16.mxu0 %v3364
    %3428 = vmatpush1.bf16.msra.mxu0 %v3363
    %3429 = vmatprep.subr.bf16.mxu0 %v3366
    %3430 = vmatpush1.bf16.msra.mxu0 %v3365
    %3431 = vmatprep.subr.bf16.mxu0 %v3368
    %3432 = vmatpush1.bf16.msra.mxu0 %v3367
    %3433 = vmatprep.subr.bf16.mxu0 %v3370
    %3434 = vmatpush1.bf16.msra.mxu0 %v3369
    %3435 = vmatprep.subr.bf16.mxu0 %v3372
    %3436 = vmatpush1.bf16.msra.mxu0 %v3371
    %3437 = vmatprep.subr.bf16.mxu0 %v3374
    %3438 = vmatpush1.bf16.msra.mxu0 %v3373
    %3439 = vmatprep.mubr.bf16.mxu0 %v3201
    %3440 = vmatmul.mubr.bf16.gmra.mrb[0].mxu0 %v3200
    %v3441 = vpop.f32.mrb[0].mxu0
    %v3442 = vadd.f32 %v3240, %v3441
    %v3443 = vpop.f32.mrb[0].mxu0
    %v3444 = vadd.f32 %v3244, %v3443
    %v3445 = vpop.f32.mrb[0].mxu0
    %v3446 = vpop.f32.mrb[0].mxu0
    %3447 = vdwg.mxu0
    %v3448 = vmul.f32 %v3444, 0.5
    %v3449 = vmul.f32 %v3448, 1.442695
    %v3450 = vpow.pop %v3449
    %v3451 = vld [vmem:[%s1] sm:$0xff]
    %v3452 = vmul.f32 %v3450, %v3451
    %v3453 = vadd.f32 %v3442, %v3452
    %3454 = vst [vmem:[#allocation9] sm:$0xff] %v3453
    %v3455 = vpack.c.bf16 %v3453, %v3453
    %v3456 = vld [vmem:[#allocation2 + $0xc] sm:$0xf]
    %v3457 = vld [vmem:[#allocation2 + $0x30] sm:$0xf]
    %v3458 = vld [vmem:[#allocation2 + $0x54] sm:$0xf]
    %v3459 = vld [vmem:[#allocation2 + $0x78] sm:$0xf]
    %v3460 = vld [vmem:[#allocation2 + $0x9c] sm:$0xf]
    %v3461 = vld [vmem:[#allocation2 + $0xc0] sm:$0xf]
    %v3462 = vld [vmem:[#allocation2 + $0xe4] sm:$0xf]
    %v3463 = vld [vmem:[#allocation2 + $0x108] sm:$0xf]
    %v3464 = vld [vmem:[#allocation2 + $0x12c] sm:$0xf]
    %v3465 = vld [vmem:[#allocation2 + $0x150] sm:$0xf]
    %v3466 = vld [vmem:[#allocation2 + $0x174] sm:$0xf]
    %v3467 = vld [vmem:[#allocation2 + $0x198] sm:$0xf]
    %v3468 = vld [vmem:[#allocation2 + $0x1bc] sm:$0xf]
    %v3469 = vld [vmem:[#allocation2 + $0x1e0] sm:$0xf]
    %v3470 = vld [vmem:[#allocation2 + $0x204] sm:$0xf]
    %v3471 = vld [vmem:[#allocation2 + $0x228] sm:$0xf]
    %v3472 = vld [vmem:[%s6 + $0x20] sm:$0x1]
    %v3473 = vlaneseq
    %v3474 = vshrl.u32 %v3473, 7
    %v3475 = vsub.s32 0, %v3474
    %v3476 = vrot.slane %v3472, %v3475
    %v3493 = vunpack.c.l.b16 %v3456
    %v3494 = vunpack.c.l.b16 %v3457
    %v3495 = vunpack.c.l.b16 %v3458
    %v3496 = vunpack.c.l.b16 %v3459
    %v3497 = vunpack.c.l.b16 %v3460
    %v3498 = vunpack.c.l.b16 %v3461
    %v3499 = vunpack.c.l.b16 %v3462
    %v3500 = vunpack.c.l.b16 %v3463
    %v3501 = vunpack.c.l.b16 %v3464
    %v3502 = vunpack.c.l.b16 %v3465
    %v3503 = vunpack.c.l.b16 %v3466
    %v3504 = vunpack.c.l.b16 %v3467
    %v3505 = vunpack.c.l.b16 %v3468
    %v3506 = vunpack.c.l.b16 %v3469
    %v3507 = vunpack.c.l.b16 %v3470
    %v3508 = vunpack.c.l.b16 %v3471
    %v3509 = vpack.c.b16 %v3494, %v3493
    %v3510 = vpack.c.b16 %v3496, %v3495
    %v3511 = vpack.c.b16 %v3498, %v3497
    %v3512 = vpack.c.b16 %v3500, %v3499
    %v3513 = vpack.c.b16 %v3502, %v3501
    %v3514 = vpack.c.b16 %v3504, %v3503
    %v3515 = vpack.c.b16 %v3506, %v3505
    %v3516 = vpack.c.b16 %v3508, %v3507
    %3525 = vmatprep.subr.bf16.mxu0 0
    %3526 = vmatpush1.bf16.msra.mxu0 %v3509
    %3527 = vmatprep.subr.bf16.mxu0 0
    %3528 = vmatpush1.bf16.msra.mxu0 %v3510
    %3529 = vmatprep.subr.bf16.mxu0 0
    %3530 = vmatpush1.bf16.msra.mxu0 %v3511
    %3531 = vmatprep.subr.bf16.mxu0 0
    %3532 = vmatpush1.bf16.msra.mxu0 %v3512
    %3533 = vmatprep.subr.bf16.mxu0 0
    %3534 = vmatpush1.bf16.msra.mxu0 %v3513
    %3535 = vmatprep.subr.bf16.mxu0 0
    %3536 = vmatpush1.bf16.msra.mxu0 %v3514
    %3537 = vmatprep.subr.bf16.mxu0 0
    %3538 = vmatpush1.bf16.msra.mxu0 %v3515
    %3539 = vmatprep.subr.bf16.mxu0 0
    %3540 = vmatpush1.bf16.msra.mxu0 %v3516
    %3541 = vmatprep.subr.bf16.mxu0 0
    %3542 = vmatpush1.bf16.msra.mxu0 0
    %3543 = vmatprep.subr.bf16.mxu0 0
    %3544 = vmatpush1.bf16.msra.mxu0 0
    %3545 = vmatprep.subr.bf16.mxu0 0
    %3546 = vmatpush1.bf16.msra.mxu0 0
    %3547 = vmatprep.subr.bf16.mxu0 0
    %3548 = vmatpush1.bf16.msra.mxu0 0
    %3549 = vmatprep.subr.bf16.mxu0 0
    %3550 = vmatpush1.bf16.msra.mxu0 0
    %3551 = vmatprep.subr.bf16.mxu0 0
    %3552 = vmatpush1.bf16.msra.mxu0 0
    %3553 = vmatprep.subr.bf16.mxu0 0
    %3554 = vmatpush1.bf16.msra.mxu0 0
    %3555 = vmatprep.subr.bf16.mxu0 0
    %3556 = vmatpush1.bf16.msra.mxu0 0
    %3557 = vmatprep.mubr.bf16.mxu0 0
    %3558 = vmatmul.mubr.bf16.gmra.mrb[0].mxu0 %v3455
    %v3559 = vpop.f32.mrb[0].mxu0
    %v3560 = vadd.f32 %v3476, %v3559
    %v3561 = vpop.f32.mrb[0].mxu0
    %v3562 = vpop.f32.mrb[0].mxu0
    %v3563 = vpop.f32.mrb[0].mxu0
    %3564 = vdwg.mxu0
    %v3565 = vmax.f32 %v3560, 0.0
    %v3566 = vpack.c.bf16 %v3565, %v3565
    %v3567 = vld [vmem:[#allocation2 + $0x10] sm:$0xf]
    %v3568 = vld [vmem:[#allocation2 + $0x34] sm:$0xf]
    %v3569 = vld [vmem:[#allocation2 + $0x58] sm:$0xf]
    %v3570 = vld [vmem:[#allocation2 + $0x7c] sm:$0xf]
    %v3571 = vld [vmem:[#allocation2 + $0xa0] sm:$0xf]
    %v3572 = vld [vmem:[#allocation2 + $0xc4] sm:$0xf]
    %v3573 = vld [vmem:[#allocation2 + $0xe8] sm:$0xf]
    %v3574 = vld [vmem:[#allocation2 + $0x10c] sm:$0xf]
    %v3575 = vld [vmem:[#allocation2 + $0x130] sm:$0xf]
    %v3576 = vld [vmem:[#allocation2 + $0x154] sm:$0xf]
    %v3577 = vld [vmem:[#allocation2 + $0x178] sm:$0xf]
    %v3578 = vld [vmem:[#allocation2 + $0x19c] sm:$0xf]
    %v3579 = vld [vmem:[#allocation2 + $0x1c0] sm:$0xf]
    %v3580 = vld [vmem:[#allocation2 + $0x1e4] sm:$0xf]
    %v3581 = vld [vmem:[#allocation2 + $0x208] sm:$0xf]
    %v3582 = vld [vmem:[#allocation2 + $0x22c] sm:$0xf]
    %v3583 = vld [vmem:[%s6 + $0x22] sm:$0x1]
    %v3584 = vlaneseq
    %v3585 = vshrl.u32 %v3584, 7
    %v3586 = vsub.s32 0, %v3585
    %v3587 = vrot.slane %v3583, %v3586
    %v3604 = vunpack.c.l.b16 %v3567
    %v3605 = vunpack.c.l.b16 %v3568
    %v3606 = vunpack.c.l.b16 %v3569
    %v3607 = vunpack.c.l.b16 %v3570
    %v3608 = vunpack.c.l.b16 %v3571
    %v3609 = vunpack.c.l.b16 %v3572
    %v3610 = vunpack.c.l.b16 %v3573
    %v3611 = vunpack.c.l.b16 %v3574
    %v3612 = vunpack.c.l.b16 %v3575
    %v3613 = vunpack.c.l.b16 %v3576
    %v3614 = vunpack.c.l.b16 %v3577
    %v3615 = vunpack.c.l.b16 %v3578
    %v3616 = vunpack.c.l.b16 %v3579
    %v3617 = vunpack.c.l.b16 %v3580
    %v3618 = vunpack.c.l.b16 %v3581
    %v3619 = vunpack.c.l.b16 %v3582
    %v3620 = vpack.c.b16 %v3605, %v3604
    %v3621 = vpack.c.b16 %v3607, %v3606
    %v3622 = vpack.c.b16 %v3609, %v3608
    %v3623 = vpack.c.b16 %v3611, %v3610
    %v3624 = vpack.c.b16 %v3613, %v3612
    %v3625 = vpack.c.b16 %v3615, %v3614
    %v3626 = vpack.c.b16 %v3617, %v3616
    %v3627 = vpack.c.b16 %v3619, %v3618
    %3636 = vmatprep.subr.bf16.mxu0 0
    %3637 = vmatpush1.bf16.msra.mxu0 %v3620
    %3638 = vmatprep.subr.bf16.mxu0 0
    %3639 = vmatpush1.bf16.msra.mxu0 %v3621
    %3640 = vmatprep.subr.bf16.mxu0 0
    %3641 = vmatpush1.bf16.msra.mxu0 %v3622
    %3642 = vmatprep.subr.bf16.mxu0 0
    %3643 = vmatpush1.bf16.msra.mxu0 %v3623
    %3644 = vmatprep.subr.bf16.mxu0 0
    %3645 = vmatpush1.bf16.msra.mxu0 %v3624
    %3646 = vmatprep.subr.bf16.mxu0 0
    %3647 = vmatpush1.bf16.msra.mxu0 %v3625
    %3648 = vmatprep.subr.bf16.mxu0 0
    %3649 = vmatpush1.bf16.msra.mxu0 %v3626
    %3650 = vmatprep.subr.bf16.mxu0 0
    %3651 = vmatpush1.bf16.msra.mxu0 %v3627
    %3652 = vmatprep.subr.bf16.mxu0 0
    %3653 = vmatpush1.bf16.msra.mxu0 0
    %3654 = vmatprep.subr.bf16.mxu0 0
    %3655 = vmatpush1.bf16.msra.mxu0 0
    %3656 = vmatprep.subr.bf16.mxu0 0
    %3657 = vmatpush1.bf16.msra.mxu0 0
    %3658 = vmatprep.subr.bf16.mxu0 0
    %3659 = vmatpush1.bf16.msra.mxu0 0
    %3660 = vmatprep.subr.bf16.mxu0 0
    %3661 = vmatpush1.bf16.msra.mxu0 0
    %3662 = vmatprep.subr.bf16.mxu0 0
    %3663 = vmatpush1.bf16.msra.mxu0 0
    %3664 = vmatprep.subr.bf16.mxu0 0
    %3665 = vmatpush1.bf16.msra.mxu0 0
    %3666 = vmatprep.subr.bf16.mxu0 0
    %3667 = vmatpush1.bf16.msra.mxu0 0
    %3668 = vmatprep.mubr.bf16.mxu0 0
    %3669 = vmatmul.mubr.bf16.gmra.mrb[0].mxu0 %v3566
    %v3670 = vpop.f32.mrb[0].mxu0
    %v3671 = vadd.f32 %v3587, %v3670
    %v3672 = vpop.f32.mrb[0].mxu0
    %v3673 = vpop.f32.mrb[0].mxu0
    %v3674 = vpop.f32.mrb[0].mxu0
    %3675 = vdwg.mxu0
    %v3676 = vpack.c.bf16 %v3671, %v3671
    %v3677 = vld [vmem:[#allocation2 + $0x14] sm:$0xff]
    %v3678 = vld [vmem:[#allocation2 + $0x1c] sm:$0xff]
    %v3679 = vld [vmem:[#allocation2 + $0x38] sm:$0xff]
    %v3680 = vld [vmem:[#allocation2 + $0x40] sm:$0xff]
    %v3681 = vld [vmem:[#allocation2 + $0x5c] sm:$0xff]
    %v3682 = vld [vmem:[#allocation2 + $0x64] sm:$0xff]
    %v3683 = vld [vmem:[#allocation2 + $0x80] sm:$0xff]
    %v3684 = vld [vmem:[#allocation2 + $0x88] sm:$0xff]
    %v3685 = vld [vmem:[#allocation2 + $0xa4] sm:$0xff]
    %v3686 = vld [vmem:[#allocation2 + $0xac] sm:$0xff]
    %v3687 = vld [vmem:[#allocation2 + $0xc8] sm:$0xff]
    %v3688 = vld [vmem:[#allocation2 + $0xd0] sm:$0xff]
    %v3689 = vld [vmem:[#allocation2 + $0xec] sm:$0xff]
    %v3690 = vld [vmem:[#allocation2 + $0xf4] sm:$0xff]
    %v3691 = vld [vmem:[#allocation2 + $0x110] sm:$0xff]
    %v3692 = vld [vmem:[#allocation2 + $0x118] sm:$0xff]
    %v3693 = vld [vmem:[#allocation2 + $0x134] sm:$0xff]
    %v3694 = vld [vmem:[#allocation2 + $0x13c] sm:$0xff]
    %v3695 = vld [vmem:[#allocation2 + $0x158] sm:$0xff]
    %v3696 = vld [vmem:[#allocation2 + $0x160] sm:$0xff]
    %v3697 = vld [vmem:[#allocation2 + $0x17c] sm:$0xff]
    %v3698 = vld [vmem:[#allocation2 + $0x184] sm:$0xff]
    %v3699 = vld [vmem:[#allocation2 + $0x1a0] sm:$0xff]
    %v3700 = vld [vmem:[#allocation2 + $0x1a8] sm:$0xff]
    %v3701 = vld [vmem:[#allocation2 + $0x1c4] sm:$0xff]
    %v3702 = vld [vmem:[#allocation2 + $0x1cc] sm:$0xff]
    %v3703 = vld [vmem:[#allocation2 + $0x1e8] sm:$0xff]
    %v3704 = vld [vmem:[#allocation2 + $0x1f0] sm:$0xff]
    %v3705 = vld [vmem:[#allocation2 + $0x20c] sm:$0xff]
    %v3706 = vld [vmem:[#allocation2 + $0x214] sm:$0xff]
    %v3707 = vld [vmem:[#allocation2 + $0x230] sm:$0xff]
    %v3708 = vld [vmem:[#allocation2 + $0x238] sm:$0xff]
    %s3709 = scalar_lea.vmem %s6, 36
    %v3710 = vld [vmem:[%s3709] ss:$2 sm:$0xf]
    %v3712 = vlaneseq
    %v3713 = vshrl.u32 %v3712, 7
    %v3714 = vsub.s32 0, %v3713
    %v3715 = vrot.slane %v3710, %v3714
    %v3716 = vlaneseq
    %v3717 = vshrl.u32 %v3716, 7
    %v3718 = vsub.s32 1, %v3717
    %v3719 = vrot.slane %v3710, %v3718
    %v3720 = vlaneseq
    %v3721 = vshrl.u32 %v3720, 7
    %v3722 = vsub.s32 2, %v3721
    %v3723 = vrot.slane %v3710, %v3722
    %v3724 = vlaneseq
    %v3725 = vshrl.u32 %v3724, 7
    %v3726 = vsub.s32 3, %v3725
    %v3727 = vrot.slane %v3710, %v3726
    %v3764 = vunpack.c.l.b16 %v3677
    %v3765 = vunpack.c.h.b16 %v3677
    %v3766 = vunpack.c.l.b16 %v3678
    %v3767 = vunpack.c.h.b16 %v3678
    %v3768 = vunpack.c.l.b16 %v3679
    %v3769 = vunpack.c.h.b16 %v3679
    %v3770 = vunpack.c.l.b16 %v3680
    %v3771 = vunpack.c.h.b16 %v3680
    %v3772 = vunpack.c.l.b16 %v3681
    %v3773 = vunpack.c.h.b16 %v3681
    %v3774 = vunpack.c.l.b16 %v3682
    %v3775 = vunpack.c.h.b16 %v3682
    %v3776 = vunpack.c.l.b16 %v3683
    %v3777 = vunpack.c.h.b16 %v3683
    %v3778 = vunpack.c.l.b16 %v3684
    %v3779 = vunpack.c.h.b16 %v3684
    %v3780 = vunpack.c.l.b16 %v3685
    %v3781 = vunpack.c.h.b16 %v3685
    %v3782 = vunpack.c.l.b16 %v3686
    %v3783 = vunpack.c.h.b16 %v3686
    %v3784 = vunpack.c.l.b16 %v3687
    %v3785 = vunpack.c.h.b16 %v3687
    %v3786 = vunpack.c.l.b16 %v3688
    %v3787 = vunpack.c.h.b16 %v3688
    %v3788 = vunpack.c.l.b16 %v3689
    %v3789 = vunpack.c.h.b16 %v3689
    %v3790 = vunpack.c.l.b16 %v3690
    %v3791 = vunpack.c.h.b16 %v3690
    %v3792 = vunpack.c.l.b16 %v3691
    %v3793 = vunpack.c.h.b16 %v3691
    %v3794 = vunpack.c.l.b16 %v3692
    %v3795 = vunpack.c.h.b16 %v3692
    %v3796 = vunpack.c.l.b16 %v3693
    %v3797 = vunpack.c.h.b16 %v3693
    %v3798 = vunpack.c.l.b16 %v3694
    %v3799 = vunpack.c.h.b16 %v3694
    %v3800 = vunpack.c.l.b16 %v3695
    %v3801 = vunpack.c.h.b16 %v3695
    %v3802 = vunpack.c.l.b16 %v3696
    %v3803 = vunpack.c.h.b16 %v3696
    %v3804 = vunpack.c.l.b16 %v3697
    %v3805 = vunpack.c.h.b16 %v3697
    %v3806 = vunpack.c.l.b16 %v3698
    %v3807 = vunpack.c.h.b16 %v3698
    %v3808 = vunpack.c.l.b16 %v3699
    %v3809 = vunpack.c.h.b16 %v3699
    %v3810 = vunpack.c.l.b16 %v3700
    %v3811 = vunpack.c.h.b16 %v3700
    %v3812 = vunpack.c.l.b16 %v3701
    %v3813 = vunpack.c.h.b16 %v3701
    %v3814 = vunpack.c.l.b16 %v3702
    %v3815 = vunpack.c.h.b16 %v3702
    %v3816 = vunpack.c.l.b16 %v3703
    %v3817 = vunpack.c.h.b16 %v3703
    %v3818 = vunpack.c.l.b16 %v3704
    %v3819 = vunpack.c.h.b16 %v3704
    %v3820 = vunpack.c.l.b16 %v3705
    %v3821 = vunpack.c.h.b16 %v3705
    %v3822 = vunpack.c.l.b16 %v3706
    %v3823 = vunpack.c.h.b16 %v3706
    %v3824 = vunpack.c.l.b16 %v3707
    %v3825 = vunpack.c.h.b16 %v3707
    %v3826 = vunpack.c.l.b16 %v3708
    %v3827 = vunpack.c.h.b16 %v3708
    %v3828 = vpack.c.b16 %v3768, %v3764
    %v3829 = vpack.c.b16 %v3769, %v3765
    %v3830 = vpack.c.b16 %v3770, %v3766
    %v3831 = vpack.c.b16 %v3771, %v3767
    %v3832 = vpack.c.b16 %v3776, %v3772
    %v3833 = vpack.c.b16 %v3777, %v3773
    %v3834 = vpack.c.b16 %v3778, %v3774
    %v3835 = vpack.c.b16 %v3779, %v3775
    %v3836 = vpack.c.b16 %v3784, %v3780
    %v3837 = vpack.c.b16 %v3785, %v3781
    %v3838 = vpack.c.b16 %v3786, %v3782
    %v3839 = vpack.c.b16 %v3787, %v3783
    %v3840 = vpack.c.b16 %v3792, %v3788
    %v3841 = vpack.c.b16 %v3793, %v3789
    %v3842 = vpack.c.b16 %v3794, %v3790
    %v3843 = vpack.c.b16 %v3795, %v3791
    %v3844 = vpack.c.b16 %v3800, %v3796
    %v3845 = vpack.c.b16 %v3801, %v3797
    %v3846 = vpack.c.b16 %v3802, %v3798
    %v3847 = vpack.c.b16 %v3803, %v3799
    %v3848 = vpack.c.b16 %v3808, %v3804
    %v3849 = vpack.c.b16 %v3809, %v3805
    %v3850 = vpack.c.b16 %v3810, %v3806
    %v3851 = vpack.c.b16 %v3811, %v3807
    %v3852 = vpack.c.b16 %v3816, %v3812
    %v3853 = vpack.c.b16 %v3817, %v3813
    %v3854 = vpack.c.b16 %v3818, %v3814
    %v3855 = vpack.c.b16 %v3819, %v3815
    %v3856 = vpack.c.b16 %v3824, %v3820
    %v3857 = vpack.c.b16 %v3825, %v3821
    %v3858 = vpack.c.b16 %v3826, %v3822
    %v3859 = vpack.c.b16 %v3827, %v3823
    %3892 = vmatprep.subr.bf16.mxu0 %v3829
    %3893 = vmatpush1.bf16.msra.mxu0 %v3828
    %3894 = vmatprep.subr.bf16.mxu0 %v3833
    %3895 = vmatpush1.bf16.msra.mxu0 %v3832
    %3896 = vmatprep.subr.bf16.mxu0 %v3837
    %3897 = vmatpush1.bf16.msra.mxu0 %v3836
    %3898 = vmatprep.subr.bf16.mxu0 %v3841
    %3899 = vmatpush1.bf16.msra.mxu0 %v3840
    %3900 = vmatprep.subr.bf16.mxu0 %v3845
    %3901 = vmatpush1.bf16.msra.mxu0 %v3844
    %3902 = vmatprep.subr.bf16.mxu0 %v3849
    %3903 = vmatpush1.bf16.msra.mxu0 %v3848
    %3904 = vmatprep.subr.bf16.mxu0 %v3853
    %3905 = vmatpush1.bf16.msra.mxu0 %v3852
    %3906 = vmatprep.subr.bf16.mxu0 %v3857
    %3907 = vmatpush1.bf16.msra.mxu0 %v3856
    %3908 = vmatprep.subr.bf16.mxu0 0
    %3909 = vmatpush1.bf16.msra.mxu0 0
    %3910 = vmatprep.subr.bf16.mxu0 0
    %3911 = vmatpush1.bf16.msra.mxu0 0
    %3912 = vmatprep.subr.bf16.mxu0 0
    %3913 = vmatpush1.bf16.msra.mxu0 0
    %3914 = vmatprep.subr.bf16.mxu0 0
    %3915 = vmatpush1.bf16.msra.mxu0 0
    %3916 = vmatprep.subr.bf16.mxu0 0
    %3917 = vmatpush1.bf16.msra.mxu0 0
    %3918 = vmatprep.subr.bf16.mxu0 0
    %3919 = vmatpush1.bf16.msra.mxu0 0
    %3920 = vmatprep.subr.bf16.mxu0 0
    %3921 = vmatpush1.bf16.msra.mxu0 0
    %3922 = vmatprep.subr.bf16.mxu0 0
    %3923 = vmatpush1.bf16.msra.mxu0 0
    %3924 = vmatprep.mubr.bf16.mxu0 0
    %3925 = vmatmul.mubr.bf16.gmra.mrb[0].mxu0 %v3676
    %v3926 = vpop.f32.mrb[0].mxu0
    %v3927 = vadd.f32 %v3715, %v3926
    %v3928 = vpop.f32.mrb[0].mxu0
    %v3929 = vadd.f32 %v3719, %v3928
    %v3930 = vpop.f32.mrb[0].mxu0
    %v3931 = vpop.f32.mrb[0].mxu0
    %3932 = vdwg.mxu0
    %3933 = vmatprep.subr.bf16.mxu0 %v3831
    %3934 = vmatpush1.bf16.msra.mxu0 %v3830
    %3935 = vmatprep.subr.bf16.mxu0 %v3835
    %3936 = vmatpush1.bf16.msra.mxu0 %v3834
    %3937 = vmatprep.subr.bf16.mxu0 %v3839
    %3938 = vmatpush1.bf16.msra.mxu0 %v3838
    %3939 = vmatprep.subr.bf16.mxu0 %v3843
    %3940 = vmatpush1.bf16.msra.mxu0 %v3842
    %3941 = vmatprep.subr.bf16.mxu0 %v3847
    %3942 = vmatpush1.bf16.msra.mxu0 %v3846
    %3943 = vmatprep.subr.bf16.mxu0 %v3851
    %3944 = vmatpush1.bf16.msra.mxu0 %v3850
    %3945 = vmatprep.subr.bf16.mxu0 %v3855
    %3946 = vmatpush1.bf16.msra.mxu0 %v3854
    %3947 = vmatprep.subr.bf16.mxu0 %v3859
    %3948 = vmatpush1.bf16.msra.mxu0 %v3858
    %3949 = vmatprep.subr.bf16.mxu0 0
    %3950 = vmatpush1.bf16.msra.mxu0 0
    %3951 = vmatprep.subr.bf16.mxu0 0
    %3952 = vmatpush1.bf16.msra.mxu0 0
    %3953 = vmatprep.subr.bf16.mxu0 0
    %3954 = vmatpush1.bf16.msra.mxu0 0
    %3955 = vmatprep.subr.bf16.mxu0 0
    %3956 = vmatpush1.bf16.msra.mxu0 0
    %3957 = vmatprep.subr.bf16.mxu0 0
    %3958 = vmatpush1.bf16.msra.mxu0 0
    %3959 = vmatprep.subr.bf16.mxu0 0
    %3960 = vmatpush1.bf16.msra.mxu0 0
    %3961 = vmatprep.subr.bf16.mxu0 0
    %3962 = vmatpush1.bf16.msra.mxu0 0
    %3963 = vmatprep.subr.bf16.mxu0 0
    %3964 = vmatpush1.bf16.msra.mxu0 0
    %3965 = vmatprep.mubr.bf16.mxu0 0
    %3966 = vmatmul.mubr.bf16.gmra.mrb[0].mxu0 %v3676
    %v3967 = vpop.f32.mrb[0].mxu0
    %v3968 = vadd.f32 %v3723, %v3967
    %v3969 = vpop.f32.mrb[0].mxu0
    %v3970 = vadd.f32 %v3727, %v3969
    %v3971 = vpop.f32.mrb[0].mxu0
    %v3972 = vpop.f32.mrb[0].mxu0
    %3973 = vdwg.mxu0
    %3974 = vst [vmem:[#allocation8] sm:$0xff] %v3927
    %3975 = vst [vmem:[#allocation8 + $0x8] sm:$0xff] %v3929
    %3976 = vst [vmem:[#allocation8 + $0x10] sm:$0xff] %v3968
    %3977 = vst [vmem:[#allocation8 + $0x18] sm:$0xff] %v3970
    %v3978 = vmul.f32 %v73, %v73
    %v3979 = vmul.f32 %v74, %v74
    %v3980 = vmul.f32 %v75, %v75
    %v3981 = vmul.f32 %v76, %v76
    %v3982 = vsel %vm78, %v3978, 0.0
    %v3983 = vsel %vm78, %v3979, 0.0
    %v3984 = vadd.f32 %v3982, %v3983
    %v3985 = vsel %vm78, %v3980, 0.0
    %v3986 = vadd.f32 %v3984, %v3985
    %v3987 = vsel %vm78, %v3981, 0.0
    %v3988 = vadd.f32 %v3986, %v3987
    %3989 = vadd.xlane.f32.xlu0 %v3988
    %v3990 = vpop.xlane.xlu0 %3989
    %v3991 = vrot.slane %v3990, 4
    %v3992 = vadd.f32 %v3990, %v3991
    %v3993 = vrot.slane %v3992, 2
    %v3994 = vadd.f32 %v3992, %v3993
    %v3995 = vrot.slane %v3994, 1
    %v3996 = vadd.f32 %v3994, %v3995
    %s3997 = vtos %v3996
    %s3998 = smul.f32 %s3997, -0.5
    %s3999 = ssub.f32 %s3998, 88.2181
    %v4000 = vmul.f32 %v3444, %v1525
    %4001 = vadd.xlane.f32.xlu0 %v4000
    %v4002 = vpop.xlane.xlu0 %4001
    %v4003 = vrot.slane %v4002, 4
    %v4004 = vadd.f32 %v4002, %v4003
    %v4005 = vrot.slane %v4004, 2
    %v4006 = vadd.f32 %v4004, %v4005
    %v4007 = vrot.slane %v4006, 1
    %v4008 = vadd.f32 %v4006, %v4007
    %s4009 = vtos %v4008
    %s4010 = smul.f32 %s4009, 0.5
    %s4011 = sadd.f32 %s4010, 90.812065
    %v4012 = vlaneseq
    %v4013 = vand.u32 %v4012, 127
    %vm4014 = vcmp.lt.s32.totalorder %v4013, 64
    %v4015 = vstv %s4011
    %v4016 = vstv %s3999
    %v4017 = vsel %vm4014, %v4015, %v4016
    %4018 = vst [vmem:[#allocation11] sm:$0xff] %v4017
    // Predicated region
    $region42: #{tpu_custom_call.1} parent=1 // pred_check
      _
    $region43: #{tpu_custom_call.1} parent=1 // pred_check_branch
      %4020 = sbr.rel (0) target = $region45
    $region44: #{tpu_custom_call.1} parent=1 // pred_region
      %s4022 = ssub.s32 512, 512
      %4023 = vsyncadd [#allocation4], %s4022
      %s4025 = sshll.u32 [#allocation8], 4
      %s4026 = int_to_ptr.vmem [resolvable:$true] %s4025
      %4028 = dma.vmem_to_hbm [thread:$0]  %s4026, 512, %s7, [#allocation4]
    $region45: #{tpu_custom_call.1} parent=1 // pred_fallthru
      _
    // Predicated region
    $region46: #{tpu_custom_call.1} parent=1 // pred_check
      _
    $region47: #{tpu_custom_call.1} parent=1 // pred_check_branch
      %4030 = sbr.rel (0) target = $region49
    $region48: #{tpu_custom_call.1} parent=1 // pred_region
      %s4032 = ssub.s32 128, 128
      %4033 = vsyncadd [#allocation10], %s4032
      %s4035 = sshll.u32 [#allocation9], 4
      %s4036 = int_to_ptr.vmem [resolvable:$true] %s4035
      %4038 = dma.vmem_to_hbm [thread:$0]  %s4036, 128, %s8, [#allocation10]
    $region49: #{tpu_custom_call.1} parent=1 // pred_fallthru
      _
    // Predicated region
    $region50: #{tpu_custom_call.1} parent=1 // pred_check
      _
    $region51: #{tpu_custom_call.1} parent=1 // pred_check_branch
      %4040 = sbr.rel (0) target = $region53
    $region52: #{tpu_custom_call.1} parent=1 // pred_region
      %s4042 = ssub.s32 128, 128
      %4043 = vsyncadd [#allocation10], %s4042
      %s4045 = sshll.u32 [#allocation11], 4
      %s4046 = int_to_ptr.vmem [resolvable:$true] %s4045
      %4048 = dma.vmem_to_hbm [thread:$0]  %s4046, 128, %s9, [#allocation10]
    $region53: #{tpu_custom_call.1} parent=1 // pred_fallthru
      _
    // Predicated region
    $region54: #{tpu_custom_call.1} parent=1 // pred_check
      _
    $region55: #{tpu_custom_call.1} parent=1 // pred_check_branch
      %4050 = sbr.rel (0) target = $region57
    $region56: #{tpu_custom_call.1} parent=1 // pred_region
      %4051 = dma.done [#allocation4], 512
    $region57: #{tpu_custom_call.1} parent=1 // pred_fallthru
      _
    // Predicated region
    $region58: #{tpu_custom_call.1} parent=1 // pred_check
      _
    $region59: #{tpu_custom_call.1} parent=1 // pred_check_branch
      %4053 = sbr.rel (0) target = $region61
    $region60: #{tpu_custom_call.1} parent=1 // pred_region
      %4054 = dma.done [#allocation10], 128
    $region61: #{tpu_custom_call.1} parent=1 // pred_fallthru
      _
    // Predicated region
    $region62: #{tpu_custom_call.1} parent=1 // pred_check
      _
    $region63: #{tpu_custom_call.1} parent=1 // pred_check_branch
      %4056 = sbr.rel (0) target = $region65
    $region64: #{tpu_custom_call.1} parent=1 // pred_region
      %4057 = dma.done [#allocation10], 128
    $region65: #{tpu_custom_call.1} parent=1 // pred_fallthru
      _
    %4058 = vsyncpa [#allocation3], 1
    %4059 = vsyncpa [#allocation6], 1
    %4060 = vsyncpa [#allocation4], 1
    %4061 = vsyncpa [#allocation10], 1

</llo_original>
